<compile_context>
chip_gen: v5e
topology: v5e:2x2
jax: 0.10.0
libtpu: 0.0.40
codegen_flags: <defaults>
</compile_context>

<pallas_src>
import functools

import jax
import jax.numpy as jnp
from jax.experimental import pallas as pl
from jax.experimental.pallas import tpu as pltpu

F32 = jnp.float32
NEG_INF = jnp.finfo(jnp.float32).min
LN_EPS = 1e-12

CFG = dict(vocab=128, hidden=32, inter=64, heads=4, layers=2, max_pos=16, types=2)


# ----------------------------- in-kernel helpers -----------------------------

def _layernorm(x, gamma, beta, eps=LN_EPS):
    mu = jnp.mean(x, axis=-1, keepdims=True)
    xc = x - mu
    var = jnp.mean(xc * xc, axis=-1, keepdims=True)
    return xc * jax.lax.rsqrt(var + eps) * gamma + beta


def _gelu(y):
    # TODO(synk): HF BERT default is exact erf-GELU; tanh approximation used here.
    return 0.5 * y * (1.0 + jnp.tanh(0.7978845608028654 * (y + 0.044715 * y * y * y)))


def _full_spec(shape):
    return pl.BlockSpec(shape, lambda *_: (0,) * len(shape))


def _bert_layer(q, kv, add_m, wqkv, bqkv, wo, bo, ln1, wi, bi, wd, bd, ln2, *, nh):
    """One BertLayer / BertLayerForDecoder on VMEM-resident arrays.

    q, kv : (B, S, H) activations (B is the per-grid-step batch, usually 1)
    add_m : (B, 1, S) additive attention mask
    """
    B, S, H = q.shape
    dh = H // nh
    scale = 1.0 / (dh ** 0.5)

    qf = q.reshape(B * S, H)
    kvf = kv.reshape(B * S, H)

    # Packed, lane-dense (H, 3H) projection.  Q from the query stream, K/V from
    # the key/value stream (identical arrays in the encoder).
    qkv_q = jnp.dot(qf, wqkv, preferred_element_type=jnp.float32) + bqkv
    qkv_kv = jnp.dot(kvf, wqkv, preferred_element_type=jnp.float32) + bqkv
    q_all = qkv_q[:, :H]
    k_all = qkv_kv[:, H:2 * H]
    v_all = qkv_kv[:, 2 * H:]

    # Per-head attention, statically unrolled; the output projection is fused
    # as a per-head accumulation so no concat / head-merge transpose is needed.
    attn_out = jnp.zeros((B * S, H), jnp.float32)
    for h in range(nh):
        sl = slice(h * dh, (h + 1) * dh)
        qh = q_all[:, sl].reshape(B, S, dh)
        kh = k_all[:, sl].reshape(B, S, dh)
        vh = v_all[:, sl].reshape(B, S, dh)
        s = jnp.einsum("bqd,bkd->bqk", qh, kh,
                       preferred_element_type=jnp.float32) * scale + add_m
        s = s - jnp.max(s, axis=-1, keepdims=True)
        p = jnp.exp(s)
        p = p * pl.reciprocal(jnp.sum(p, axis=-1, keepdims=True), approx=True)
        ch = jnp.einsum("bqk,bkd->bqd", p, vh,
                        preferred_element_type=jnp.float32).reshape(B * S, dh)
        attn_out = attn_out + jnp.dot(ch, wo[sl, :],
                                      preferred_element_type=jnp.float32)
    attn_out = attn_out + bo

    # residual of the attention block is the *query* stream (HF / RetroMAE)
    h1 = _layernorm(attn_out + qf, ln1[0:1, :], ln1[1:2, :])
    inter = _gelu(jnp.dot(h1, wi, preferred_element_type=jnp.float32) + bi)
    ffn = jnp.dot(inter, wd, preferred_element_type=jnp.float32) + bd
    h2 = _layernorm(ffn + h1, ln2[0:1, :], ln2[1:2, :])
    return h2.reshape(B, S, H)


# ----------------------------- Pallas kernels -----------------------------

def _encoder_stack_kernel(x_ref, mask_ref, pos_ref, typ_ref, eln_ref,
                          wqkv_ref, bqkv_ref, wo_ref, bo_ref, ln1_ref,
                          wi_ref, bi_ref, wd_ref, bd_ref, ln2_ref,
                          o_ref, *, nh):
    """grid = (batch, layer): embed-LN at layer 0, then one layer per step.

    The hidden state is carried in the resident output block across the layer
    axis, so activations stay in VMEM for the whole encoder stack.
    """
    layer = pl.program_id(1)

    @pl.when(layer == 0)
    def _():
        # BertEmbeddings: inputs_embeds + position + token_type(0), LayerNorm.
        e = x_ref[...] + pos_ref[...] + typ_ref[...]
        o_ref[...] = _layernorm(e, eln_ref[0:1, :], eln_ref[1:2, :])

    h = o_ref[...]
    o_ref[...] = _bert_layer(
        h, h, mask_ref[...],
        wqkv_ref[...], bqkv_ref[...], wo_ref[...], bo_ref[...], ln1_ref[...],
        wi_ref[...], bi_ref[...], wd_ref[...], bd_ref[...], ln2_ref[...], nh=nh)


def encoder_stack(params, inputs_embeds, add_mask):
    # dropout omitted (stochastic, training-only); token_type_ids assumed 0.
    B, S, H = inputs_embeds.shape
    I = CFG["inter"]
    L = CFG["layers"]
    st = params["enc_stack"]

    act_spec = pl.BlockSpec((1, S, H), lambda b, l: (b, 0, 0))
    mask_spec = pl.BlockSpec((1, 1, S), lambda b, l: (b, 0, 0))

    def shared(shape):
        nz = len(shape)
        return pl.BlockSpec(shape, lambda b, l: (0,) * nz)

    def per_layer(shape):
        nz = len(shape)
        return pl.BlockSpec((None,) + shape, lambda b, l: (l,) + (0,) * nz)

    return pl.pallas_call(
        functools.partial(_encoder_stack_kernel, nh=CFG["heads"]),
        out_shape=jax.ShapeDtypeStruct((B, S, H), F32),
        grid=(B, L),
        in_specs=[act_spec, mask_spec,
                  shared((S, H)), shared((1, H)), shared((2, H)),
                  per_layer((H, 3 * H)), per_layer((1, 3 * H)),
                  per_layer((H, H)), per_layer((1, H)), per_layer((2, H)),
                  per_layer((H, I)), per_layer((1, I)),
                  per_layer((I, H)), per_layer((1, H)), per_layer((2, H))],
        out_specs=act_spec,
        compiler_params=pltpu.CompilerParams(
            dimension_semantics=("parallel", "arbitrary")),
    )(inputs_embeds.astype(F32), add_mask,
      params["pos_emb"][:S], params["type_emb"][0:1], params["emb_ln"],
      st["Wqkv"], st["bqkv"], st["Wo"], st["bo"], st["ln1"],
      st["Wi"], st["bi"], st["Wd"], st["bd"], st["ln2"])


def _embed_ln_kernel(emb_ref, pos_ref, typ_ref, ln_ref, o_ref):
    x = emb_ref[...] + pos_ref[...] + typ_ref[...]
    o_ref[...] = _layernorm(x, ln_ref[0:1, :], ln_ref[1:2, :])


def embed_layernorm(params, inputs_embeds):
    # BertEmbeddings for the decoder streams (dropout omitted, types == 0).
    Bx, S, H = inputs_embeds.shape
    return pl.pallas_call(
        _embed_ln_kernel,
        out_shape=jax.ShapeDtypeStruct((Bx, S, H), F32),
        grid=(1,),
        in_specs=[_full_spec((Bx, S, H)), _full_spec((S, H)),
                  _full_spec((1, H)), _full_spec((2, H))],
        out_specs=_full_spec((Bx, S, H)),
    )(inputs_embeds.astype(F32), params["pos_emb"][:S],
      params["type_emb"][0:1], params["emb_ln"])


def _decoder_layer_kernel(q_ref, kv_ref, mask_ref,
                          wqkv_ref, bqkv_ref, wo_ref, bo_ref, ln1_ref,
                          wi_ref, bi_ref, wd_ref, bd_ref, ln2_ref,
                          o_ref, *, nh):
    o_ref[...] = _bert_layer(
        q_ref[...], kv_ref[...], mask_ref[...],
        wqkv_ref[...], bqkv_ref[...], wo_ref[...], bo_ref[...], ln1_ref[...],
        wi_ref[...], bi_ref[...], wd_ref[...], bd_ref[...], ln2_ref[...], nh=nh)


def fused_layer(p, q_in, kv_in, add_mask):
    # BertLayerForDecoder: q_in/kv_in (B, S, H); add_mask (B, 1, S) additive f32.
    B, S, H = q_in.shape
    I = p["Wi"].shape[1]
    act_spec = pl.BlockSpec((1, S, H), lambda b: (b, 0, 0))
    mask_spec = pl.BlockSpec((1, 1, S), lambda b: (b, 0, 0))
    return pl.pallas_call(
        functools.partial(_decoder_layer_kernel, nh=CFG["heads"]),
        out_shape=jax.ShapeDtypeStruct((B, S, H), F32),
        grid=(B,),
        in_specs=[act_spec, act_spec, mask_spec,
                  _full_spec((H, 3 * H)), _full_spec((1, 3 * H)),
                  _full_spec((H, H)), _full_spec((1, H)), _full_spec((2, H)),
                  _full_spec((H, I)), _full_spec((1, I)),
                  _full_spec((I, H)), _full_spec((1, H)), _full_spec((2, H))],
        out_specs=act_spec,
        compiler_params=pltpu.CompilerParams(dimension_semantics=("parallel",)),
    )(q_in, kv_in, add_mask,
      p["Wqkv"], p["bqkv"], p["Wo"], p["bo"], p["ln1"],
      p["Wi"], p["bi"], p["Wd"], p["bd"], p["ln2"])


def _mlm_ce_kernel(x_ref, lab_ref, trw_ref, trb_ref, trln_ref, emb_ref, bias_ref,
                   loss_ref, valid_ref):
    # BertOnlyMLMHead (transform dense + GELU + LN, tied decoder + bias) fused
    # with CrossEntropy(ignore_index=-100) for BOTH streams (encoder, decoder),
    # reduced to per-stream scalar (loss_sum, valid_count).
    n_streams, N, H = x_ref.shape
    V = emb_ref.shape[0]

    trw = trw_ref[...]
    trb = trb_ref[...]
    g = trln_ref[0:1, :]
    b = trln_ref[1:2, :]
    w_dec_t = emb_ref[...].T          # tied decoder weight, transposed once
    bias = bias_ref[...]
    iota = jax.lax.broadcasted_iota(jnp.int32, (N, V), 1)

    for s_i in range(n_streams):
        x = x_ref[s_i]                                   # (N, H)
        labels = lab_ref[s_i]                            # (N, 1), -100 = ignore
        t = _gelu(jnp.dot(x, trw, preferred_element_type=jnp.float32) + trb)
        t = _layernorm(t, g, b)
        logits = jnp.dot(t, w_dec_t, preferred_element_type=jnp.float32) + bias
        m = jnp.max(logits, axis=-1, keepdims=True)
        lse = m + jnp.log(jnp.sum(jnp.exp(logits - m), axis=-1, keepdims=True))
        tgt = jnp.sum(jnp.where(iota == labels, logits, 0.0), axis=-1, keepdims=True)
        valid = (labels >= 0).astype(jnp.float32)
        loss_ref[s_i:s_i + 1, :] = jnp.sum((lse - tgt) * valid, axis=0, keepdims=True)
        valid_ref[s_i:s_i + 1, :] = jnp.sum(valid, axis=0, keepdims=True)


def mlm_ce_both(params, enc_hidden, enc_labels, dec_hidden, dec_labels):
    # Matches nn.CrossEntropyLoss() (mean over non -100 targets) per stream.
    B, S, H = enc_hidden.shape
    N = B * S
    V = CFG["vocab"]
    x = jnp.stack([enc_hidden.reshape(N, H), dec_hidden.reshape(N, H)], axis=0)
    labs = jnp.stack([enc_labels.reshape(N, 1), dec_labels.reshape(N, 1)],
                     axis=0).astype(jnp.int32)
    loss_sum, valid_sum = pl.pallas_call(
        _mlm_ce_kernel,
        out_shape=(jax.ShapeDtypeStruct((2, 1), F32),
                   jax.ShapeDtypeStruct((2, 1), F32)),
        grid=(1,),
        in_specs=[_full_spec((2, N, H)), _full_spec((2, N, 1)),
                  _full_spec((H, H)), _full_spec((1, H)), _full_spec((2, H)),
                  _full_spec((V, H)), _full_spec((1, V))],
        out_specs=(_full_spec((2, 1)), _full_spec((2, 1))),
    )(x, labs, params["tr_W"], params["tr_b"], params["tr_ln"],
      params["word_emb"], params["dec_bias"])
    enc_loss = loss_sum[0, 0] / valid_sum[0, 0]
    dec_loss = loss_sum[1, 0] / valid_sum[1, 0]
    return enc_loss, dec_loss


# ----------------------------- model (JAX glue) -----------------------------

def init_params(key):
    H, V, I, L = CFG["hidden"], CFG["vocab"], CFG["inter"], CFG["layers"]
    keys = iter(jax.random.split(key, 128))

    def nrm(shape):
        return (0.02 * jax.random.normal(next(keys), shape)).astype(F32)

    def ln_pack():
        return jnp.stack([jnp.ones((H,), F32), jnp.zeros((H,), F32)])

    def layer_params():
        return dict(
            Wqkv=jnp.concatenate([nrm((H, H)), nrm((H, H)), nrm((H, H))], axis=1),
            bqkv=jnp.zeros((1, 3 * H), F32),
            Wo=nrm((H, H)), bo=jnp.zeros((1, H), F32),
            ln1=ln_pack(),
            Wi=nrm((H, I)), bi=jnp.zeros((1, I), F32),
            Wd=nrm((I, H)), bd=jnp.zeros((1, H), F32),
            ln2=ln_pack(),
        )

    enc_layers = [layer_params() for _ in range(L)]
    enc_stack = jax.tree_util.tree_map(lambda *xs: jnp.stack(xs, axis=0), *enc_layers)

    return dict(
        word_emb=nrm((V, H)),
        pos_emb=nrm((CFG["max_pos"], H)),
        type_emb=nrm((CFG["types"], H)),
        emb_ln=ln_pack(),
        enc_stack=enc_stack,                   # per-layer weights stacked on L axis
        c_head=layer_params(),                 # BertLayerForDecoder
        tr_W=nrm((H, H)), tr_b=jnp.zeros((1, H), F32),   # MLM head transform
        tr_ln=ln_pack(),
        dec_bias=jnp.zeros((1, V), F32),       # MLM decoder bias (weights tied)
    )


def extended_mask(mask):
    # HF get_extended_attention_mask: (1 - m) * finfo(dtype).min -> (B, 1, S)
    return ((1.0 - mask.astype(F32)) * NEG_INF)[:, None, :]


def retromae_forward(params, enc_ids, enc_mask, enc_labels,
                     dec_ids, dec_mask, dec_labels):
    B, S = enc_ids.shape
    H = CFG["hidden"]

    # ---- encoder: BertForMaskedLM (output_hidden_states) — ONE pallas_call ----
    enc_add = extended_mask(enc_mask)
    seq_out = encoder_stack(params, params["word_emb"][enc_ids], enc_add)

    # ---- RetroMAE enhanced decoder ----
    cls_hiddens = seq_out[:, :1]                                  # (B, 1, H)
    cls_exp = jnp.broadcast_to(cls_hiddens, (B, S, H))
    dec_in = jnp.concatenate([params["word_emb"][dec_ids], cls_exp], axis=0)
    dec_embeds = embed_layernorm(params, dec_in)                  # (2B, S, H)
    dec_emb = dec_embeds[:B]
    query = dec_embeds[B:]
    hiddens = jnp.concatenate([cls_hiddens, dec_emb[:, 1:]], axis=1)
    dec_add = extended_mask(dec_mask)
    dec_hidden = fused_layer(params["c_head"], query, hiddens, dec_add)

    # ---- MLM head + cross-entropy for both streams (one pallas_call) ----
    enc_loss, dec_loss = mlm_ce_both(params, seq_out, enc_labels,
                                     dec_hidden, dec_labels)
    return (dec_loss + enc_loss,)


# ----------------------------- driver -----------------------------

if __name__ == "__main__":
    B, S, V = 2, 8, CFG["vocab"]
    key = jax.random.PRNGKey(0)
    kp, k1, k2 = jax.random.split(key, 3)
    params = init_params(kp)

    enc_ids = jax.random.randint(k1, (B, S), 0, V, dtype=jnp.int32)
    dec_ids = jax.random.randint(k2, (B, S), 0, V, dtype=jnp.int32)
    enc_mask = jnp.ones((B, S), jnp.int32)
    dec_mask = jnp.ones((B, S), jnp.int32)
    pos = jnp.arange(B * S, dtype=jnp.int32).reshape(B, S)
    enc_labels = jnp.where(pos % 3 == 0, enc_ids, -100).astype(jnp.int32)
    dec_labels = jnp.where(pos % 2 == 0, dec_ids, -100).astype(jnp.int32)

    fwd = jax.jit(retromae_forward)
    (loss,) = fwd(params, enc_ids, enc_mask, enc_labels, dec_ids, dec_mask, dec_labels)
    jax.block_until_ready(loss)
    assert bool(jnp.isfinite(loss)), "loss is not finite"
    print("KERNEL_OK")
</pallas_src>

<mosaic_0001>
module attributes {stable_mosaic.version = 11 : i64} {
  func.func @_encoder_stack_kernel(%arg0: i32, %arg1: i32, %arg2: memref<1x8x32xf32, #tpu.memory_space<vmem>>, %arg3: memref<1x1x8xf32, #tpu.memory_space<vmem>>, %arg4: memref<8x32xf32, #tpu.memory_space<vmem>>, %arg5: memref<1x32xf32, #tpu.memory_space<vmem>>, %arg6: memref<2x32xf32, #tpu.memory_space<vmem>>, %arg7: memref<1x32x96xf32, #tpu.memory_space<vmem>>, %arg8: memref<1x1x96xf32, #tpu.memory_space<vmem>>, %arg9: memref<1x32x32xf32, #tpu.memory_space<vmem>>, %arg10: memref<1x1x32xf32, #tpu.memory_space<vmem>>, %arg11: memref<1x2x32xf32, #tpu.memory_space<vmem>>, %arg12: memref<1x32x64xf32, #tpu.memory_space<vmem>>, %arg13: memref<1x1x64xf32, #tpu.memory_space<vmem>>, %arg14: memref<1x64x32xf32, #tpu.memory_space<vmem>>, %arg15: memref<1x1x32xf32, #tpu.memory_space<vmem>>, %arg16: memref<1x2x32xf32, #tpu.memory_space<vmem>>, %arg17: memref<1x8x32xf32, #tpu.memory_space<vmem>>) attributes {dimension_semantics = [#tpu.dimension_semantics<parallel>, #tpu.dimension_semantics<arbitrary>], iteration_bounds = array<i64: 2, 2>, scalar_prefetch = 0 : i64, scratch_operands = 0 : i64, tpu.core_type = #tpu.core_type<tc>, window_params = [{transform_indices = @transform_0, window_bounds = array<i64: 1, 8, 32>}, {transform_indices = @transform_1, window_bounds = array<i64: 1, 1, 8>}, {pipeline_mode = #tpu.pipeline_mode<synchronous>, transform_indices = @transform_2, window_bounds = array<i64: 8, 32>}, {pipeline_mode = #tpu.pipeline_mode<synchronous>, transform_indices = @transform_3, window_bounds = array<i64: 1, 32>}, {pipeline_mode = #tpu.pipeline_mode<synchronous>, transform_indices = @transform_4, window_bounds = array<i64: 2, 32>}, {transform_indices = @transform_5, window_bounds = array<i64: 1, 32, 96>}, {transform_indices = @transform_6, window_bounds = array<i64: 1, 1, 96>}, {transform_indices = @transform_7, window_bounds = array<i64: 1, 32, 32>}, {transform_indices = @transform_8, window_bounds = array<i64: 1, 1, 32>}, {transform_indices = @transform_9, window_bounds = array<i64: 1, 2, 32>}, {transform_indices = @transform_10, window_bounds = array<i64: 1, 32, 64>}, {transform_indices = @transform_11, window_bounds = array<i64: 1, 1, 64>}, {transform_indices = @transform_12, window_bounds = array<i64: 1, 64, 32>}, {transform_indices = @transform_13, window_bounds = array<i64: 1, 1, 32>}, {transform_indices = @transform_14, window_bounds = array<i64: 1, 2, 32>}, {transform_indices = @transform_15, window_bounds = array<i64: 1, 8, 32>}]} {
    %c0_i32 = arith.constant 0 : i32
    %0 = arith.cmpi eq, %arg1, %c0_i32 : i32
    %1 = arith.extui %0 : i1 to i32
    %c0_i32_0 = arith.constant 0 : i32
    %2 = arith.cmpi ne, %1, %c0_i32_0 : i32
    scf.if %2 {
      %c0_81 = arith.constant 0 : index
      %c0_82 = arith.constant 0 : index
      %c0_83 = arith.constant 0 : index
      %210 = vector.load %arg2[%c0_81, %c0_82, %c0_83] : memref<1x8x32xf32, #tpu.memory_space<vmem>>, vector<1x8x32xf32>
      %c0_84 = arith.constant 0 : index
      %c0_85 = arith.constant 0 : index
      %211 = vector.load %arg4[%c0_84, %c0_85] : memref<8x32xf32, #tpu.memory_space<vmem>>, vector<8x32xf32>
      %212 = vector.shape_cast %211 : vector<8x32xf32> to vector<1x8x32xf32>
      %213 = arith.addf %210, %212 : vector<1x8x32xf32>
      %c0_86 = arith.constant 0 : index
      %c0_87 = arith.constant 0 : index
      %214 = vector.load %arg5[%c0_86, %c0_87] : memref<1x32xf32, #tpu.memory_space<vmem>>, vector<1x32xf32>
      %215 = vector.shape_cast %214 : vector<1x32xf32> to vector<1x1x32xf32>
      %216 = vector.broadcast %215 : vector<1x1x32xf32> to vector<1x8x32xf32>
      %217 = arith.addf %213, %216 : vector<1x8x32xf32>
      %c0_88 = arith.constant 0 : index
      %c0_89 = arith.constant 0 : index
      %218 = vector.load %arg6[%c0_88, %c0_89] : memref<2x32xf32, #tpu.memory_space<vmem>>, vector<1x32xf32>
      %c1 = arith.constant 1 : index
      %c0_90 = arith.constant 0 : index
      %219 = vector.load %arg6[%c1, %c0_90] : memref<2x32xf32, #tpu.memory_space<vmem>>, vector<1x32xf32>
      %cst_91 = arith.constant dense<0.000000e+00> : vector<1x8xf32>
      %220 = vector.multi_reduction <add>, %217, %cst_91 [2] : vector<1x8x32xf32> to vector<1x8xf32>
      %221 = vector.shape_cast %220 : vector<1x8xf32> to vector<1x8x1xf32>
      %cst_92 = arith.constant 3.200000e+01 : f32
      %222 = vector.broadcast %cst_92 : f32 to vector<1x8x1xf32>
      %223 = arith.divf %221, %222 : vector<1x8x1xf32>
      %224 = vector.broadcast %223 : vector<1x8x1xf32> to vector<1x8x32xf32>
      %225 = arith.subf %217, %224 : vector<1x8x32xf32>
      %226 = arith.mulf %225, %225 : vector<1x8x32xf32>
      %cst_93 = arith.constant dense<0.000000e+00> : vector<1x8xf32>
      %227 = vector.multi_reduction <add>, %226, %cst_93 [2] : vector<1x8x32xf32> to vector<1x8xf32>
      %228 = vector.shape_cast %227 : vector<1x8xf32> to vector<1x8x1xf32>
      %cst_94 = arith.constant 3.200000e+01 : f32
      %229 = vector.broadcast %cst_94 : f32 to vector<1x8x1xf32>
      %230 = arith.divf %228, %229 : vector<1x8x1xf32>
      %cst_95 = arith.constant 9.99999996E-13 : f32
      %231 = vector.broadcast %cst_95 : f32 to vector<1x8x1xf32>
      %232 = arith.addf %230, %231 : vector<1x8x1xf32>
      %233 = math.rsqrt %232 : vector<1x8x1xf32>
      %234 = vector.broadcast %233 : vector<1x8x1xf32> to vector<1x8x32xf32>
      %235 = arith.mulf %225, %234 : vector<1x8x32xf32>
      %236 = vector.shape_cast %218 : vector<1x32xf32> to vector<1x1x32xf32>
      %237 = vector.broadcast %236 : vector<1x1x32xf32> to vector<1x8x32xf32>
      %238 = arith.mulf %235, %237 : vector<1x8x32xf32>
      %239 = vector.shape_cast %219 : vector<1x32xf32> to vector<1x1x32xf32>
      %240 = vector.broadcast %239 : vector<1x1x32xf32> to vector<1x8x32xf32>
      %241 = arith.addf %238, %240 : vector<1x8x32xf32>
      %c0_96 = arith.constant 0 : index
      %c0_97 = arith.constant 0 : index
      %c0_98 = arith.constant 0 : index
      %242 = vector.load %arg17[%c0_96, %c0_97, %c0_98] : memref<1x8x32xf32, #tpu.memory_space<vmem>>, vector<1x8x32xf32>
      tpu.vector_store %arg17[%c0_96, %c0_97, %c0_98], %241 {strides = array<i32>} : memref<1x8x32xf32, #tpu.memory_space<vmem>>, vector<1x8x32xf32>,
    } else {
    }
    %c0 = arith.constant 0 : index
    %c0_1 = arith.constant 0 : index
    %c0_2 = arith.constant 0 : index
    %3 = vector.load %arg17[%c0, %c0_1, %c0_2] : memref<1x8x32xf32, #tpu.memory_space<vmem>>, vector<1x8x32xf32>
    %c0_3 = arith.constant 0 : index
    %c0_4 = arith.constant 0 : index
    %c0_5 = arith.constant 0 : index
    %4 = vector.load %arg3[%c0_3, %c0_4, %c0_5] : memref<1x1x8xf32, #tpu.memory_space<vmem>>, vector<1x1x8xf32>
    %c0_6 = arith.constant 0 : index
    %c0_7 = arith.constant 0 : index
    %c0_8 = arith.constant 0 : index
    %5 = vector.load %arg7[%c0_6, %c0_7, %c0_8] : memref<1x32x96xf32, #tpu.memory_space<vmem>>, vector<1x32x96xf32>
    %6 = vector.shape_cast %5 : vector<1x32x96xf32> to vector<32x96xf32>
    %c0_9 = arith.constant 0 : index
    %c0_10 = arith.constant 0 : index
    %c0_11 = arith.constant 0 : index
    %7 = vector.load %arg8[%c0_9, %c0_10, %c0_11] : memref<1x1x96xf32, #tpu.memory_space<vmem>>, vector<1x1x96xf32>
    %8 = vector.shape_cast %7 : vector<1x1x96xf32> to vector<1x96xf32>
    %c0_12 = arith.constant 0 : index
    %c0_13 = arith.constant 0 : index
    %c0_14 = arith.constant 0 : index
    %9 = vector.load %arg9[%c0_12, %c0_13, %c0_14] : memref<1x32x32xf32, #tpu.memory_space<vmem>>, vector<1x32x32xf32>
    %10 = vector.shape_cast %9 : vector<1x32x32xf32> to vector<32x32xf32>
    %c0_15 = arith.constant 0 : index
    %c0_16 = arith.constant 0 : index
    %c0_17 = arith.constant 0 : index
    %11 = vector.load %arg10[%c0_15, %c0_16, %c0_17] : memref<1x1x32xf32, #tpu.memory_space<vmem>>, vector<1x1x32xf32>
    %12 = vector.shape_cast %11 : vector<1x1x32xf32> to vector<1x32xf32>
    %c0_18 = arith.constant 0 : index
    %c0_19 = arith.constant 0 : index
    %c0_20 = arith.constant 0 : index
    %13 = vector.load %arg11[%c0_18, %c0_19, %c0_20] : memref<1x2x32xf32, #tpu.memory_space<vmem>>, vector<1x2x32xf32>
    %14 = vector.shape_cast %13 : vector<1x2x32xf32> to vector<2x32xf32>
    %c0_21 = arith.constant 0 : index
    %c0_22 = arith.constant 0 : index
    %c0_23 = arith.constant 0 : index
    %15 = vector.load %arg12[%c0_21, %c0_22, %c0_23] : memref<1x32x64xf32, #tpu.memory_space<vmem>>, vector<1x32x64xf32>
    %16 = vector.shape_cast %15 : vector<1x32x64xf32> to vector<32x64xf32>
    %c0_24 = arith.constant 0 : index
    %c0_25 = arith.constant 0 : index
    %c0_26 = arith.constant 0 : index
    %17 = vector.load %arg13[%c0_24, %c0_25, %c0_26] : memref<1x1x64xf32, #tpu.memory_space<vmem>>, vector<1x1x64xf32>
    %18 = vector.shape_cast %17 : vector<1x1x64xf32> to vector<1x64xf32>
    %c0_27 = arith.constant 0 : index
    %c0_28 = arith.constant 0 : index
    %c0_29 = arith.constant 0 : index
    %19 = vector.load %arg14[%c0_27, %c0_28, %c0_29] : memref<1x64x32xf32, #tpu.memory_space<vmem>>, vector<1x64x32xf32>
    %20 = vector.shape_cast %19 : vector<1x64x32xf32> to vector<64x32xf32>
    %c0_30 = arith.constant 0 : index
    %c0_31 = arith.constant 0 : index
    %c0_32 = arith.constant 0 : index
    %21 = vector.load %arg15[%c0_30, %c0_31, %c0_32] : memref<1x1x32xf32, #tpu.memory_space<vmem>>, vector<1x1x32xf32>
    %22 = vector.shape_cast %21 : vector<1x1x32xf32> to vector<1x32xf32>
    %c0_33 = arith.constant 0 : index
    %c0_34 = arith.constant 0 : index
    %c0_35 = arith.constant 0 : index
    %23 = vector.load %arg16[%c0_33, %c0_34, %c0_35] : memref<1x2x32xf32, #tpu.memory_space<vmem>>, vector<1x2x32xf32>
    %24 = vector.shape_cast %23 : vector<1x2x32xf32> to vector<2x32xf32>
    %25 = vector.shape_cast %3 : vector<1x8x32xf32> to vector<8x32xf32>
    %26 = vector.shape_cast %3 : vector<1x8x32xf32> to vector<8x32xf32>
    %cst = arith.constant dense<0.000000e+00> : vector<8x96xf32>
    %27 = tpu.matmul %25, %6, %cst {dimension_numbers = #tpu.dot_dimension_numbers<[1], [0], [0], [1], [0, 0, 1, 1], [], []>} : vector<8x32xf32>, vector<32x96xf32>, vector<8x96xf32> -> vector<8x96xf32>
    %28 = vector.broadcast %8 : vector<1x96xf32> to vector<8x96xf32>
    %29 = arith.addf %27, %28 : vector<8x96xf32>
    %cst_36 = arith.constant dense<0.000000e+00> : vector<8x96xf32>
    %30 = tpu.matmul %26, %6, %cst_36 {dimension_numbers = #tpu.dot_dimension_numbers<[1], [0], [0], [1], [0, 0, 1, 1], [], []>} : vector<8x32xf32>, vector<32x96xf32>, vector<8x96xf32> -> vector<8x96xf32>
    %31 = vector.broadcast %8 : vector<1x96xf32> to vector<8x96xf32>
    %32 = arith.addf %30, %31 : vector<8x96xf32>
    %33 = vector.extract_strided_slice %29 {offsets = [0, 0], sizes = [8, 32], strides = [1, 1]} : vector<8x96xf32> to vector<8x32xf32>
    %34 = vector.extract_strided_slice %32 {offsets = [0, 32], sizes = [8, 32], strides = [1, 1]} : vector<8x96xf32> to vector<8x32xf32>
    %35 = vector.extract_strided_slice %32 {offsets = [0, 64], sizes = [8, 32], strides = [1, 1]} : vector<8x96xf32> to vector<8x32xf32>
    %cst_37 = arith.constant 0.000000e+00 : f32
    %36 = vector.broadcast %cst_37 : f32 to vector<8x32xf32>
    %37 = vector.extract_strided_slice %33 {offsets = [0, 0], sizes = [8, 8], strides = [1, 1]} : vector<8x32xf32> to vector<8x8xf32>
    %38 = vector.shape_cast %37 : vector<8x8xf32> to vector<1x8x8xf32>
    %39 = vector.extract_strided_slice %34 {offsets = [0, 0], sizes = [8, 8], strides = [1, 1]} : vector<8x32xf32> to vector<8x8xf32>
    %40 = vector.shape_cast %39 : vector<8x8xf32> to vector<1x8x8xf32>
    %41 = vector.extract_strided_slice %35 {offsets = [0, 0], sizes = [8, 8], strides = [1, 1]} : vector<8x32xf32> to vector<8x8xf32>
    %42 = vector.shape_cast %41 : vector<8x8xf32> to vector<1x8x8xf32>
    "tpu.trace_start"() <{level = 10 : i32, message = "bqd,bkd->bqk"}> : () -> ()
    %cst_38 = arith.constant dense<0.000000e+00> : vector<1x8x8xf32>
    %43 = tpu.matmul %38, %40, %cst_38 {dimension_numbers = #tpu.dot_dimension_numbers<[2], [2], [1], [1], [0, 0, 0, 1, 1, 1], [0], [0]>} : vector<1x8x8xf32>, vector<1x8x8xf32>, vector<1x8x8xf32> -> vector<1x8x8xf32>
    "tpu.trace_stop"() : () -> ()
    %cst_39 = arith.constant 0.353553385 : f32
    %44 = vector.broadcast %cst_39 : f32 to vector<1x8x8xf32>
    %45 = arith.mulf %43, %44 : vector<1x8x8xf32>
    %46 = vector.broadcast %4 : vector<1x1x8xf32> to vector<1x8x8xf32>
    %47 = arith.addf %45, %46 : vector<1x8x8xf32>
    %cst_40 = arith.constant dense<0xFF800000> : vector<1x8xf32>
    %48 = vector.multi_reduction <maximumf>, %47, %cst_40 [2] : vector<1x8x8xf32> to vector<1x8xf32>
    %49 = vector.shape_cast %48 : vector<1x8xf32> to vector<1x8x1xf32>
    %50 = vector.broadcast %49 : vector<1x8x1xf32> to vector<1x8x8xf32>
    %51 = arith.subf %47, %50 : vector<1x8x8xf32>
    %52 = math.exp %51 : vector<1x8x8xf32>
    %cst_41 = arith.constant dense<0.000000e+00> : vector<1x8xf32>
    %53 = vector.multi_reduction <add>, %52, %cst_41 [2] : vector<1x8x8xf32> to vector<1x8xf32>
    %54 = vector.shape_cast %53 : vector<1x8xf32> to vector<1x8x1xf32>
    %55 = tpu.reciprocal %54 {approx = true} : vector<1x8x1xf32> -> vector<1x8x1xf32>
    %56 = vector.broadcast %55 : vector<1x8x1xf32> to vector<1x8x8xf32>
    %57 = arith.mulf %52, %56 : vector<1x8x8xf32>
    "tpu.trace_start"() <{level = 10 : i32, message = "bqk,bkd->bqd"}> : () -> ()
    %cst_42 = arith.constant dense<0.000000e+00> : vector<1x8x8xf32>
    %58 = tpu.matmul %57, %42, %cst_42 {dimension_numbers = #tpu.dot_dimension_numbers<[2], [1], [1], [2], [0, 0, 0, 1, 1, 2], [0], [0]>} : vector<1x8x8xf32>, vector<1x8x8xf32>, vector<1x8x8xf32> -> vector<1x8x8xf32>
    "tpu.trace_stop"() : () -> ()
    %59 = vector.shape_cast %58 : vector<1x8x8xf32> to vector<8x8xf32>
    %60 = vector.extract_strided_slice %10 {offsets = [0, 0], sizes = [8, 32], strides = [1, 1]} : vector<32x32xf32> to vector<8x32xf32>
    %cst_43 = arith.constant dense<0.000000e+00> : vector<8x32xf32>
    %61 = tpu.matmul %59, %60, %cst_43 {dimension_numbers = #tpu.dot_dimension_numbers<[1], [0], [0], [1], [0, 0, 1, 1], [], []>} : vector<8x8xf32>, vector<8x32xf32>, vector<8x32xf32> -> vector<8x32xf32>
    %62 = arith.addf %36, %61 : vector<8x32xf32>
    %63 = vector.extract_strided_slice %33 {offsets = [0, 8], sizes = [8, 8], strides = [1, 1]} : vector<8x32xf32> to vector<8x8xf32>
    %64 = vector.shape_cast %63 : vector<8x8xf32> to vector<1x8x8xf32>
    %65 = vector.extract_strided_slice %34 {offsets = [0, 8], sizes = [8, 8], strides = [1, 1]} : vector<8x32xf32> to vector<8x8xf32>
    %66 = vector.shape_cast %65 : vector<8x8xf32> to vector<1x8x8xf32>
    %67 = vector.extract_strided_slice %35 {offsets = [0, 8], sizes = [8, 8], strides = [1, 1]} : vector<8x32xf32> to vector<8x8xf32>
    %68 = vector.shape_cast %67 : vector<8x8xf32> to vector<1x8x8xf32>
    "tpu.trace_start"() <{level = 10 : i32, message = "bqd,bkd->bqk"}> : () -> ()
    %cst_44 = arith.constant dense<0.000000e+00> : vector<1x8x8xf32>
    %69 = tpu.matmul %64, %66, %cst_44 {dimension_numbers = #tpu.dot_dimension_numbers<[2], [2], [1], [1], [0, 0, 0, 1, 1, 1], [0], [0]>} : vector<1x8x8xf32>, vector<1x8x8xf32>, vector<1x8x8xf32> -> vector<1x8x8xf32>
    "tpu.trace_stop"() : () -> ()
    %cst_45 = arith.constant 0.353553385 : f32
    %70 = vector.broadcast %cst_45 : f32 to vector<1x8x8xf32>
    %71 = arith.mulf %69, %70 : vector<1x8x8xf32>
    %72 = vector.broadcast %4 : vector<1x1x8xf32> to vector<1x8x8xf32>
    %73 = arith.addf %71, %72 : vector<1x8x8xf32>
    %cst_46 = arith.constant dense<0xFF800000> : vector<1x8xf32>
    %74 = vector.multi_reduction <maximumf>, %73, %cst_46 [2] : vector<1x8x8xf32> to vector<1x8xf32>
    %75 = vector.shape_cast %74 : vector<1x8xf32> to vector<1x8x1xf32>
    %76 = vector.broadcast %75 : vector<1x8x1xf32> to vector<1x8x8xf32>
    %77 = arith.subf %73, %76 : vector<1x8x8xf32>
    %78 = math.exp %77 : vector<1x8x8xf32>
    %cst_47 = arith.constant dense<0.000000e+00> : vector<1x8xf32>
    %79 = vector.multi_reduction <add>, %78, %cst_47 [2] : vector<1x8x8xf32> to vector<1x8xf32>
    %80 = vector.shape_cast %79 : vector<1x8xf32> to vector<1x8x1xf32>
    %81 = tpu.reciprocal %80 {approx = true} : vector<1x8x1xf32> -> vector<1x8x1xf32>
    %82 = vector.broadcast %81 : vector<1x8x1xf32> to vector<1x8x8xf32>
    %83 = arith.mulf %78, %82 : vector<1x8x8xf32>
    "tpu.trace_start"() <{level = 10 : i32, message = "bqk,bkd->bqd"}> : () -> ()
    %cst_48 = arith.constant dense<0.000000e+00> : vector<1x8x8xf32>
    %84 = tpu.matmul %83, %68, %cst_48 {dimension_numbers = #tpu.dot_dimension_numbers<[2], [1], [1], [2], [0, 0, 0, 1, 1, 2], [0], [0]>} : vector<1x8x8xf32>, vector<1x8x8xf32>, vector<1x8x8xf32> -> vector<1x8x8xf32>
    "tpu.trace_stop"() : () -> ()
    %85 = vector.shape_cast %84 : vector<1x8x8xf32> to vector<8x8xf32>
    %86 = vector.extract_strided_slice %10 {offsets = [8, 0], sizes = [8, 32], strides = [1, 1]} : vector<32x32xf32> to vector<8x32xf32>
    %cst_49 = arith.constant dense<0.000000e+00> : vector<8x32xf32>
    %87 = tpu.matmul %85, %86, %cst_49 {dimension_numbers = #tpu.dot_dimension_numbers<[1], [0], [0], [1], [0, 0, 1, 1], [], []>} : vector<8x8xf32>, vector<8x32xf32>, vector<8x32xf32> -> vector<8x32xf32>
    %88 = arith.addf %62, %87 : vector<8x32xf32>
    %89 = vector.extract_strided_slice %33 {offsets = [0, 16], sizes = [8, 8], strides = [1, 1]} : vector<8x32xf32> to vector<8x8xf32>
    %90 = vector.shape_cast %89 : vector<8x8xf32> to vector<1x8x8xf32>
    %91 = vector.extract_strided_slice %34 {offsets = [0, 16], sizes = [8, 8], strides = [1, 1]} : vector<8x32xf32> to vector<8x8xf32>
    %92 = vector.shape_cast %91 : vector<8x8xf32> to vector<1x8x8xf32>
    %93 = vector.extract_strided_slice %35 {offsets = [0, 16], sizes = [8, 8], strides = [1, 1]} : vector<8x32xf32> to vector<8x8xf32>
    %94 = vector.shape_cast %93 : vector<8x8xf32> to vector<1x8x8xf32>
    "tpu.trace_start"() <{level = 10 : i32, message = "bqd,bkd->bqk"}> : () -> ()
    %cst_50 = arith.constant dense<0.000000e+00> : vector<1x8x8xf32>
    %95 = tpu.matmul %90, %92, %cst_50 {dimension_numbers = #tpu.dot_dimension_numbers<[2], [2], [1], [1], [0, 0, 0, 1, 1, 1], [0], [0]>} : vector<1x8x8xf32>, vector<1x8x8xf32>, vector<1x8x8xf32> -> vector<1x8x8xf32>
    "tpu.trace_stop"() : () -> ()
    %cst_51 = arith.constant 0.353553385 : f32
    %96 = vector.broadcast %cst_51 : f32 to vector<1x8x8xf32>
    %97 = arith.mulf %95, %96 : vector<1x8x8xf32>
    %98 = vector.broadcast %4 : vector<1x1x8xf32> to vector<1x8x8xf32>
    %99 = arith.addf %97, %98 : vector<1x8x8xf32>
    %cst_52 = arith.constant dense<0xFF800000> : vector<1x8xf32>
    %100 = vector.multi_reduction <maximumf>, %99, %cst_52 [2] : vector<1x8x8xf32> to vector<1x8xf32>
    %101 = vector.shape_cast %100 : vector<1x8xf32> to vector<1x8x1xf32>
    %102 = vector.broadcast %101 : vector<1x8x1xf32> to vector<1x8x8xf32>
    %103 = arith.subf %99, %102 : vector<1x8x8xf32>
    %104 = math.exp %103 : vector<1x8x8xf32>
    %cst_53 = arith.constant dense<0.000000e+00> : vector<1x8xf32>
    %105 = vector.multi_reduction <add>, %104, %cst_53 [2] : vector<1x8x8xf32> to vector<1x8xf32>
    %106 = vector.shape_cast %105 : vector<1x8xf32> to vector<1x8x1xf32>
    %107 = tpu.reciprocal %106 {approx = true} : vector<1x8x1xf32> -> vector<1x8x1xf32>
    %108 = vector.broadcast %107 : vector<1x8x1xf32> to vector<1x8x8xf32>
    %109 = arith.mulf %104, %108 : vector<1x8x8xf32>
    "tpu.trace_start"() <{level = 10 : i32, message = "bqk,bkd->bqd"}> : () -> ()
    %cst_54 = arith.constant dense<0.000000e+00> : vector<1x8x8xf32>
    %110 = tpu.matmul %109, %94, %cst_54 {dimension_numbers = #tpu.dot_dimension_numbers<[2], [1], [1], [2], [0, 0, 0, 1, 1, 2], [0], [0]>} : vector<1x8x8xf32>, vector<1x8x8xf32>, vector<1x8x8xf32> -> vector<1x8x8xf32>
    "tpu.trace_stop"() : () -> ()
    %111 = vector.shape_cast %110 : vector<1x8x8xf32> to vector<8x8xf32>
    %112 = vector.extract_strided_slice %10 {offsets = [16, 0], sizes = [8, 32], strides = [1, 1]} : vector<32x32xf32> to vector<8x32xf32>
    %cst_55 = arith.constant dense<0.000000e+00> : vector<8x32xf32>
    %113 = tpu.matmul %111, %112, %cst_55 {dimension_numbers = #tpu.dot_dimension_numbers<[1], [0], [0], [1], [0, 0, 1, 1], [], []>} : vector<8x8xf32>, vector<8x32xf32>, vector<8x32xf32> -> vector<8x32xf32>
    %114 = arith.addf %88, %113 : vector<8x32xf32>
    %115 = vector.extract_strided_slice %33 {offsets = [0, 24], sizes = [8, 8], strides = [1, 1]} : vector<8x32xf32> to vector<8x8xf32>
    %116 = vector.shape_cast %115 : vector<8x8xf32> to vector<1x8x8xf32>
    %117 = vector.extract_strided_slice %34 {offsets = [0, 24], sizes = [8, 8], strides = [1, 1]} : vector<8x32xf32> to vector<8x8xf32>
    %118 = vector.shape_cast %117 : vector<8x8xf32> to vector<1x8x8xf32>
    %119 = vector.extract_strided_slice %35 {offsets = [0, 24], sizes = [8, 8], strides = [1, 1]} : vector<8x32xf32> to vector<8x8xf32>
    %120 = vector.shape_cast %119 : vector<8x8xf32> to vector<1x8x8xf32>
    "tpu.trace_start"() <{level = 10 : i32, message = "bqd,bkd->bqk"}> : () -> ()
    %cst_56 = arith.constant dense<0.000000e+00> : vector<1x8x8xf32>
    %121 = tpu.matmul %116, %118, %cst_56 {dimension_numbers = #tpu.dot_dimension_numbers<[2], [2], [1], [1], [0, 0, 0, 1, 1, 1], [0], [0]>} : vector<1x8x8xf32>, vector<1x8x8xf32>, vector<1x8x8xf32> -> vector<1x8x8xf32>
    "tpu.trace_stop"() : () -> ()
    %cst_57 = arith.constant 0.353553385 : f32
    %122 = vector.broadcast %cst_57 : f32 to vector<1x8x8xf32>
    %123 = arith.mulf %121, %122 : vector<1x8x8xf32>
    %124 = vector.broadcast %4 : vector<1x1x8xf32> to vector<1x8x8xf32>
    %125 = arith.addf %123, %124 : vector<1x8x8xf32>
    %cst_58 = arith.constant dense<0xFF800000> : vector<1x8xf32>
    %126 = vector.multi_reduction <maximumf>, %125, %cst_58 [2] : vector<1x8x8xf32> to vector<1x8xf32>
    %127 = vector.shape_cast %126 : vector<1x8xf32> to vector<1x8x1xf32>
    %128 = vector.broadcast %127 : vector<1x8x1xf32> to vector<1x8x8xf32>
    %129 = arith.subf %125, %128 : vector<1x8x8xf32>
    %130 = math.exp %129 : vector<1x8x8xf32>
    %cst_59 = arith.constant dense<0.000000e+00> : vector<1x8xf32>
    %131 = vector.multi_reduction <add>, %130, %cst_59 [2] : vector<1x8x8xf32> to vector<1x8xf32>
    %132 = vector.shape_cast %131 : vector<1x8xf32> to vector<1x8x1xf32>
    %133 = tpu.reciprocal %132 {approx = true} : vector<1x8x1xf32> -> vector<1x8x1xf32>
    %134 = vector.broadcast %133 : vector<1x8x1xf32> to vector<1x8x8xf32>
    %135 = arith.mulf %130, %134 : vector<1x8x8xf32>
    "tpu.trace_start"() <{level = 10 : i32, message = "bqk,bkd->bqd"}> : () -> ()
    %cst_60 = arith.constant dense<0.000000e+00> : vector<1x8x8xf32>
    %136 = tpu.matmul %135, %120, %cst_60 {dimension_numbers = #tpu.dot_dimension_numbers<[2], [1], [1], [2], [0, 0, 0, 1, 1, 2], [0], [0]>} : vector<1x8x8xf32>, vector<1x8x8xf32>, vector<1x8x8xf32> -> vector<1x8x8xf32>
    "tpu.trace_stop"() : () -> ()
    %137 = vector.shape_cast %136 : vector<1x8x8xf32> to vector<8x8xf32>
    %138 = vector.extract_strided_slice %10 {offsets = [24, 0], sizes = [8, 32], strides = [1, 1]} : vector<32x32xf32> to vector<8x32xf32>
    %cst_61 = arith.constant dense<0.000000e+00> : vector<8x32xf32>
    %139 = tpu.matmul %137, %138, %cst_61 {dimension_numbers = #tpu.dot_dimension_numbers<[1], [0], [0], [1], [0, 0, 1, 1], [], []>} : vector<8x8xf32>, vector<8x32xf32>, vector<8x32xf32> -> vector<8x32xf32>
    %140 = arith.addf %114, %139 : vector<8x32xf32>
    %141 = vector.broadcast %12 : vector<1x32xf32> to vector<8x32xf32>
    %142 = arith.addf %140, %141 : vector<8x32xf32>
    %143 = arith.addf %142, %25 : vector<8x32xf32>
    %144 = vector.extract_strided_slice %14 {offsets = [0, 0], sizes = [1, 32], strides = [1, 1]} : vector<2x32xf32> to vector<1x32xf32>
    %145 = vector.extract_strided_slice %14 {offsets = [1, 0], sizes = [1, 32], strides = [1, 1]} : vector<2x32xf32> to vector<1x32xf32>
    %cst_62 = arith.constant dense<0.000000e+00> : vector<8xf32>
    %146 = vector.multi_reduction <add>, %143, %cst_62 [1] : vector<8x32xf32> to vector<8xf32>
    %147 = vector.shape_cast %146 : vector<8xf32> to vector<8x1xf32>
    %cst_63 = arith.constant 3.200000e+01 : f32
    %148 = vector.broadcast %cst_63 : f32 to vector<8x1xf32>
    %149 = arith.divf %147, %148 : vector<8x1xf32>
    %150 = vector.broadcast %149 : vector<8x1xf32> to vector<8x32xf32>
    %151 = arith.subf %143, %150 : vector<8x32xf32>
    %152 = arith.mulf %151, %151 : vector<8x32xf32>
    %cst_64 = arith.constant dense<0.000000e+00> : vector<8xf32>
    %153 = vector.multi_reduction <add>, %152, %cst_64 [1] : vector<8x32xf32> to vector<8xf32>
    %154 = vector.shape_cast %153 : vector<8xf32> to vector<8x1xf32>
    %cst_65 = arith.constant 3.200000e+01 : f32
    %155 = vector.broadcast %cst_65 : f32 to vector<8x1xf32>
    %156 = arith.divf %154, %155 : vector<8x1xf32>
    %cst_66 = arith.constant 9.99999996E-13 : f32
    %157 = vector.broadcast %cst_66 : f32 to vector<8x1xf32>
    %158 = arith.addf %156, %157 : vector<8x1xf32>
    %159 = math.rsqrt %158 : vector<8x1xf32>
    %160 = vector.broadcast %159 : vector<8x1xf32> to vector<8x32xf32>
    %161 = arith.mulf %151, %160 : vector<8x32xf32>
    %162 = vector.broadcast %144 : vector<1x32xf32> to vector<8x32xf32>
    %163 = arith.mulf %161, %162 : vector<8x32xf32>
    %164 = vector.broadcast %145 : vector<1x32xf32> to vector<8x32xf32>
    %165 = arith.addf %163, %164 : vector<8x32xf32>
    %cst_67 = arith.constant dense<0.000000e+00> : vector<8x64xf32>
    %166 = tpu.matmul %165, %16, %cst_67 {dimension_numbers = #tpu.dot_dimension_numbers<[1], [0], [0], [1], [0, 0, 1, 1], [], []>} : vector<8x32xf32>, vector<32x64xf32>, vector<8x64xf32> -> vector<8x64xf32>
    %167 = vector.broadcast %18 : vector<1x64xf32> to vector<8x64xf32>
    %168 = arith.addf %166, %167 : vector<8x64xf32>
    %cst_68 = arith.constant 5.000000e-01 : f32
    %169 = vector.broadcast %cst_68 : f32 to vector<8x64xf32>
    %170 = arith.mulf %169, %168 : vector<8x64xf32>
    %cst_69 = arith.constant 4.471500e-02 : f32
    %171 = vector.broadcast %cst_69 : f32 to vector<8x64xf32>
    %172 = arith.mulf %171, %168 : vector<8x64xf32>
    %173 = arith.mulf %172, %168 : vector<8x64xf32>
    %174 = arith.mulf %173, %168 : vector<8x64xf32>
    %175 = arith.addf %168, %174 : vector<8x64xf32>
    %cst_70 = arith.constant 0.797884583 : f32
    %176 = vector.broadcast %cst_70 : f32 to vector<8x64xf32>
    %177 = arith.mulf %176, %175 : vector<8x64xf32>
    %178 = math.tanh %177 : vector<8x64xf32>
    %cst_71 = arith.constant 1.000000e+00 : f32
    %179 = vector.broadcast %cst_71 : f32 to vector<8x64xf32>
    %180 = arith.addf %179, %178 : vector<8x64xf32>
    %181 = arith.mulf %170, %180 : vector<8x64xf32>
    %cst_72 = arith.constant dense<0.000000e+00> : vector<8x32xf32>
    %182 = tpu.matmul %181, %20, %cst_72 {dimension_numbers = #tpu.dot_dimension_numbers<[1], [0], [0], [1], [0, 0, 1, 1], [], []>} : vector<8x64xf32>, vector<64x32xf32>, vector<8x32xf32> -> vector<8x32xf32>
    %183 = vector.broadcast %22 : vector<1x32xf32> to vector<8x32xf32>
    %184 = arith.addf %182, %183 : vector<8x32xf32>
    %185 = arith.addf %184, %165 : vector<8x32xf32>
    %186 = vector.extract_strided_slice %24 {offsets = [0, 0], sizes = [1, 32], strides = [1, 1]} : vector<2x32xf32> to vector<1x32xf32>
    %187 = vector.extract_strided_slice %24 {offsets = [1, 0], sizes = [1, 32], strides = [1, 1]} : vector<2x32xf32> to vector<1x32xf32>
    %cst_73 = arith.constant dense<0.000000e+00> : vector<8xf32>
    %188 = vector.multi_reduction <add>, %185, %cst_73 [1] : vector<8x32xf32> to vector<8xf32>
    %189 = vector.shape_cast %188 : vector<8xf32> to vector<8x1xf32>
    %cst_74 = arith.constant 3.200000e+01 : f32
    %190 = vector.broadcast %cst_74 : f32 to vector<8x1xf32>
    %191 = arith.divf %189, %190 : vector<8x1xf32>
    %192 = vector.broadcast %191 : vector<8x1xf32> to vector<8x32xf32>
    %193 = arith.subf %185, %192 : vector<8x32xf32>
    %194 = arith.mulf %193, %193 : vector<8x32xf32>
    %cst_75 = arith.constant dense<0.000000e+00> : vector<8xf32>
    %195 = vector.multi_reduction <add>, %194, %cst_75 [1] : vector<8x32xf32> to vector<8xf32>
    %196 = vector.shape_cast %195 : vector<8xf32> to vector<8x1xf32>
    %cst_76 = arith.constant 3.200000e+01 : f32
    %197 = vector.broadcast %cst_76 : f32 to vector<8x1xf32>
    %198 = arith.divf %196, %197 : vector<8x1xf32>
    %cst_77 = arith.constant 9.99999996E-13 : f32
    %199 = vector.broadcast %cst_77 : f32 to vector<8x1xf32>
    %200 = arith.addf %198, %199 : vector<8x1xf32>
    %201 = math.rsqrt %200 : vector<8x1xf32>
    %202 = vector.broadcast %201 : vector<8x1xf32> to vector<8x32xf32>
    %203 = arith.mulf %193, %202 : vector<8x32xf32>
    %204 = vector.broadcast %186 : vector<1x32xf32> to vector<8x32xf32>
    %205 = arith.mulf %203, %204 : vector<8x32xf32>
    %206 = vector.broadcast %187 : vector<1x32xf32> to vector<8x32xf32>
    %207 = arith.addf %205, %206 : vector<8x32xf32>
    %208 = vector.shape_cast %207 : vector<8x32xf32> to vector<1x8x32xf32>
    %c0_78 = arith.constant 0 : index
    %c0_79 = arith.constant 0 : index
    %c0_80 = arith.constant 0 : index
    %209 = vector.load %arg17[%c0_78, %c0_79, %c0_80] : memref<1x8x32xf32, #tpu.memory_space<vmem>>, vector<1x8x32xf32>
    tpu.vector_store %arg17[%c0_78, %c0_79, %c0_80], %208 {strides = array<i32>} : memref<1x8x32xf32, #tpu.memory_space<vmem>>, vector<1x8x32xf32>,
    return
  }
  func.func @transform_0(%arg0: i32, %arg1: i32) -> (i32, i32, i32) {
    %c0_i32 = arith.constant 0 : i32
    %c0_i32_0 = arith.constant 0 : i32
    %c0_i32_1 = arith.constant 0 : i32
    return %arg0, %c0_i32, %c0_i32_0 : i32, i32, i32
  }
  func.func @transform_1(%arg0: i32, %arg1: i32) -> (i32, i32, i32) {
    %c0_i32 = arith.constant 0 : i32
    %c0_i32_0 = arith.constant 0 : i32
    %c0_i32_1 = arith.constant 0 : i32
    return %arg0, %c0_i32, %c0_i32_0 : i32, i32, i32
  }
  func.func @transform_2(%arg0: i32, %arg1: i32) -> (i32, i32) {
    %c0_i32 = arith.constant 0 : i32
    %c0_i32_0 = arith.constant 0 : i32
    %c0_i32_1 = arith.constant 0 : i32
    return %c0_i32, %c0_i32_0 : i32, i32
  }
  func.func @transform_3(%arg0: i32, %arg1: i32) -> (i32, i32) {
    %c0_i32 = arith.constant 0 : i32
    %c0_i32_0 = arith.constant 0 : i32
    %c0_i32_1 = arith.constant 0 : i32
    return %c0_i32, %c0_i32_0 : i32, i32
  }
  func.func @transform_4(%arg0: i32, %arg1: i32) -> (i32, i32) {
    %c0_i32 = arith.constant 0 : i32
    %c0_i32_0 = arith.constant 0 : i32
    %c0_i32_1 = arith.constant 0 : i32
    return %c0_i32, %c0_i32_0 : i32, i32
  }
  func.func @transform_5(%arg0: i32, %arg1: i32) -> (i32, i32, i32) {
    %c0_i32 = arith.constant 0 : i32
    %c0_i32_0 = arith.constant 0 : i32
    %c0_i32_1 = arith.constant 0 : i32
    return %arg1, %c0_i32, %c0_i32_0 : i32, i32, i32
  }
  func.func @transform_6(%arg0: i32, %arg1: i32) -> (i32, i32, i32) {
    %c0_i32 = arith.constant 0 : i32
    %c0_i32_0 = arith.constant 0 : i32
    %c0_i32_1 = arith.constant 0 : i32
    return %arg1, %c0_i32, %c0_i32_0 : i32, i32, i32
  }
  func.func @transform_7(%arg0: i32, %arg1: i32) -> (i32, i32, i32) {
    %c0_i32 = arith.constant 0 : i32
    %c0_i32_0 = arith.constant 0 : i32
    %c0_i32_1 = arith.constant 0 : i32
    return %arg1, %c0_i32, %c0_i32_0 : i32, i32, i32
  }
  func.func @transform_8(%arg0: i32, %arg1: i32) -> (i32, i32, i32) {
    %c0_i32 = arith.constant 0 : i32
    %c0_i32_0 = arith.constant 0 : i32
    %c0_i32_1 = arith.constant 0 : i32
    return %arg1, %c0_i32, %c0_i32_0 : i32, i32, i32
  }
  func.func @transform_9(%arg0: i32, %arg1: i32) -> (i32, i32, i32) {
    %c0_i32 = arith.constant 0 : i32
    %c0_i32_0 = arith.constant 0 : i32
    %c0_i32_1 = arith.constant 0 : i32
    return %arg1, %c0_i32, %c0_i32_0 : i32, i32, i32
  }
  func.func @transform_10(%arg0: i32, %arg1: i32) -> (i32, i32, i32) {
    %c0_i32 = arith.constant 0 : i32
    %c0_i32_0 = arith.constant 0 : i32
    %c0_i32_1 = arith.constant 0 : i32
    return %arg1, %c0_i32, %c0_i32_0 : i32, i32, i32
  }
  func.func @transform_11(%arg0: i32, %arg1: i32) -> (i32, i32, i32) {
    %c0_i32 = arith.constant 0 : i32
    %c0_i32_0 = arith.constant 0 : i32
    %c0_i32_1 = arith.constant 0 : i32
    return %arg1, %c0_i32, %c0_i32_0 : i32, i32, i32
  }
  func.func @transform_12(%arg0: i32, %arg1: i32) -> (i32, i32, i32) {
    %c0_i32 = arith.constant 0 : i32
    %c0_i32_0 = arith.constant 0 : i32
    %c0_i32_1 = arith.constant 0 : i32
    return %arg1, %c0_i32, %c0_i32_0 : i32, i32, i32
  }
  func.func @transform_13(%arg0: i32, %arg1: i32) -> (i32, i32, i32) {
    %c0_i32 = arith.constant 0 : i32
    %c0_i32_0 = arith.constant 0 : i32
    %c0_i32_1 = arith.constant 0 : i32
    return %arg1, %c0_i32, %c0_i32_0 : i32, i32, i32
  }
  func.func @transform_14(%arg0: i32, %arg1: i32) -> (i32, i32, i32) {
    %c0_i32 = arith.constant 0 : i32
    %c0_i32_0 = arith.constant 0 : i32
    %c0_i32_1 = arith.constant 0 : i32
    return %arg1, %c0_i32, %c0_i32_0 : i32, i32, i32
  }
  func.func @transform_15(%arg0: i32, %arg1: i32) -> (i32, i32, i32) {
    %c0_i32 = arith.constant 0 : i32
    %c0_i32_0 = arith.constant 0 : i32
    %c0_i32_1 = arith.constant 0 : i32
    return %arg0, %c0_i32, %c0_i32_0 : i32, i32, i32
  }
}

module attributes {stable_mosaic.version = 11 : i64} {
  func.func @_embed_ln_kernel(%arg0: i32, %arg1: memref<4x8x32xf32, #tpu.memory_space<vmem>>, %arg2: memref<8x32xf32, #tpu.memory_space<vmem>>, %arg3: memref<1x32xf32, #tpu.memory_space<vmem>>, %arg4: memref<2x32xf32, #tpu.memory_space<vmem>>, %arg5: memref<4x8x32xf32, #tpu.memory_space<vmem>>) attributes {dimension_semantics = [#tpu.dimension_semantics<arbitrary>], iteration_bounds = array<i64: 1>, scalar_prefetch = 0 : i64, scratch_operands = 0 : i64, tpu.core_type = #tpu.core_type<tc>, window_params = [{pipeline_mode = #tpu.pipeline_mode<synchronous>, transform_indices = @transform_0, window_bounds = array<i64: 4, 8, 32>}, {pipeline_mode = #tpu.pipeline_mode<synchronous>, transform_indices = @transform_1, window_bounds = array<i64: 8, 32>}, {pipeline_mode = #tpu.pipeline_mode<synchronous>, transform_indices = @transform_2, window_bounds = array<i64: 1, 32>}, {pipeline_mode = #tpu.pipeline_mode<synchronous>, transform_indices = @transform_3, window_bounds = array<i64: 2, 32>}, {pipeline_mode = #tpu.pipeline_mode<synchronous>, transform_indices = @transform_4, window_bounds = array<i64: 4, 8, 32>}]} {
    %c0 = arith.constant 0 : index
    %c0_0 = arith.constant 0 : index
    %c0_1 = arith.constant 0 : index
    %0 = vector.load %arg1[%c0, %c0_0, %c0_1] : memref<4x8x32xf32, #tpu.memory_space<vmem>>, vector<4x8x32xf32>
    %c0_2 = arith.constant 0 : index
    %c0_3 = arith.constant 0 : index
    %1 = vector.load %arg2[%c0_2, %c0_3] : memref<8x32xf32, #tpu.memory_space<vmem>>, vector<8x32xf32>
    %2 = vector.shape_cast %1 : vector<8x32xf32> to vector<1x8x32xf32>
    %3 = vector.broadcast %2 : vector<1x8x32xf32> to vector<4x8x32xf32>
    %4 = arith.addf %0, %3 : vector<4x8x32xf32>
    %c0_4 = arith.constant 0 : index
    %c0_5 = arith.constant 0 : index
    %5 = vector.load %arg3[%c0_4, %c0_5] : memref<1x32xf32, #tpu.memory_space<vmem>>, vector<1x32xf32>
    %6 = vector.shape_cast %5 : vector<1x32xf32> to vector<1x1x32xf32>
    %7 = vector.broadcast %6 : vector<1x1x32xf32> to vector<4x8x32xf32>
    %8 = arith.addf %4, %7 : vector<4x8x32xf32>
    %c0_6 = arith.constant 0 : index
    %c0_7 = arith.constant 0 : index
    %9 = vector.load %arg4[%c0_6, %c0_7] : memref<2x32xf32, #tpu.memory_space<vmem>>, vector<1x32xf32>
    %c1 = arith.constant 1 : index
    %c0_8 = arith.constant 0 : index
    %10 = vector.load %arg4[%c1, %c0_8] : memref<2x32xf32, #tpu.memory_space<vmem>>, vector<1x32xf32>
    %cst = arith.constant dense<0.000000e+00> : vector<4x8xf32>
    %11 = vector.multi_reduction <add>, %8, %cst [2] : vector<4x8x32xf32> to vector<4x8xf32>
    %12 = vector.shape_cast %11 : vector<4x8xf32> to vector<4x8x1xf32>
    %cst_9 = arith.constant 3.200000e+01 : f32
    %13 = vector.broadcast %cst_9 : f32 to vector<4x8x1xf32>
    %14 = arith.divf %12, %13 : vector<4x8x1xf32>
    %15 = vector.broadcast %14 : vector<4x8x1xf32> to vector<4x8x32xf32>
    %16 = arith.subf %8, %15 : vector<4x8x32xf32>
    %17 = arith.mulf %16, %16 : vector<4x8x32xf32>
    %cst_10 = arith.constant dense<0.000000e+00> : vector<4x8xf32>
    %18 = vector.multi_reduction <add>, %17, %cst_10 [2] : vector<4x8x32xf32> to vector<4x8xf32>
    %19 = vector.shape_cast %18 : vector<4x8xf32> to vector<4x8x1xf32>
    %cst_11 = arith.constant 3.200000e+01 : f32
    %20 = vector.broadcast %cst_11 : f32 to vector<4x8x1xf32>
    %21 = arith.divf %19, %20 : vector<4x8x1xf32>
    %cst_12 = arith.constant 9.99999996E-13 : f32
    %22 = vector.broadcast %cst_12 : f32 to vector<4x8x1xf32>
    %23 = arith.addf %21, %22 : vector<4x8x1xf32>
    %24 = math.rsqrt %23 : vector<4x8x1xf32>
    %25 = vector.broadcast %24 : vector<4x8x1xf32> to vector<4x8x32xf32>
    %26 = arith.mulf %16, %25 : vector<4x8x32xf32>
    %27 = vector.shape_cast %9 : vector<1x32xf32> to vector<1x1x32xf32>
    %28 = vector.broadcast %27 : vector<1x1x32xf32> to vector<4x8x32xf32>
    %29 = arith.mulf %26, %28 : vector<4x8x32xf32>
    %30 = vector.shape_cast %10 : vector<1x32xf32> to vector<1x1x32xf32>
    %31 = vector.broadcast %30 : vector<1x1x32xf32> to vector<4x8x32xf32>
    %32 = arith.addf %29, %31 : vector<4x8x32xf32>
    %c0_13 = arith.constant 0 : index
    %c0_14 = arith.constant 0 : index
    %c0_15 = arith.constant 0 : index
    %33 = vector.load %arg5[%c0_13, %c0_14, %c0_15] : memref<4x8x32xf32, #tpu.memory_space<vmem>>, vector<4x8x32xf32>
    tpu.vector_store %arg5[%c0_13, %c0_14, %c0_15], %32 {strides = array<i32>} : memref<4x8x32xf32, #tpu.memory_space<vmem>>, vector<4x8x32xf32>,
    return
  }
  func.func @transform_0(%arg0: i32) -> (i32, i32, i32) {
    %c0_i32 = arith.constant 0 : i32
    %c0_i32_0 = arith.constant 0 : i32
    %c0_i32_1 = arith.constant 0 : i32
    %c0_i32_2 = arith.constant 0 : i32
    return %c0_i32, %c0_i32_0, %c0_i32_1 : i32, i32, i32
  }
  func.func @transform_1(%arg0: i32) -> (i32, i32) {
    %c0_i32 = arith.constant 0 : i32
    %c0_i32_0 = arith.constant 0 : i32
    %c0_i32_1 = arith.constant 0 : i32
    return %c0_i32, %c0_i32_0 : i32, i32
  }
  func.func @transform_2(%arg0: i32) -> (i32, i32) {
    %c0_i32 = arith.constant 0 : i32
    %c0_i32_0 = arith.constant 0 : i32
    %c0_i32_1 = arith.constant 0 : i32
    return %c0_i32, %c0_i32_0 : i32, i32
  }
  func.func @transform_3(%arg0: i32) -> (i32, i32) {
    %c0_i32 = arith.constant 0 : i32
    %c0_i32_0 = arith.constant 0 : i32
    %c0_i32_1 = arith.constant 0 : i32
    return %c0_i32, %c0_i32_0 : i32, i32
  }
  func.func @transform_4(%arg0: i32) -> (i32, i32, i32) {
    %c0_i32 = arith.constant 0 : i32
    %c0_i32_0 = arith.constant 0 : i32
    %c0_i32_1 = arith.constant 0 : i32
    %c0_i32_2 = arith.constant 0 : i32
    return %c0_i32, %c0_i32_0, %c0_i32_1 : i32, i32, i32
  }
}

module attributes {stable_mosaic.version = 11 : i64} {
  func.func @_decoder_layer_kernel(%arg0: i32, %arg1: memref<1x8x32xf32, #tpu.memory_space<vmem>>, %arg2: memref<1x8x32xf32, #tpu.memory_space<vmem>>, %arg3: memref<1x1x8xf32, #tpu.memory_space<vmem>>, %arg4: memref<32x96xf32, #tpu.memory_space<vmem>>, %arg5: memref<1x96xf32, #tpu.memory_space<vmem>>, %arg6: memref<32x32xf32, #tpu.memory_space<vmem>>, %arg7: memref<1x32xf32, #tpu.memory_space<vmem>>, %arg8: memref<2x32xf32, #tpu.memory_space<vmem>>, %arg9: memref<32x64xf32, #tpu.memory_space<vmem>>, %arg10: memref<1x64xf32, #tpu.memory_space<vmem>>, %arg11: memref<64x32xf32, #tpu.memory_space<vmem>>, %arg12: memref<1x32xf32, #tpu.memory_space<vmem>>, %arg13: memref<2x32xf32, #tpu.memory_space<vmem>>, %arg14: memref<1x8x32xf32, #tpu.memory_space<vmem>>) attributes {dimension_semantics = [#tpu.dimension_semantics<parallel>], iteration_bounds = array<i64: 2>, scalar_prefetch = 0 : i64, scratch_operands = 0 : i64, tpu.core_type = #tpu.core_type<tc>, window_params = [{transform_indices = @transform_0, window_bounds = array<i64: 1, 8, 32>}, {transform_indices = @transform_1, window_bounds = array<i64: 1, 8, 32>}, {transform_indices = @transform_2, window_bounds = array<i64: 1, 1, 8>}, {pipeline_mode = #tpu.pipeline_mode<synchronous>, transform_indices = @transform_3, window_bounds = array<i64: 32, 96>}, {pipeline_mode = #tpu.pipeline_mode<synchronous>, transform_indices = @transform_4, window_bounds = array<i64: 1, 96>}, {pipeline_mode = #tpu.pipeline_mode<synchronous>, transform_indices = @transform_5, window_bounds = array<i64: 32, 32>}, {pipeline_mode = #tpu.pipeline_mode<synchronous>, transform_indices = @transform_6, window_bounds = array<i64: 1, 32>}, {pipeline_mode = #tpu.pipeline_mode<synchronous>, transform_indices = @transform_7, window_bounds = array<i64: 2, 32>}, {pipeline_mode = #tpu.pipeline_mode<synchronous>, transform_indices = @transform_8, window_bounds = array<i64: 32, 64>}, {pipeline_mode = #tpu.pipeline_mode<synchronous>, transform_indices = @transform_9, window_bounds = array<i64: 1, 64>}, {pipeline_mode = #tpu.pipeline_mode<synchronous>, transform_indices = @transform_10, window_bounds = array<i64: 64, 32>}, {pipeline_mode = #tpu.pipeline_mode<synchronous>, transform_indices = @transform_11, window_bounds = array<i64: 1, 32>}, {pipeline_mode = #tpu.pipeline_mode<synchronous>, transform_indices = @transform_12, window_bounds = array<i64: 2, 32>}, {transform_indices = @transform_13, window_bounds = array<i64: 1, 8, 32>}]} {
    %c0 = arith.constant 0 : index
    %c0_0 = arith.constant 0 : index
    %c0_1 = arith.constant 0 : index
    %0 = vector.load %arg1[%c0, %c0_0, %c0_1] : memref<1x8x32xf32, #tpu.memory_space<vmem>>, vector<1x8x32xf32>
    %c0_2 = arith.constant 0 : index
    %c0_3 = arith.constant 0 : index
    %c0_4 = arith.constant 0 : index
    %1 = vector.load %arg2[%c0_2, %c0_3, %c0_4] : memref<1x8x32xf32, #tpu.memory_space<vmem>>, vector<1x8x32xf32>
    %c0_5 = arith.constant 0 : index
    %c0_6 = arith.constant 0 : index
    %c0_7 = arith.constant 0 : index
    %2 = vector.load %arg3[%c0_5, %c0_6, %c0_7] : memref<1x1x8xf32, #tpu.memory_space<vmem>>, vector<1x1x8xf32>
    %c0_8 = arith.constant 0 : index
    %c0_9 = arith.constant 0 : index
    %3 = vector.load %arg4[%c0_8, %c0_9] : memref<32x96xf32, #tpu.memory_space<vmem>>, vector<32x96xf32>
    %c0_10 = arith.constant 0 : index
    %c0_11 = arith.constant 0 : index
    %4 = vector.load %arg5[%c0_10, %c0_11] : memref<1x96xf32, #tpu.memory_space<vmem>>, vector<1x96xf32>
    %c0_12 = arith.constant 0 : index
    %c0_13 = arith.constant 0 : index
    %5 = vector.load %arg6[%c0_12, %c0_13] : memref<32x32xf32, #tpu.memory_space<vmem>>, vector<32x32xf32>
    %c0_14 = arith.constant 0 : index
    %c0_15 = arith.constant 0 : index
    %6 = vector.load %arg7[%c0_14, %c0_15] : memref<1x32xf32, #tpu.memory_space<vmem>>, vector<1x32xf32>
    %c0_16 = arith.constant 0 : index
    %c0_17 = arith.constant 0 : index
    %7 = vector.load %arg8[%c0_16, %c0_17] : memref<2x32xf32, #tpu.memory_space<vmem>>, vector<2x32xf32>
    %c0_18 = arith.constant 0 : index
    %c0_19 = arith.constant 0 : index
    %8 = vector.load %arg9[%c0_18, %c0_19] : memref<32x64xf32, #tpu.memory_space<vmem>>, vector<32x64xf32>
    %c0_20 = arith.constant 0 : index
    %c0_21 = arith.constant 0 : index
    %9 = vector.load %arg10[%c0_20, %c0_21] : memref<1x64xf32, #tpu.memory_space<vmem>>, vector<1x64xf32>
    %c0_22 = arith.constant 0 : index
    %c0_23 = arith.constant 0 : index
    %10 = vector.load %arg11[%c0_22, %c0_23] : memref<64x32xf32, #tpu.memory_space<vmem>>, vector<64x32xf32>
    %c0_24 = arith.constant 0 : index
    %c0_25 = arith.constant 0 : index
    %11 = vector.load %arg12[%c0_24, %c0_25] : memref<1x32xf32, #tpu.memory_space<vmem>>, vector<1x32xf32>
    %c0_26 = arith.constant 0 : index
    %c0_27 = arith.constant 0 : index
    %12 = vector.load %arg13[%c0_26, %c0_27] : memref<2x32xf32, #tpu.memory_space<vmem>>, vector<2x32xf32>
    %13 = vector.shape_cast %0 : vector<1x8x32xf32> to vector<8x32xf32>
    %14 = vector.shape_cast %1 : vector<1x8x32xf32> to vector<8x32xf32>
    %cst = arith.constant dense<0.000000e+00> : vector<8x96xf32>
    %15 = tpu.matmul %13, %3, %cst {dimension_numbers = #tpu.dot_dimension_numbers<[1], [0], [0], [1], [0, 0, 1, 1], [], []>} : vector<8x32xf32>, vector<32x96xf32>, vector<8x96xf32> -> vector<8x96xf32>
    %16 = vector.broadcast %4 : vector<1x96xf32> to vector<8x96xf32>
    %17 = arith.addf %15, %16 : vector<8x96xf32>
    %cst_28 = arith.constant dense<0.000000e+00> : vector<8x96xf32>
    %18 = tpu.matmul %14, %3, %cst_28 {dimension_numbers = #tpu.dot_dimension_numbers<[1], [0], [0], [1], [0, 0, 1, 1], [], []>} : vector<8x32xf32>, vector<32x96xf32>, vector<8x96xf32> -> vector<8x96xf32>
    %19 = vector.broadcast %4 : vector<1x96xf32> to vector<8x96xf32>
    %20 = arith.addf %18, %19 : vector<8x96xf32>
    %21 = vector.extract_strided_slice %17 {offsets = [0, 0], sizes = [8, 32], strides = [1, 1]} : vector<8x96xf32> to vector<8x32xf32>
    %22 = vector.extract_strided_slice %20 {offsets = [0, 32], sizes = [8, 32], strides = [1, 1]} : vector<8x96xf32> to vector<8x32xf32>
    %23 = vector.extract_strided_slice %20 {offsets = [0, 64], sizes = [8, 32], strides = [1, 1]} : vector<8x96xf32> to vector<8x32xf32>
    %cst_29 = arith.constant 0.000000e+00 : f32
    %24 = vector.broadcast %cst_29 : f32 to vector<8x32xf32>
    %25 = vector.extract_strided_slice %21 {offsets = [0, 0], sizes = [8, 8], strides = [1, 1]} : vector<8x32xf32> to vector<8x8xf32>
    %26 = vector.shape_cast %25 : vector<8x8xf32> to vector<1x8x8xf32>
    %27 = vector.extract_strided_slice %22 {offsets = [0, 0], sizes = [8, 8], strides = [1, 1]} : vector<8x32xf32> to vector<8x8xf32>
    %28 = vector.shape_cast %27 : vector<8x8xf32> to vector<1x8x8xf32>
    %29 = vector.extract_strided_slice %23 {offsets = [0, 0], sizes = [8, 8], strides = [1, 1]} : vector<8x32xf32> to vector<8x8xf32>
    %30 = vector.shape_cast %29 : vector<8x8xf32> to vector<1x8x8xf32>
    "tpu.trace_start"() <{level = 10 : i32, message = "bqd,bkd->bqk"}> : () -> ()
    %cst_30 = arith.constant dense<0.000000e+00> : vector<1x8x8xf32>
    %31 = tpu.matmul %26, %28, %cst_30 {dimension_numbers = #tpu.dot_dimension_numbers<[2], [2], [1], [1], [0, 0, 0, 1, 1, 1], [0], [0]>} : vector<1x8x8xf32>, vector<1x8x8xf32>, vector<1x8x8xf32> -> vector<1x8x8xf32>
    "tpu.trace_stop"() : () -> ()
    %cst_31 = arith.constant 0.353553385 : f32
    %32 = vector.broadcast %cst_31 : f32 to vector<1x8x8xf32>
    %33 = arith.mulf %31, %32 : vector<1x8x8xf32>
    %34 = vector.broadcast %2 : vector<1x1x8xf32> to vector<1x8x8xf32>
    %35 = arith.addf %33, %34 : vector<1x8x8xf32>
    %cst_32 = arith.constant dense<0xFF800000> : vector<1x8xf32>
    %36 = vector.multi_reduction <maximumf>, %35, %cst_32 [2] : vector<1x8x8xf32> to vector<1x8xf32>
    %37 = vector.shape_cast %36 : vector<1x8xf32> to vector<1x8x1xf32>
    %38 = vector.broadcast %37 : vector<1x8x1xf32> to vector<1x8x8xf32>
    %39 = arith.subf %35, %38 : vector<1x8x8xf32>
    %40 = math.exp %39 : vector<1x8x8xf32>
    %cst_33 = arith.constant dense<0.000000e+00> : vector<1x8xf32>
    %41 = vector.multi_reduction <add>, %40, %cst_33 [2] : vector<1x8x8xf32> to vector<1x8xf32>
    %42 = vector.shape_cast %41 : vector<1x8xf32> to vector<1x8x1xf32>
    %43 = tpu.reciprocal %42 {approx = true} : vector<1x8x1xf32> -> vector<1x8x1xf32>
    %44 = vector.broadcast %43 : vector<1x8x1xf32> to vector<1x8x8xf32>
    %45 = arith.mulf %40, %44 : vector<1x8x8xf32>
    "tpu.trace_start"() <{level = 10 : i32, message = "bqk,bkd->bqd"}> : () -> ()
    %cst_34 = arith.constant dense<0.000000e+00> : vector<1x8x8xf32>
    %46 = tpu.matmul %45, %30, %cst_34 {dimension_numbers = #tpu.dot_dimension_numbers<[2], [1], [1], [2], [0, 0, 0, 1, 1, 2], [0], [0]>} : vector<1x8x8xf32>, vector<1x8x8xf32>, vector<1x8x8xf32> -> vector<1x8x8xf32>
    "tpu.trace_stop"() : () -> ()
    %47 = vector.shape_cast %46 : vector<1x8x8xf32> to vector<8x8xf32>
    %48 = vector.extract_strided_slice %5 {offsets = [0, 0], sizes = [8, 32], strides = [1, 1]} : vector<32x32xf32> to vector<8x32xf32>
    %cst_35 = arith.constant dense<0.000000e+00> : vector<8x32xf32>
    %49 = tpu.matmul %47, %48, %cst_35 {dimension_numbers = #tpu.dot_dimension_numbers<[1], [0], [0], [1], [0, 0, 1, 1], [], []>} : vector<8x8xf32>, vector<8x32xf32>, vector<8x32xf32> -> vector<8x32xf32>
    %50 = arith.addf %24, %49 : vector<8x32xf32>
    %51 = vector.extract_strided_slice %21 {offsets = [0, 8], sizes = [8, 8], strides = [1, 1]} : vector<8x32xf32> to vector<8x8xf32>
    %52 = vector.shape_cast %51 : vector<8x8xf32> to vector<1x8x8xf32>
    %53 = vector.extract_strided_slice %22 {offsets = [0, 8], sizes = [8, 8], strides = [1, 1]} : vector<8x32xf32> to vector<8x8xf32>
    %54 = vector.shape_cast %53 : vector<8x8xf32> to vector<1x8x8xf32>
    %55 = vector.extract_strided_slice %23 {offsets = [0, 8], sizes = [8, 8], strides = [1, 1]} : vector<8x32xf32> to vector<8x8xf32>
    %56 = vector.shape_cast %55 : vector<8x8xf32> to vector<1x8x8xf32>
    "tpu.trace_start"() <{level = 10 : i32, message = "bqd,bkd->bqk"}> : () -> ()
    %cst_36 = arith.constant dense<0.000000e+00> : vector<1x8x8xf32>
    %57 = tpu.matmul %52, %54, %cst_36 {dimension_numbers = #tpu.dot_dimension_numbers<[2], [2], [1], [1], [0, 0, 0, 1, 1, 1], [0], [0]>} : vector<1x8x8xf32>, vector<1x8x8xf32>, vector<1x8x8xf32> -> vector<1x8x8xf32>
    "tpu.trace_stop"() : () -> ()
    %cst_37 = arith.constant 0.353553385 : f32
    %58 = vector.broadcast %cst_37 : f32 to vector<1x8x8xf32>
    %59 = arith.mulf %57, %58 : vector<1x8x8xf32>
    %60 = vector.broadcast %2 : vector<1x1x8xf32> to vector<1x8x8xf32>
    %61 = arith.addf %59, %60 : vector<1x8x8xf32>
    %cst_38 = arith.constant dense<0xFF800000> : vector<1x8xf32>
    %62 = vector.multi_reduction <maximumf>, %61, %cst_38 [2] : vector<1x8x8xf32> to vector<1x8xf32>
    %63 = vector.shape_cast %62 : vector<1x8xf32> to vector<1x8x1xf32>
    %64 = vector.broadcast %63 : vector<1x8x1xf32> to vector<1x8x8xf32>
    %65 = arith.subf %61, %64 : vector<1x8x8xf32>
    %66 = math.exp %65 : vector<1x8x8xf32>
    %cst_39 = arith.constant dense<0.000000e+00> : vector<1x8xf32>
    %67 = vector.multi_reduction <add>, %66, %cst_39 [2] : vector<1x8x8xf32> to vector<1x8xf32>
    %68 = vector.shape_cast %67 : vector<1x8xf32> to vector<1x8x1xf32>
    %69 = tpu.reciprocal %68 {approx = true} : vector<1x8x1xf32> -> vector<1x8x1xf32>
    %70 = vector.broadcast %69 : vector<1x8x1xf32> to vector<1x8x8xf32>
    %71 = arith.mulf %66, %70 : vector<1x8x8xf32>
    "tpu.trace_start"() <{level = 10 : i32, message = "bqk,bkd->bqd"}> : () -> ()
    %cst_40 = arith.constant dense<0.000000e+00> : vector<1x8x8xf32>
    %72 = tpu.matmul %71, %56, %cst_40 {dimension_numbers = #tpu.dot_dimension_numbers<[2], [1], [1], [2], [0, 0, 0, 1, 1, 2], [0], [0]>} : vector<1x8x8xf32>, vector<1x8x8xf32>, vector<1x8x8xf32> -> vector<1x8x8xf32>
    "tpu.trace_stop"() : () -> ()
    %73 = vector.shape_cast %72 : vector<1x8x8xf32> to vector<8x8xf32>
    %74 = vector.extract_strided_slice %5 {offsets = [8, 0], sizes = [8, 32], strides = [1, 1]} : vector<32x32xf32> to vector<8x32xf32>
    %cst_41 = arith.constant dense<0.000000e+00> : vector<8x32xf32>
    %75 = tpu.matmul %73, %74, %cst_41 {dimension_numbers = #tpu.dot_dimension_numbers<[1], [0], [0], [1], [0, 0, 1, 1], [], []>} : vector<8x8xf32>, vector<8x32xf32>, vector<8x32xf32> -> vector<8x32xf32>
    %76 = arith.addf %50, %75 : vector<8x32xf32>
    %77 = vector.extract_strided_slice %21 {offsets = [0, 16], sizes = [8, 8], strides = [1, 1]} : vector<8x32xf32> to vector<8x8xf32>
    %78 = vector.shape_cast %77 : vector<8x8xf32> to vector<1x8x8xf32>
    %79 = vector.extract_strided_slice %22 {offsets = [0, 16], sizes = [8, 8], strides = [1, 1]} : vector<8x32xf32> to vector<8x8xf32>
    %80 = vector.shape_cast %79 : vector<8x8xf32> to vector<1x8x8xf32>
    %81 = vector.extract_strided_slice %23 {offsets = [0, 16], sizes = [8, 8], strides = [1, 1]} : vector<8x32xf32> to vector<8x8xf32>
    %82 = vector.shape_cast %81 : vector<8x8xf32> to vector<1x8x8xf32>
    "tpu.trace_start"() <{level = 10 : i32, message = "bqd,bkd->bqk"}> : () -> ()
    %cst_42 = arith.constant dense<0.000000e+00> : vector<1x8x8xf32>
    %83 = tpu.matmul %78, %80, %cst_42 {dimension_numbers = #tpu.dot_dimension_numbers<[2], [2], [1], [1], [0, 0, 0, 1, 1, 1], [0], [0]>} : vector<1x8x8xf32>, vector<1x8x8xf32>, vector<1x8x8xf32> -> vector<1x8x8xf32>
    "tpu.trace_stop"() : () -> ()
    %cst_43 = arith.constant 0.353553385 : f32
    %84 = vector.broadcast %cst_43 : f32 to vector<1x8x8xf32>
    %85 = arith.mulf %83, %84 : vector<1x8x8xf32>
    %86 = vector.broadcast %2 : vector<1x1x8xf32> to vector<1x8x8xf32>
    %87 = arith.addf %85, %86 : vector<1x8x8xf32>
    %cst_44 = arith.constant dense<0xFF800000> : vector<1x8xf32>
    %88 = vector.multi_reduction <maximumf>, %87, %cst_44 [2] : vector<1x8x8xf32> to vector<1x8xf32>
    %89 = vector.shape_cast %88 : vector<1x8xf32> to vector<1x8x1xf32>
    %90 = vector.broadcast %89 : vector<1x8x1xf32> to vector<1x8x8xf32>
    %91 = arith.subf %87, %90 : vector<1x8x8xf32>
    %92 = math.exp %91 : vector<1x8x8xf32>
    %cst_45 = arith.constant dense<0.000000e+00> : vector<1x8xf32>
    %93 = vector.multi_reduction <add>, %92, %cst_45 [2] : vector<1x8x8xf32> to vector<1x8xf32>
    %94 = vector.shape_cast %93 : vector<1x8xf32> to vector<1x8x1xf32>
    %95 = tpu.reciprocal %94 {approx = true} : vector<1x8x1xf32> -> vector<1x8x1xf32>
    %96 = vector.broadcast %95 : vector<1x8x1xf32> to vector<1x8x8xf32>
    %97 = arith.mulf %92, %96 : vector<1x8x8xf32>
    "tpu.trace_start"() <{level = 10 : i32, message = "bqk,bkd->bqd"}> : () -> ()
    %cst_46 = arith.constant dense<0.000000e+00> : vector<1x8x8xf32>
    %98 = tpu.matmul %97, %82, %cst_46 {dimension_numbers = #tpu.dot_dimension_numbers<[2], [1], [1], [2], [0, 0, 0, 1, 1, 2], [0], [0]>} : vector<1x8x8xf32>, vector<1x8x8xf32>, vector<1x8x8xf32> -> vector<1x8x8xf32>
    "tpu.trace_stop"() : () -> ()
    %99 = vector.shape_cast %98 : vector<1x8x8xf32> to vector<8x8xf32>
    %100 = vector.extract_strided_slice %5 {offsets = [16, 0], sizes = [8, 32], strides = [1, 1]} : vector<32x32xf32> to vector<8x32xf32>
    %cst_47 = arith.constant dense<0.000000e+00> : vector<8x32xf32>
    %101 = tpu.matmul %99, %100, %cst_47 {dimension_numbers = #tpu.dot_dimension_numbers<[1], [0], [0], [1], [0, 0, 1, 1], [], []>} : vector<8x8xf32>, vector<8x32xf32>, vector<8x32xf32> -> vector<8x32xf32>
    %102 = arith.addf %76, %101 : vector<8x32xf32>
    %103 = vector.extract_strided_slice %21 {offsets = [0, 24], sizes = [8, 8], strides = [1, 1]} : vector<8x32xf32> to vector<8x8xf32>
    %104 = vector.shape_cast %103 : vector<8x8xf32> to vector<1x8x8xf32>
    %105 = vector.extract_strided_slice %22 {offsets = [0, 24], sizes = [8, 8], strides = [1, 1]} : vector<8x32xf32> to vector<8x8xf32>
    %106 = vector.shape_cast %105 : vector<8x8xf32> to vector<1x8x8xf32>
    %107 = vector.extract_strided_slice %23 {offsets = [0, 24], sizes = [8, 8], strides = [1, 1]} : vector<8x32xf32> to vector<8x8xf32>
    %108 = vector.shape_cast %107 : vector<8x8xf32> to vector<1x8x8xf32>
    "tpu.trace_start"() <{level = 10 : i32, message = "bqd,bkd->bqk"}> : () -> ()
    %cst_48 = arith.constant dense<0.000000e+00> : vector<1x8x8xf32>
    %109 = tpu.matmul %104, %106, %cst_48 {dimension_numbers = #tpu.dot_dimension_numbers<[2], [2], [1], [1], [0, 0, 0, 1, 1, 1], [0], [0]>} : vector<1x8x8xf32>, vector<1x8x8xf32>, vector<1x8x8xf32> -> vector<1x8x8xf32>
    "tpu.trace_stop"() : () -> ()
    %cst_49 = arith.constant 0.353553385 : f32
    %110 = vector.broadcast %cst_49 : f32 to vector<1x8x8xf32>
    %111 = arith.mulf %109, %110 : vector<1x8x8xf32>
    %112 = vector.broadcast %2 : vector<1x1x8xf32> to vector<1x8x8xf32>
    %113 = arith.addf %111, %112 : vector<1x8x8xf32>
    %cst_50 = arith.constant dense<0xFF800000> : vector<1x8xf32>
    %114 = vector.multi_reduction <maximumf>, %113, %cst_50 [2] : vector<1x8x8xf32> to vector<1x8xf32>
    %115 = vector.shape_cast %114 : vector<1x8xf32> to vector<1x8x1xf32>
    %116 = vector.broadcast %115 : vector<1x8x1xf32> to vector<1x8x8xf32>
    %117 = arith.subf %113, %116 : vector<1x8x8xf32>
    %118 = math.exp %117 : vector<1x8x8xf32>
    %cst_51 = arith.constant dense<0.000000e+00> : vector<1x8xf32>
    %119 = vector.multi_reduction <add>, %118, %cst_51 [2] : vector<1x8x8xf32> to vector<1x8xf32>
    %120 = vector.shape_cast %119 : vector<1x8xf32> to vector<1x8x1xf32>
    %121 = tpu.reciprocal %120 {approx = true} : vector<1x8x1xf32> -> vector<1x8x1xf32>
    %122 = vector.broadcast %121 : vector<1x8x1xf32> to vector<1x8x8xf32>
    %123 = arith.mulf %118, %122 : vector<1x8x8xf32>
    "tpu.trace_start"() <{level = 10 : i32, message = "bqk,bkd->bqd"}> : () -> ()
    %cst_52 = arith.constant dense<0.000000e+00> : vector<1x8x8xf32>
    %124 = tpu.matmul %123, %108, %cst_52 {dimension_numbers = #tpu.dot_dimension_numbers<[2], [1], [1], [2], [0, 0, 0, 1, 1, 2], [0], [0]>} : vector<1x8x8xf32>, vector<1x8x8xf32>, vector<1x8x8xf32> -> vector<1x8x8xf32>
    "tpu.trace_stop"() : () -> ()
    %125 = vector.shape_cast %124 : vector<1x8x8xf32> to vector<8x8xf32>
    %126 = vector.extract_strided_slice %5 {offsets = [24, 0], sizes = [8, 32], strides = [1, 1]} : vector<32x32xf32> to vector<8x32xf32>
    %cst_53 = arith.constant dense<0.000000e+00> : vector<8x32xf32>
    %127 = tpu.matmul %125, %126, %cst_53 {dimension_numbers = #tpu.dot_dimension_numbers<[1], [0], [0], [1], [0, 0, 1, 1], [], []>} : vector<8x8xf32>, vector<8x32xf32>, vector<8x32xf32> -> vector<8x32xf32>
    %128 = arith.addf %102, %127 : vector<8x32xf32>
    %129 = vector.broadcast %6 : vector<1x32xf32> to vector<8x32xf32>
    %130 = arith.addf %128, %129 : vector<8x32xf32>
    %131 = arith.addf %130, %13 : vector<8x32xf32>
    %132 = vector.extract_strided_slice %7 {offsets = [0, 0], sizes = [1, 32], strides = [1, 1]} : vector<2x32xf32> to vector<1x32xf32>
    %133 = vector.extract_strided_slice %7 {offsets = [1, 0], sizes = [1, 32], strides = [1, 1]} : vector<2x32xf32> to vector<1x32xf32>
    %cst_54 = arith.constant dense<0.000000e+00> : vector<8xf32>
    %134 = vector.multi_reduction <add>, %131, %cst_54 [1] : vector<8x32xf32> to vector<8xf32>
    %135 = vector.shape_cast %134 : vector<8xf32> to vector<8x1xf32>
    %cst_55 = arith.constant 3.200000e+01 : f32
    %136 = vector.broadcast %cst_55 : f32 to vector<8x1xf32>
    %137 = arith.divf %135, %136 : vector<8x1xf32>
    %138 = vector.broadcast %137 : vector<8x1xf32> to vector<8x32xf32>
    %139 = arith.subf %131, %138 : vector<8x32xf32>
    %140 = arith.mulf %139, %139 : vector<8x32xf32>
    %cst_56 = arith.constant dense<0.000000e+00> : vector<8xf32>
    %141 = vector.multi_reduction <add>, %140, %cst_56 [1] : vector<8x32xf32> to vector<8xf32>
    %142 = vector.shape_cast %141 : vector<8xf32> to vector<8x1xf32>
    %cst_57 = arith.constant 3.200000e+01 : f32
    %143 = vector.broadcast %cst_57 : f32 to vector<8x1xf32>
    %144 = arith.divf %142, %143 : vector<8x1xf32>
    %cst_58 = arith.constant 9.99999996E-13 : f32
    %145 = vector.broadcast %cst_58 : f32 to vector<8x1xf32>
    %146 = arith.addf %144, %145 : vector<8x1xf32>
    %147 = math.rsqrt %146 : vector<8x1xf32>
    %148 = vector.broadcast %147 : vector<8x1xf32> to vector<8x32xf32>
    %149 = arith.mulf %139, %148 : vector<8x32xf32>
    %150 = vector.broadcast %132 : vector<1x32xf32> to vector<8x32xf32>
    %151 = arith.mulf %149, %150 : vector<8x32xf32>
    %152 = vector.broadcast %133 : vector<1x32xf32> to vector<8x32xf32>
    %153 = arith.addf %151, %152 : vector<8x32xf32>
    %cst_59 = arith.constant dense<0.000000e+00> : vector<8x64xf32>
    %154 = tpu.matmul %153, %8, %cst_59 {dimension_numbers = #tpu.dot_dimension_numbers<[1], [0], [0], [1], [0, 0, 1, 1], [], []>} : vector<8x32xf32>, vector<32x64xf32>, vector<8x64xf32> -> vector<8x64xf32>
    %155 = vector.broadcast %9 : vector<1x64xf32> to vector<8x64xf32>
    %156 = arith.addf %154, %155 : vector<8x64xf32>
    %cst_60 = arith.constant 5.000000e-01 : f32
    %157 = vector.broadcast %cst_60 : f32 to vector<8x64xf32>
    %158 = arith.mulf %157, %156 : vector<8x64xf32>
    %cst_61 = arith.constant 4.471500e-02 : f32
    %159 = vector.broadcast %cst_61 : f32 to vector<8x64xf32>
    %160 = arith.mulf %159, %156 : vector<8x64xf32>
    %161 = arith.mulf %160, %156 : vector<8x64xf32>
    %162 = arith.mulf %161, %156 : vector<8x64xf32>
    %163 = arith.addf %156, %162 : vector<8x64xf32>
    %cst_62 = arith.constant 0.797884583 : f32
    %164 = vector.broadcast %cst_62 : f32 to vector<8x64xf32>
    %165 = arith.mulf %164, %163 : vector<8x64xf32>
    %166 = math.tanh %165 : vector<8x64xf32>
    %cst_63 = arith.constant 1.000000e+00 : f32
    %167 = vector.broadcast %cst_63 : f32 to vector<8x64xf32>
    %168 = arith.addf %167, %166 : vector<8x64xf32>
    %169 = arith.mulf %158, %168 : vector<8x64xf32>
    %cst_64 = arith.constant dense<0.000000e+00> : vector<8x32xf32>
    %170 = tpu.matmul %169, %10, %cst_64 {dimension_numbers = #tpu.dot_dimension_numbers<[1], [0], [0], [1], [0, 0, 1, 1], [], []>} : vector<8x64xf32>, vector<64x32xf32>, vector<8x32xf32> -> vector<8x32xf32>
    %171 = vector.broadcast %11 : vector<1x32xf32> to vector<8x32xf32>
    %172 = arith.addf %170, %171 : vector<8x32xf32>
    %173 = arith.addf %172, %153 : vector<8x32xf32>
    %174 = vector.extract_strided_slice %12 {offsets = [0, 0], sizes = [1, 32], strides = [1, 1]} : vector<2x32xf32> to vector<1x32xf32>
    %175 = vector.extract_strided_slice %12 {offsets = [1, 0], sizes = [1, 32], strides = [1, 1]} : vector<2x32xf32> to vector<1x32xf32>
    %cst_65 = arith.constant dense<0.000000e+00> : vector<8xf32>
    %176 = vector.multi_reduction <add>, %173, %cst_65 [1] : vector<8x32xf32> to vector<8xf32>
    %177 = vector.shape_cast %176 : vector<8xf32> to vector<8x1xf32>
    %cst_66 = arith.constant 3.200000e+01 : f32
    %178 = vector.broadcast %cst_66 : f32 to vector<8x1xf32>
    %179 = arith.divf %177, %178 : vector<8x1xf32>
    %180 = vector.broadcast %179 : vector<8x1xf32> to vector<8x32xf32>
    %181 = arith.subf %173, %180 : vector<8x32xf32>
    %182 = arith.mulf %181, %181 : vector<8x32xf32>
    %cst_67 = arith.constant dense<0.000000e+00> : vector<8xf32>
    %183 = vector.multi_reduction <add>, %182, %cst_67 [1] : vector<8x32xf32> to vector<8xf32>
    %184 = vector.shape_cast %183 : vector<8xf32> to vector<8x1xf32>
    %cst_68 = arith.constant 3.200000e+01 : f32
    %185 = vector.broadcast %cst_68 : f32 to vector<8x1xf32>
    %186 = arith.divf %184, %185 : vector<8x1xf32>
    %cst_69 = arith.constant 9.99999996E-13 : f32
    %187 = vector.broadcast %cst_69 : f32 to vector<8x1xf32>
    %188 = arith.addf %186, %187 : vector<8x1xf32>
    %189 = math.rsqrt %188 : vector<8x1xf32>
    %190 = vector.broadcast %189 : vector<8x1xf32> to vector<8x32xf32>
    %191 = arith.mulf %181, %190 : vector<8x32xf32>
    %192 = vector.broadcast %174 : vector<1x32xf32> to vector<8x32xf32>
    %193 = arith.mulf %191, %192 : vector<8x32xf32>
    %194 = vector.broadcast %175 : vector<1x32xf32> to vector<8x32xf32>
    %195 = arith.addf %193, %194 : vector<8x32xf32>
    %196 = vector.shape_cast %195 : vector<8x32xf32> to vector<1x8x32xf32>
    %c0_70 = arith.constant 0 : index
    %c0_71 = arith.constant 0 : index
    %c0_72 = arith.constant 0 : index
    %197 = vector.load %arg14[%c0_70, %c0_71, %c0_72] : memref<1x8x32xf32, #tpu.memory_space<vmem>>, vector<1x8x32xf32>
    tpu.vector_store %arg14[%c0_70, %c0_71, %c0_72], %196 {strides = array<i32>} : memref<1x8x32xf32, #tpu.memory_space<vmem>>, vector<1x8x32xf32>,
    return
  }
  func.func @transform_0(%arg0: i32) -> (i32, i32, i32) {
    %c0_i32 = arith.constant 0 : i32
    %c0_i32_0 = arith.constant 0 : i32
    %c0_i32_1 = arith.constant 0 : i32
    return %arg0, %c0_i32, %c0_i32_0 : i32, i32, i32
  }
  func.func @transform_1(%arg0: i32) -> (i32, i32, i32) {
    %c0_i32 = arith.constant 0 : i32
    %c0_i32_0 = arith.constant 0 : i32
    %c0_i32_1 = arith.constant 0 : i32
    return %arg0, %c0_i32, %c0_i32_0 : i32, i32, i32
  }
  func.func @transform_2(%arg0: i32) -> (i32, i32, i32) {
    %c0_i32 = arith.constant 0 : i32
    %c0_i32_0 = arith.constant 0 : i32
    %c0_i32_1 = arith.constant 0 : i32
    return %arg0, %c0_i32, %c0_i32_0 : i32, i32, i32
  }
  func.func @transform_3(%arg0: i32) -> (i32, i32) {
    %c0_i32 = arith.constant 0 : i32
    %c0_i32_0 = arith.constant 0 : i32
    %c0_i32_1 = arith.constant 0 : i32
    return %c0_i32, %c0_i32_0 : i32, i32
  }
  func.func @transform_4(%arg0: i32) -> (i32, i32) {
    %c0_i32 = arith.constant 0 : i32
    %c0_i32_0 = arith.constant 0 : i32
    %c0_i32_1 = arith.constant 0 : i32
    return %c0_i32, %c0_i32_0 : i32, i32
  }
  func.func @transform_5(%arg0: i32) -> (i32, i32) {
    %c0_i32 = arith.constant 0 : i32
    %c0_i32_0 = arith.constant 0 : i32
    %c0_i32_1 = arith.constant 0 : i32
    return %c0_i32, %c0_i32_0 : i32, i32
  }
  func.func @transform_6(%arg0: i32) -> (i32, i32) {
    %c0_i32 = arith.constant 0 : i32
    %c0_i32_0 = arith.constant 0 : i32
    %c0_i32_1 = arith.constant 0 : i32
    return %c0_i32, %c0_i32_0 : i32, i32
  }
  func.func @transform_7(%arg0: i32) -> (i32, i32) {
    %c0_i32 = arith.constant 0 : i32
    %c0_i32_0 = arith.constant 0 : i32
    %c0_i32_1 = arith.constant 0 : i32
    return %c0_i32, %c0_i32_0 : i32, i32
  }
  func.func @transform_8(%arg0: i32) -> (i32, i32) {
    %c0_i32 = arith.constant 0 : i32
    %c0_i32_0 = arith.constant 0 : i32
    %c0_i32_1 = arith.constant 0 : i32
    return %c0_i32, %c0_i32_0 : i32, i32
  }
  func.func @transform_9(%arg0: i32) -> (i32, i32) {
    %c0_i32 = arith.constant 0 : i32
    %c0_i32_0 = arith.constant 0 : i32
    %c0_i32_1 = arith.constant 0 : i32
    return %c0_i32, %c0_i32_0 : i32, i32
  }
  func.func @transform_10(%arg0: i32) -> (i32, i32) {
    %c0_i32 = arith.constant 0 : i32
    %c0_i32_0 = arith.constant 0 : i32
    %c0_i32_1 = arith.constant 0 : i32
    return %c0_i32, %c0_i32_0 : i32, i32
  }
  func.func @transform_11(%arg0: i32) -> (i32, i32) {
    %c0_i32 = arith.constant 0 : i32
    %c0_i32_0 = arith.constant 0 : i32
    %c0_i32_1 = arith.constant 0 : i32
    return %c0_i32, %c0_i32_0 : i32, i32
  }
  func.func @transform_12(%arg0: i32) -> (i32, i32) {
    %c0_i32 = arith.constant 0 : i32
    %c0_i32_0 = arith.constant 0 : i32
    %c0_i32_1 = arith.constant 0 : i32
    return %c0_i32, %c0_i32_0 : i32, i32
  }
  func.func @transform_13(%arg0: i32) -> (i32, i32, i32) {
    %c0_i32 = arith.constant 0 : i32
    %c0_i32_0 = arith.constant 0 : i32
    %c0_i32_1 = arith.constant 0 : i32
    return %arg0, %c0_i32, %c0_i32_0 : i32, i32, i32
  }
}

module attributes {stable_mosaic.version = 11 : i64} {
  func.func @_mlm_ce_kernel(%arg0: i32, %arg1: memref<2x16x32xf32, #tpu.memory_space<vmem>>, %arg2: memref<2x16x1xi32, #tpu.memory_space<vmem>>, %arg3: memref<32x32xf32, #tpu.memory_space<vmem>>, %arg4: memref<1x32xf32, #tpu.memory_space<vmem>>, %arg5: memref<2x32xf32, #tpu.memory_space<vmem>>, %arg6: memref<128x32xf32, #tpu.memory_space<vmem>>, %arg7: memref<1x128xf32, #tpu.memory_space<vmem>>, %arg8: memref<2x1xf32, #tpu.memory_space<vmem>>, %arg9: memref<2x1xf32, #tpu.memory_space<vmem>>) attributes {dimension_semantics = [#tpu.dimension_semantics<arbitrary>], iteration_bounds = array<i64: 1>, scalar_prefetch = 0 : i64, scratch_operands = 0 : i64, tpu.core_type = #tpu.core_type<tc>, window_params = [{pipeline_mode = #tpu.pipeline_mode<synchronous>, transform_indices = @transform_0, window_bounds = array<i64: 2, 16, 32>}, {pipeline_mode = #tpu.pipeline_mode<synchronous>, transform_indices = @transform_1, window_bounds = array<i64: 2, 16, 1>}, {pipeline_mode = #tpu.pipeline_mode<synchronous>, transform_indices = @transform_2, window_bounds = array<i64: 32, 32>}, {pipeline_mode = #tpu.pipeline_mode<synchronous>, transform_indices = @transform_3, window_bounds = array<i64: 1, 32>}, {pipeline_mode = #tpu.pipeline_mode<synchronous>, transform_indices = @transform_4, window_bounds = array<i64: 2, 32>}, {pipeline_mode = #tpu.pipeline_mode<synchronous>, transform_indices = @transform_5, window_bounds = array<i64: 128, 32>}, {pipeline_mode = #tpu.pipeline_mode<synchronous>, transform_indices = @transform_6, window_bounds = array<i64: 1, 128>}, {pipeline_mode = #tpu.pipeline_mode<synchronous>, transform_indices = @transform_7, window_bounds = array<i64: 2, 1>}, {pipeline_mode = #tpu.pipeline_mode<synchronous>, transform_indices = @transform_8, window_bounds = array<i64: 2, 1>}]} {
    %c0 = arith.constant 0 : index
    %c0_0 = arith.constant 0 : index
    %0 = vector.load %arg3[%c0, %c0_0] : memref<32x32xf32, #tpu.memory_space<vmem>>, vector<32x32xf32>
    %c0_1 = arith.constant 0 : index
    %c0_2 = arith.constant 0 : index
    %1 = vector.load %arg4[%c0_1, %c0_2] : memref<1x32xf32, #tpu.memory_space<vmem>>, vector<1x32xf32>
    %c0_3 = arith.constant 0 : index
    %c0_4 = arith.constant 0 : index
    %2 = vector.load %arg5[%c0_3, %c0_4] : memref<2x32xf32, #tpu.memory_space<vmem>>, vector<1x32xf32>
    %c1 = arith.constant 1 : index
    %c0_5 = arith.constant 0 : index
    %3 = vector.load %arg5[%c1, %c0_5] : memref<2x32xf32, #tpu.memory_space<vmem>>, vector<1x32xf32>
    %c0_6 = arith.constant 0 : index
    %c0_7 = arith.constant 0 : index
    %4 = vector.load %arg6[%c0_6, %c0_7] : memref<128x32xf32, #tpu.memory_space<vmem>>, vector<128x32xf32>
    %5 = tpu.transpose %4, [1, 0] : vector<128x32xf32> -> vector<32x128xf32>
    %c0_8 = arith.constant 0 : index
    %c0_9 = arith.constant 0 : index
    %6 = vector.load %arg7[%c0_8, %c0_9] : memref<1x128xf32, #tpu.memory_space<vmem>>, vector<1x128xf32>
    %7 = tpu.iota {dimensions = array<i32: 1>} : vector<16x128xi32>
    %c0_10 = arith.constant 0 : index
    %c0_11 = arith.constant 0 : index
    %c0_12 = arith.constant 0 : index
    %8 = vector.load %arg1[%c0_10, %c0_11, %c0_12] : memref<2x16x32xf32, #tpu.memory_space<vmem>>, vector<1x16x32xf32>
    %9 = vector.shape_cast %8 : vector<1x16x32xf32> to vector<16x32xf32>
    %c0_13 = arith.constant 0 : index
    %c0_14 = arith.constant 0 : index
    %c0_15 = arith.constant 0 : index
    %10 = vector.load %arg2[%c0_13, %c0_14, %c0_15] : memref<2x16x1xi32, #tpu.memory_space<vmem>>, vector<1x16x1xi32>
    %11 = vector.shape_cast %10 : vector<1x16x1xi32> to vector<16x1xi32>
    %cst = arith.constant dense<0.000000e+00> : vector<16x32xf32>
    %12 = tpu.matmul %9, %0, %cst {dimension_numbers = #tpu.dot_dimension_numbers<[1], [0], [0], [1], [0, 0, 1, 1], [], []>} : vector<16x32xf32>, vector<32x32xf32>, vector<16x32xf32> -> vector<16x32xf32>
    %13 = vector.broadcast %1 : vector<1x32xf32> to vector<16x32xf32>
    %14 = arith.addf %12, %13 : vector<16x32xf32>
    %cst_16 = arith.constant 5.000000e-01 : f32
    %15 = vector.broadcast %cst_16 : f32 to vector<16x32xf32>
    %16 = arith.mulf %15, %14 : vector<16x32xf32>
    %cst_17 = arith.constant 4.471500e-02 : f32
    %17 = vector.broadcast %cst_17 : f32 to vector<16x32xf32>
    %18 = arith.mulf %17, %14 : vector<16x32xf32>
    %19 = arith.mulf %18, %14 : vector<16x32xf32>
    %20 = arith.mulf %19, %14 : vector<16x32xf32>
    %21 = arith.addf %14, %20 : vector<16x32xf32>
    %cst_18 = arith.constant 0.797884583 : f32
    %22 = vector.broadcast %cst_18 : f32 to vector<16x32xf32>
    %23 = arith.mulf %22, %21 : vector<16x32xf32>
    %24 = math.tanh %23 : vector<16x32xf32>
    %cst_19 = arith.constant 1.000000e+00 : f32
    %25 = vector.broadcast %cst_19 : f32 to vector<16x32xf32>
    %26 = arith.addf %25, %24 : vector<16x32xf32>
    %27 = arith.mulf %16, %26 : vector<16x32xf32>
    %cst_20 = arith.constant dense<0.000000e+00> : vector<16xf32>
    %28 = vector.multi_reduction <add>, %27, %cst_20 [1] : vector<16x32xf32> to vector<16xf32>
    %29 = vector.shape_cast %28 : vector<16xf32> to vector<16x1xf32>
    %cst_21 = arith.constant 3.200000e+01 : f32
    %30 = vector.broadcast %cst_21 : f32 to vector<16x1xf32>
    %31 = arith.divf %29, %30 : vector<16x1xf32>
    %32 = vector.broadcast %31 : vector<16x1xf32> to vector<16x32xf32>
    %33 = arith.subf %27, %32 : vector<16x32xf32>
    %34 = arith.mulf %33, %33 : vector<16x32xf32>
    %cst_22 = arith.constant dense<0.000000e+00> : vector<16xf32>
    %35 = vector.multi_reduction <add>, %34, %cst_22 [1] : vector<16x32xf32> to vector<16xf32>
    %36 = vector.shape_cast %35 : vector<16xf32> to vector<16x1xf32>
    %cst_23 = arith.constant 3.200000e+01 : f32
    %37 = vector.broadcast %cst_23 : f32 to vector<16x1xf32>
    %38 = arith.divf %36, %37 : vector<16x1xf32>
    %cst_24 = arith.constant 9.99999996E-13 : f32
    %39 = vector.broadcast %cst_24 : f32 to vector<16x1xf32>
    %40 = arith.addf %38, %39 : vector<16x1xf32>
    %41 = math.rsqrt %40 : vector<16x1xf32>
    %42 = vector.broadcast %41 : vector<16x1xf32> to vector<16x32xf32>
    %43 = arith.mulf %33, %42 : vector<16x32xf32>
    %44 = vector.broadcast %2 : vector<1x32xf32> to vector<16x32xf32>
    %45 = arith.mulf %43, %44 : vector<16x32xf32>
    %46 = vector.broadcast %3 : vector<1x32xf32> to vector<16x32xf32>
    %47 = arith.addf %45, %46 : vector<16x32xf32>
    %cst_25 = arith.constant dense<0.000000e+00> : vector<16x128xf32>
    %48 = tpu.matmul %47, %5, %cst_25 {dimension_numbers = #tpu.dot_dimension_numbers<[1], [0], [0], [1], [0, 0, 1, 1], [], []>} : vector<16x32xf32>, vector<32x128xf32>, vector<16x128xf32> -> vector<16x128xf32>
    %49 = vector.broadcast %6 : vector<1x128xf32> to vector<16x128xf32>
    %50 = arith.addf %48, %49 : vector<16x128xf32>
    %cst_26 = arith.constant dense<0xFF800000> : vector<16xf32>
    %51 = vector.multi_reduction <maximumf>, %50, %cst_26 [1] : vector<16x128xf32> to vector<16xf32>
    %52 = vector.shape_cast %51 : vector<16xf32> to vector<16x1xf32>
    %53 = vector.broadcast %52 : vector<16x1xf32> to vector<16x128xf32>
    %54 = arith.subf %50, %53 : vector<16x128xf32>
    %55 = math.exp %54 : vector<16x128xf32>
    %cst_27 = arith.constant dense<0.000000e+00> : vector<16xf32>
    %56 = vector.multi_reduction <add>, %55, %cst_27 [1] : vector<16x128xf32> to vector<16xf32>
    %57 = vector.shape_cast %56 : vector<16xf32> to vector<16x1xf32>
    %58 = math.log %57 : vector<16x1xf32>
    %59 = arith.addf %52, %58 : vector<16x1xf32>
    %60 = vector.broadcast %11 : vector<16x1xi32> to vector<16x128xi32>
    %61 = arith.cmpi eq, %7, %60 : vector<16x128xi32>
    %cst_28 = arith.constant 0.000000e+00 : f32
    %62 = vector.broadcast %cst_28 : f32 to vector<16x128xf32>
    %63 = arith.select %61, %50, %62 : vector<16x128xi1>, vector<16x128xf32>
    %cst_29 = arith.constant dense<0.000000e+00> : vector<16xf32>
    %64 = vector.multi_reduction <add>, %63, %cst_29 [1] : vector<16x128xf32> to vector<16xf32>
    %65 = vector.shape_cast %64 : vector<16xf32> to vector<16x1xf32>
    %c0_i32 = arith.constant 0 : i32
    %66 = vector.broadcast %c0_i32 : i32 to vector<16x1xi32>
    %67 = arith.cmpi sge, %11, %66 : vector<16x1xi32>
    %68 = arith.extui %67 : vector<16x1xi1> to vector<16x1xi32>
    %69 = arith.sitofp %68 : vector<16x1xi32> to vector<16x1xf32>
    %70 = arith.subf %59, %65 : vector<16x1xf32>
    %71 = arith.mulf %70, %69 : vector<16x1xf32>
    %cst_30 = arith.constant dense<0.000000e+00> : vector<1xf32>
    %72 = vector.multi_reduction <add>, %71, %cst_30 [0] : vector<16x1xf32> to vector<1xf32>
    %73 = vector.shape_cast %72 : vector<1xf32> to vector<1x1xf32>
    %c0_31 = arith.constant 0 : index
    %c0_32 = arith.constant 0 : index
    %74 = vector.load %arg8[%c0_31, %c0_32] : memref<2x1xf32, #tpu.memory_space<vmem>>, vector<1x1xf32>
    tpu.vector_store %arg8[%c0_31, %c0_32], %73 {strides = array<i32>} : memref<2x1xf32, #tpu.memory_space<vmem>>, vector<1x1xf32>,
    %cst_33 = arith.constant dense<0.000000e+00> : vector<1xf32>
    %75 = vector.multi_reduction <add>, %69, %cst_33 [0] : vector<16x1xf32> to vector<1xf32>
    %76 = vector.shape_cast %75 : vector<1xf32> to vector<1x1xf32>
    %c0_34 = arith.constant 0 : index
    %c0_35 = arith.constant 0 : index
    %77 = vector.load %arg9[%c0_34, %c0_35] : memref<2x1xf32, #tpu.memory_space<vmem>>, vector<1x1xf32>
    tpu.vector_store %arg9[%c0_34, %c0_35], %76 {strides = array<i32>} : memref<2x1xf32, #tpu.memory_space<vmem>>, vector<1x1xf32>,
    %c1_36 = arith.constant 1 : index
    %c0_37 = arith.constant 0 : index
    %c0_38 = arith.constant 0 : index
    %78 = vector.load %arg1[%c1_36, %c0_37, %c0_38] : memref<2x16x32xf32, #tpu.memory_space<vmem>>, vector<1x16x32xf32>
    %79 = vector.shape_cast %78 : vector<1x16x32xf32> to vector<16x32xf32>
    %c1_39 = arith.constant 1 : index
    %c0_40 = arith.constant 0 : index
    %c0_41 = arith.constant 0 : index
    %80 = vector.load %arg2[%c1_39, %c0_40, %c0_41] : memref<2x16x1xi32, #tpu.memory_space<vmem>>, vector<1x16x1xi32>
    %81 = vector.shape_cast %80 : vector<1x16x1xi32> to vector<16x1xi32>
    %cst_42 = arith.constant dense<0.000000e+00> : vector<16x32xf32>
    %82 = tpu.matmul %79, %0, %cst_42 {dimension_numbers = #tpu.dot_dimension_numbers<[1], [0], [0], [1], [0, 0, 1, 1], [], []>} : vector<16x32xf32>, vector<32x32xf32>, vector<16x32xf32> -> vector<16x32xf32>
    %83 = vector.broadcast %1 : vector<1x32xf32> to vector<16x32xf32>
    %84 = arith.addf %82, %83 : vector<16x32xf32>
    %cst_43 = arith.constant 5.000000e-01 : f32
    %85 = vector.broadcast %cst_43 : f32 to vector<16x32xf32>
    %86 = arith.mulf %85, %84 : vector<16x32xf32>
    %cst_44 = arith.constant 4.471500e-02 : f32
    %87 = vector.broadcast %cst_44 : f32 to vector<16x32xf32>
    %88 = arith.mulf %87, %84 : vector<16x32xf32>
    %89 = arith.mulf %88, %84 : vector<16x32xf32>
    %90 = arith.mulf %89, %84 : vector<16x32xf32>
    %91 = arith.addf %84, %90 : vector<16x32xf32>
    %cst_45 = arith.constant 0.797884583 : f32
    %92 = vector.broadcast %cst_45 : f32 to vector<16x32xf32>
    %93 = arith.mulf %92, %91 : vector<16x32xf32>
    %94 = math.tanh %93 : vector<16x32xf32>
    %cst_46 = arith.constant 1.000000e+00 : f32
    %95 = vector.broadcast %cst_46 : f32 to vector<16x32xf32>
    %96 = arith.addf %95, %94 : vector<16x32xf32>
    %97 = arith.mulf %86, %96 : vector<16x32xf32>
    %cst_47 = arith.constant dense<0.000000e+00> : vector<16xf32>
    %98 = vector.multi_reduction <add>, %97, %cst_47 [1] : vector<16x32xf32> to vector<16xf32>
    %99 = vector.shape_cast %98 : vector<16xf32> to vector<16x1xf32>
    %cst_48 = arith.constant 3.200000e+01 : f32
    %100 = vector.broadcast %cst_48 : f32 to vector<16x1xf32>
    %101 = arith.divf %99, %100 : vector<16x1xf32>
    %102 = vector.broadcast %101 : vector<16x1xf32> to vector<16x32xf32>
    %103 = arith.subf %97, %102 : vector<16x32xf32>
    %104 = arith.mulf %103, %103 : vector<16x32xf32>
    %cst_49 = arith.constant dense<0.000000e+00> : vector<16xf32>
    %105 = vector.multi_reduction <add>, %104, %cst_49 [1] : vector<16x32xf32> to vector<16xf32>
    %106 = vector.shape_cast %105 : vector<16xf32> to vector<16x1xf32>
    %cst_50 = arith.constant 3.200000e+01 : f32
    %107 = vector.broadcast %cst_50 : f32 to vector<16x1xf32>
    %108 = arith.divf %106, %107 : vector<16x1xf32>
    %cst_51 = arith.constant 9.99999996E-13 : f32
    %109 = vector.broadcast %cst_51 : f32 to vector<16x1xf32>
    %110 = arith.addf %108, %109 : vector<16x1xf32>
    %111 = math.rsqrt %110 : vector<16x1xf32>
    %112 = vector.broadcast %111 : vector<16x1xf32> to vector<16x32xf32>
    %113 = arith.mulf %103, %112 : vector<16x32xf32>
    %114 = vector.broadcast %2 : vector<1x32xf32> to vector<16x32xf32>
    %115 = arith.mulf %113, %114 : vector<16x32xf32>
    %116 = vector.broadcast %3 : vector<1x32xf32> to vector<16x32xf32>
    %117 = arith.addf %115, %116 : vector<16x32xf32>
    %cst_52 = arith.constant dense<0.000000e+00> : vector<16x128xf32>
    %118 = tpu.matmul %117, %5, %cst_52 {dimension_numbers = #tpu.dot_dimension_numbers<[1], [0], [0], [1], [0, 0, 1, 1], [], []>} : vector<16x32xf32>, vector<32x128xf32>, vector<16x128xf32> -> vector<16x128xf32>
    %119 = vector.broadcast %6 : vector<1x128xf32> to vector<16x128xf32>
    %120 = arith.addf %118, %119 : vector<16x128xf32>
    %cst_53 = arith.constant dense<0xFF800000> : vector<16xf32>
    %121 = vector.multi_reduction <maximumf>, %120, %cst_53 [1] : vector<16x128xf32> to vector<16xf32>
    %122 = vector.shape_cast %121 : vector<16xf32> to vector<16x1xf32>
    %123 = vector.broadcast %122 : vector<16x1xf32> to vector<16x128xf32>
    %124 = arith.subf %120, %123 : vector<16x128xf32>
    %125 = math.exp %124 : vector<16x128xf32>
    %cst_54 = arith.constant dense<0.000000e+00> : vector<16xf32>
    %126 = vector.multi_reduction <add>, %125, %cst_54 [1] : vector<16x128xf32> to vector<16xf32>
    %127 = vector.shape_cast %126 : vector<16xf32> to vector<16x1xf32>
    %128 = math.log %127 : vector<16x1xf32>
    %129 = arith.addf %122, %128 : vector<16x1xf32>
    %130 = vector.broadcast %81 : vector<16x1xi32> to vector<16x128xi32>
    %131 = arith.cmpi eq, %7, %130 : vector<16x128xi32>
    %cst_55 = arith.constant 0.000000e+00 : f32
    %132 = vector.broadcast %cst_55 : f32 to vector<16x128xf32>
    %133 = arith.select %131, %120, %132 : vector<16x128xi1>, vector<16x128xf32>
    %cst_56 = arith.constant dense<0.000000e+00> : vector<16xf32>
    %134 = vector.multi_reduction <add>, %133, %cst_56 [1] : vector<16x128xf32> to vector<16xf32>
    %135 = vector.shape_cast %134 : vector<16xf32> to vector<16x1xf32>
    %c0_i32_57 = arith.constant 0 : i32
    %136 = vector.broadcast %c0_i32_57 : i32 to vector<16x1xi32>
    %137 = arith.cmpi sge, %81, %136 : vector<16x1xi32>
    %138 = arith.extui %137 : vector<16x1xi1> to vector<16x1xi32>
    %139 = arith.sitofp %138 : vector<16x1xi32> to vector<16x1xf32>
    %140 = arith.subf %129, %135 : vector<16x1xf32>
    %141 = arith.mulf %140, %139 : vector<16x1xf32>
    %cst_58 = arith.constant dense<0.000000e+00> : vector<1xf32>
    %142 = vector.multi_reduction <add>, %141, %cst_58 [0] : vector<16x1xf32> to vector<1xf32>
    %143 = vector.shape_cast %142 : vector<1xf32> to vector<1x1xf32>
    %c1_59 = arith.constant 1 : index
    %c0_60 = arith.constant 0 : index
    %144 = vector.load %arg8[%c1_59, %c0_60] : memref<2x1xf32, #tpu.memory_space<vmem>>, vector<1x1xf32>
    tpu.vector_store %arg8[%c1_59, %c0_60], %143 {strides = array<i32>} : memref<2x1xf32, #tpu.memory_space<vmem>>, vector<1x1xf32>,
    %cst_61 = arith.constant dense<0.000000e+00> : vector<1xf32>
    %145 = vector.multi_reduction <add>, %139, %cst_61 [0] : vector<16x1xf32> to vector<1xf32>
    %146 = vector.shape_cast %145 : vector<1xf32> to vector<1x1xf32>
    %c1_62 = arith.constant 1 : index
    %c0_63 = arith.constant 0 : index
    %147 = vector.load %arg9[%c1_62, %c0_63] : memref<2x1xf32, #tpu.memory_space<vmem>>, vector<1x1xf32>
    tpu.vector_store %arg9[%c1_62, %c0_63], %146 {strides = array<i32>} : memref<2x1xf32, #tpu.memory_space<vmem>>, vector<1x1xf32>,
    return
  }
  func.func @transform_0(%arg0: i32) -> (i32, i32, i32) {
    %c0_i32 = arith.constant 0 : i32
    %c0_i32_0 = arith.constant 0 : i32
    %c0_i32_1 = arith.constant 0 : i32
    %c0_i32_2 = arith.constant 0 : i32
    return %c0_i32, %c0_i32_0, %c0_i32_1 : i32, i32, i32
  }
  func.func @transform_1(%arg0: i32) -> (i32, i32, i32) {
    %c0_i32 = arith.constant 0 : i32
    %c0_i32_0 = arith.constant 0 : i32
    %c0_i32_1 = arith.constant 0 : i32
    %c0_i32_2 = arith.constant 0 : i32
    return %c0_i32, %c0_i32_0, %c0_i32_1 : i32, i32, i32
  }
  func.func @transform_2(%arg0: i32) -> (i32, i32) {
    %c0_i32 = arith.constant 0 : i32
    %c0_i32_0 = arith.constant 0 : i32
    %c0_i32_1 = arith.constant 0 : i32
    return %c0_i32, %c0_i32_0 : i32, i32
  }
  func.func @transform_3(%arg0: i32) -> (i32, i32) {
    %c0_i32 = arith.constant 0 : i32
    %c0_i32_0 = arith.constant 0 : i32
    %c0_i32_1 = arith.constant 0 : i32
    return %c0_i32, %c0_i32_0 : i32, i32
  }
  func.func @transform_4(%arg0: i32) -> (i32, i32) {
    %c0_i32 = arith.constant 0 : i32
    %c0_i32_0 = arith.constant 0 : i32
    %c0_i32_1 = arith.constant 0 : i32
    return %c0_i32, %c0_i32_0 : i32, i32
  }
  func.func @transform_5(%arg0: i32) -> (i32, i32) {
    %c0_i32 = arith.constant 0 : i32
    %c0_i32_0 = arith.constant 0 : i32
    %c0_i32_1 = arith.constant 0 : i32
    return %c0_i32, %c0_i32_0 : i32, i32
  }
  func.func @transform_6(%arg0: i32) -> (i32, i32) {
    %c0_i32 = arith.constant 0 : i32
    %c0_i32_0 = arith.constant 0 : i32
    %c0_i32_1 = arith.constant 0 : i32
    return %c0_i32, %c0_i32_0 : i32, i32
  }
  func.func @transform_7(%arg0: i32) -> (i32, i32) {
    %c0_i32 = arith.constant 0 : i32
    %c0_i32_0 = arith.constant 0 : i32
    %c0_i32_1 = arith.constant 0 : i32
    return %c0_i32, %c0_i32_0 : i32, i32
  }
  func.func @transform_8(%arg0: i32) -> (i32, i32) {
    %c0_i32 = arith.constant 0 : i32
    %c0_i32_0 = arith.constant 0 : i32
    %c0_i32_1 = arith.constant 0 : i32
    return %c0_i32, %c0_i32_0 : i32, i32
  }
}

</mosaic_0001>

<llo_original>
// kernel: retromae_forward.5
$region0: #{retromae_forward.5}
  #allocation0 [shape = 'u32[]', space=smem, size = 0x4, offset = 0x4, fixed_abs, tag = 'smem constant byte address 0x4 - core index']
  #allocation1 [shape = 'u32[72,128]{1,0:T(1,128)}', space=vmem, size = 0x9000, scoped, tag = 'internal scratch']
  %s0 = inlined_call_operand.vmem [shape: f32[4,8,32], index: 0, kind: input, shape index: {}]
  %s1 = inlined_call_operand.vmem [shape: f32[8,32], index: 1, kind: input, shape index: {}]
  %s2 = inlined_call_operand.vmem [shape: f32[1,32], index: 2, kind: input, shape index: {}]
  %s3 = inlined_call_operand.vmem [shape: f32[2,32], index: 3, kind: input, shape index: {}]
  %s4 = inlined_call_operand.vmem [shape: f32[4,8,32], index: 4, kind: output, shape index: {}]
  %s5 = sld [smem:[#allocation0]]
  $region26: #{retromae_forward.5} parent=0
    _
  %s7 = ssub.s32 1, %s5
  %s8 = scalar_select 0, %s7, %s5
  // Predicated region
  $region2: #{retromae_forward.5} parent=0 // pred_check
    _
  $region3: #{retromae_forward.5} parent=0 // pred_check_branch
    %10 = sbr.rel (0) target = $region5
  $region4: #{retromae_forward.5} parent=0 // pred_region
    _
  $region5: #{retromae_forward.5} parent=0 // pred_fallthru
    _
  // Predicated region
  $region6: #{retromae_forward.5} parent=0 // pred_check
    _
  $region7: #{retromae_forward.5} parent=0 // pred_check_branch
    %12 = sbr.rel (0) target = $region9
  $region8: #{retromae_forward.5} parent=0 // pred_region
    _
  $region9: #{retromae_forward.5} parent=0 // pred_fallthru
    _
  // Predicated region
  $region10: #{retromae_forward.5} parent=0 // pred_check
    _
  $region11: #{retromae_forward.5} parent=0 // pred_check_branch
    %14 = sbr.rel (0) target = $region13
  $region12: #{retromae_forward.5} parent=0 // pred_region
    _
  $region13: #{retromae_forward.5} parent=0 // pred_fallthru
    _
  // Predicated region
  $region14: #{retromae_forward.5} parent=0 // pred_check
    _
  $region15: #{retromae_forward.5} parent=0 // pred_check_branch
    %16 = sbr.rel (0) target = $region17
  $region16: #{retromae_forward.5} parent=0 // pred_region
    _
  $region17: #{retromae_forward.5} parent=0 // pred_fallthru
    _
  %v17 = vld [vmem:[%s0] sm:$0xff]
  %v18 = vld [vmem:[%s0 + $0x8] sm:$0xff]
  %v19 = vld [vmem:[%s0 + $0x10] sm:$0xff]
  %v20 = vld [vmem:[%s0 + $0x18] sm:$0xff]
  %v21 = vld [vmem:[%s1] sm:$0xff]
  %v22 = vadd.f32 %v17, %v21
  %v23 = vadd.f32 %v18, %v21
  %v24 = vadd.f32 %v19, %v21
  %v25 = vadd.f32 %v20, %v21
  %v26 = vld [vmem:[%s2] sm:$0x1]
  %v28 = vperm.slane %v26, 0
  %v30 = vadd.f32 %v22, %v28
  %v31 = vadd.f32 %v23, %v28
  %v32 = vadd.f32 %v24, %v28
  %v33 = vadd.f32 %v25, %v28
  %v34 = vld [vmem:[%s3] sm:$0x1]
  %v35 = vld [vmem:[%s3 + $0x1] sm:$0x1]
  %vm36 = vcmask 261120
  %v37 = vsel %vm36, %v30, 0.0
  %38 = vadd.xlane.f32.xlu0 %v37
  %v39 = vpop.xlane.xlu0 %38
  %v40 = vsel %vm36, %v31, 0.0
  %41 = vadd.xlane.f32.xlu0 %v40
  %v42 = vpop.xlane.xlu0 %41
  %v43 = vsel %vm36, %v32, 0.0
  %44 = vadd.xlane.f32.xlu0 %v43
  %v45 = vpop.xlane.xlu0 %44
  %v46 = vsel %vm36, %v33, 0.0
  %47 = vadd.xlane.f32.xlu0 %v46
  %v48 = vpop.xlane.xlu0 %47
  %v49 = vrcp.pop 32.0
  %v50 = vmul.f32 32.0, %v49
  %v51 = vsub.f32 1.0, %v50
  %v52 = vmul.f32 %v49, %v51
  %v53 = vadd.f32 %v49, %v52
  %vm54 = vweird.f32 %v49
  %v55 = vsel %vm54, %v49, %v53
  %v56 = vmul.f32 %v39, %v55
  %v57 = vmul.f32 %v42, %v55
  %v58 = vmul.f32 %v45, %v55
  %v59 = vmul.f32 %v48, %v55
  %v60 = vsub.f32 %v30, %v56
  %v61 = vsub.f32 %v31, %v57
  %v62 = vsub.f32 %v32, %v58
  %v63 = vsub.f32 %v33, %v59
  %v64 = vmul.f32 %v60, %v60
  %v65 = vmul.f32 %v61, %v61
  %v66 = vmul.f32 %v62, %v62
  %v67 = vmul.f32 %v63, %v63
  %v68 = vsel %vm36, %v64, 0.0
  %69 = vadd.xlane.f32.xlu0 %v68
  %v70 = vpop.xlane.xlu0 %69
  %v71 = vsel %vm36, %v65, 0.0
  %72 = vadd.xlane.f32.xlu0 %v71
  %v73 = vpop.xlane.xlu0 %72
  %v74 = vsel %vm36, %v66, 0.0
  %75 = vadd.xlane.f32.xlu0 %v74
  %v76 = vpop.xlane.xlu0 %75
  %v77 = vsel %vm36, %v67, 0.0
  %78 = vadd.xlane.f32.xlu0 %v77
  %v79 = vpop.xlane.xlu0 %78
  %v80 = vmul.f32 %v70, %v55
  %v81 = vmul.f32 %v73, %v55
  %v82 = vmul.f32 %v76, %v55
  %v83 = vmul.f32 %v79, %v55
  %v84 = vadd.f32 %v80, 1e-12
  %v85 = vadd.f32 %v81, 1e-12
  %v86 = vadd.f32 %v82, 1e-12
  %v87 = vadd.f32 %v83, 1e-12
  %v88 = vrsqrt.pop %v84
  %v89 = vmul.f32 %v88, %v84
  %v90 = vmul.f32 %v89, %v88
  %v91 = vmul.f32 0.5, %v90
  %v92 = vsub.f32 1.5, %v91
  %v93 = vmul.f32 %v88, %v92
  %vm94 = vweird.f32 %v84
  %vm95 = vweird.f32 %v88
  %vm96 = vmor %vm94, %vm95
  %v97 = vsel %vm96, %v88, %v93
  %v98 = vrsqrt.pop %v85
  %v99 = vmul.f32 %v98, %v85
  %v100 = vmul.f32 %v99, %v98
  %v101 = vmul.f32 0.5, %v100
  %v102 = vsub.f32 1.5, %v101
  %v103 = vmul.f32 %v98, %v102
  %vm104 = vweird.f32 %v85
  %vm105 = vweird.f32 %v98
  %vm106 = vmor %vm104, %vm105
  %v107 = vsel %vm106, %v98, %v103
  %v108 = vrsqrt.pop %v86
  %v109 = vmul.f32 %v108, %v86
  %v110 = vmul.f32 %v109, %v108
  %v111 = vmul.f32 0.5, %v110
  %v112 = vsub.f32 1.5, %v111
  %v113 = vmul.f32 %v108, %v112
  %vm114 = vweird.f32 %v86
  %vm115 = vweird.f32 %v108
  %vm116 = vmor %vm114, %vm115
  %v117 = vsel %vm116, %v108, %v113
  %v118 = vrsqrt.pop %v87
  %v119 = vmul.f32 %v118, %v87
  %v120 = vmul.f32 %v119, %v118
  %v121 = vmul.f32 0.5, %v120
  %v122 = vsub.f32 1.5, %v121
  %v123 = vmul.f32 %v118, %v122
  %vm124 = vweird.f32 %v87
  %vm125 = vweird.f32 %v118
  %vm126 = vmor %vm124, %vm125
  %v127 = vsel %vm126, %v118, %v123
  %v128 = vmul.f32 %v60, %v97
  %v129 = vmul.f32 %v61, %v107
  %v130 = vmul.f32 %v62, %v117
  %v131 = vmul.f32 %v63, %v127
  %v132 = vperm.slane %v34, 0
  %v133 = vmul.f32 %v128, %v132
  %v134 = vmul.f32 %v129, %v132
  %v135 = vmul.f32 %v130, %v132
  %v136 = vmul.f32 %v131, %v132
  %v137 = vperm.slane %v35, 0
  %v138 = vadd.f32 %v133, %v137
  %v139 = vadd.f32 %v134, %v137
  %v140 = vadd.f32 %v135, %v137
  %v141 = vadd.f32 %v136, %v137
  %142 = vst.msk [vmem:[%s4] sm:$0xff] %vm36, %v138
  %143 = vst.msk [vmem:[%s4 + $0x8] sm:$0xff] %vm36, %v139
  %144 = vst.msk [vmem:[%s4 + $0x10] sm:$0xff] %vm36, %v140
  %145 = vst.msk [vmem:[%s4 + $0x18] sm:$0xff] %vm36, %v141
  // Predicated region
  $region18: #{retromae_forward.5} parent=0 // pred_check
    _
  $region19: #{retromae_forward.5} parent=0 // pred_check_branch
    %147 = sbr.rel (0) target = $region21
  $region20: #{retromae_forward.5} parent=0 // pred_region
    _
  $region21: #{retromae_forward.5} parent=0 // pred_fallthru
    _
  // Predicated region
  $region22: #{retromae_forward.5} parent=0 // pred_check
    _
  $region23: #{retromae_forward.5} parent=0 // pred_check_branch
    %149 = sbr.rel (0) target = $region25
  $region24: #{retromae_forward.5} parent=0 // pred_region
    _
  $region25: #{retromae_forward.5} parent=0 // pred_fallthru
    _

// kernel: retromae_forward.7
$region0: #{retromae_forward.7}
  #allocation0 [shape = 'u32[]', space=smem, size = 0x4, offset = 0x4, fixed_abs, tag = 'smem constant byte address 0x4 - core index']
  #allocation1 [shape = 'u32[72,128]{1,0:T(1,128)}', space=vmem, size = 0x9000, scoped, tag = 'internal scratch']
  %s0 = inlined_call_operand.vmem [shape: f32[2,16,32], index: 0, kind: input, shape index: {}]
  %s1 = inlined_call_operand.vmem [shape: s32[2,16,1], index: 1, kind: input, shape index: {}]
  %s2 = inlined_call_operand.vmem [shape: f32[32,32], index: 2, kind: input, shape index: {}]
  %s3 = inlined_call_operand.vmem [shape: f32[1,32], index: 3, kind: input, shape index: {}]
  %s4 = inlined_call_operand.vmem [shape: f32[2,32], index: 4, kind: input, shape index: {}]
  %s5 = inlined_call_operand.vmem [shape: f32[128,32], index: 5, kind: input, shape index: {}]
  %s6 = inlined_call_operand.vmem [shape: f32[1,128], index: 6, kind: input, shape index: {}]
  %s7 = inlined_call_operand.vmem [shape: f32[2,1], index: 7, kind: output, shape index: {0}]
  %s8 = inlined_call_operand.vmem [shape: f32[2,1], index: 8, kind: output, shape index: {1}]
  %9 = xla_tuple %s7, %s8
  %s10 = sld [smem:[#allocation0]]
  $region46: #{retromae_forward.7} parent=0
    _
  %s12 = ssub.s32 1, %s10
  %s13 = scalar_select 0, %s12, %s10
  // Predicated region
  $region2: #{retromae_forward.7} parent=0 // pred_check
    _
  $region3: #{retromae_forward.7} parent=0 // pred_check_branch
    %15 = sbr.rel (0) target = $region5
  $region4: #{retromae_forward.7} parent=0 // pred_region
    _
  $region5: #{retromae_forward.7} parent=0 // pred_fallthru
    _
  // Predicated region
  $region6: #{retromae_forward.7} parent=0 // pred_check
    _
  $region7: #{retromae_forward.7} parent=0 // pred_check_branch
    %17 = sbr.rel (0) target = $region9
  $region8: #{retromae_forward.7} parent=0 // pred_region
    _
  $region9: #{retromae_forward.7} parent=0 // pred_fallthru
    _
  // Predicated region
  $region10: #{retromae_forward.7} parent=0 // pred_check
    _
  $region11: #{retromae_forward.7} parent=0 // pred_check_branch
    %19 = sbr.rel (0) target = $region13
  $region12: #{retromae_forward.7} parent=0 // pred_region
    _
  $region13: #{retromae_forward.7} parent=0 // pred_fallthru
    _
  // Predicated region
  $region14: #{retromae_forward.7} parent=0 // pred_check
    _
  $region15: #{retromae_forward.7} parent=0 // pred_check_branch
    %21 = sbr.rel (0) target = $region17
  $region16: #{retromae_forward.7} parent=0 // pred_region
    _
  $region17: #{retromae_forward.7} parent=0 // pred_fallthru
    _
  // Predicated region
  $region18: #{retromae_forward.7} parent=0 // pred_check
    _
  $region19: #{retromae_forward.7} parent=0 // pred_check_branch
    %23 = sbr.rel (0) target = $region21
  $region20: #{retromae_forward.7} parent=0 // pred_region
    _
  $region21: #{retromae_forward.7} parent=0 // pred_fallthru
    _
  // Predicated region
  $region22: #{retromae_forward.7} parent=0 // pred_check
    _
  $region23: #{retromae_forward.7} parent=0 // pred_check_branch
    %25 = sbr.rel (0) target = $region25
  $region24: #{retromae_forward.7} parent=0 // pred_region
    _
  $region25: #{retromae_forward.7} parent=0 // pred_fallthru
    _
  // Predicated region
  $region26: #{retromae_forward.7} parent=0 // pred_check
    _
  $region27: #{retromae_forward.7} parent=0 // pred_check_branch
    %27 = sbr.rel (0) target = $region29
  $region28: #{retromae_forward.7} parent=0 // pred_region
    _
  $region29: #{retromae_forward.7} parent=0 // pred_fallthru
    _
  %v28 = vld [vmem:[%s2] sm:$0xff]
  %v29 = vld [vmem:[%s2 + $0x8] sm:$0xff]
  %v30 = vld [vmem:[%s2 + $0x10] sm:$0xff]
  %v31 = vld [vmem:[%s2 + $0x18] sm:$0xff]
  %v32 = vld [vmem:[%s3] sm:$0x1]
  %v33 = vld [vmem:[%s4] sm:$0x1]
  %v34 = vld [vmem:[%s4 + $0x1] sm:$0x1]
  %v35 = vld [vmem:[%s5] sm:$0xff]
  %v36 = vld [vmem:[%s5 + $0x8] sm:$0xff]
  %v37 = vld [vmem:[%s5 + $0x10] sm:$0xff]
  %v38 = vld [vmem:[%s5 + $0x18] sm:$0xff]
  %v39 = vld [vmem:[%s5 + $0x20] sm:$0xff]
  %v40 = vld [vmem:[%s5 + $0x28] sm:$0xff]
  %v41 = vld [vmem:[%s5 + $0x30] sm:$0xff]
  %v42 = vld [vmem:[%s5 + $0x38] sm:$0xff]
  %v43 = vld [vmem:[%s5 + $0x40] sm:$0xff]
  %v44 = vld [vmem:[%s5 + $0x48] sm:$0xff]
  %v45 = vld [vmem:[%s5 + $0x50] sm:$0xff]
  %v46 = vld [vmem:[%s5 + $0x58] sm:$0xff]
  %v47 = vld [vmem:[%s5 + $0x60] sm:$0xff]
  %v48 = vld [vmem:[%s5 + $0x68] sm:$0xff]
  %v49 = vld [vmem:[%s5 + $0x70] sm:$0xff]
  %v50 = vld [vmem:[%s5 + $0x78] sm:$0xff]
  %v51 = vld [vmem:[%s6] sm:$0x1]
  %v52 = vlaneseq
  %v53 = vand.u32 %v52, 127
  %v54 = vld [vmem:[%s0] sm:$0xff]
  %v55 = vld [vmem:[%s0 + $0x8] sm:$0xff]
  %v56 = vld [vmem:[%s1] sm:$0xff]
  %v57 = vld [vmem:[%s1 + $0x8] sm:$0xff]
  %v59 = vperm.slane %v32, 0
  %vm61 = vcmask 261120
  %v63 = vsel %vm61, %v54, 0
  %v66 = vsel %vm61, %v55, 0
  %68 = vmatpush.msra.mxu0 0.0
  %69 = vmatpush.msra.mxu0 0.0
  %70 = vmatpush.msra.mxu0 0.0
  %71 = vmatpush.msra.mxu0 0.0
  %72 = vmatpush.msra.mxu0 0.0
  %73 = vmatpush.msra.mxu0 0.0
  %74 = vmatpush.msra.mxu0 0.0
  %75 = vmatpush.msra.mxu0 0.0
  %76 = vmatpush.msra.mxu0 0.0
  %77 = vmatpush.msra.mxu0 0.0
  %78 = vmatpush.msra.mxu0 0.0
  %79 = vmatpush.msra.mxu0 0.0
  %80 = vmatpush.msra.mxu0 %v31
  %81 = vmatpush.msra.mxu0 %v30
  %82 = vmatpush.msra.mxu0 %v29
  %83 = vmatpush.msra.mxu0 %v28
  %84 = vmatmul.f32.gmra.mxu0 %v63
  %v85 = vpop.f32.mrf.mxu0
  %v86 = vadd.f32 %v59, %v85
  %87 = vmatmul.f32.gmra.mxu0 %v66
  %v88 = vpop.f32.mrf.mxu0
  %v89 = vadd.f32 %v59, %v88
  %90 = vdwg.mxu0
  %v91 = vmul.f32 %v86, 0.5
  %v92 = vmul.f32 %v89, 0.5
  %v93 = vmul.f32 %v86, 0.044715
  %v94 = vmul.f32 %v89, 0.044715
  %v95 = vmul.f32 %v93, %v86
  %v96 = vmul.f32 %v94, %v89
  %v97 = vmul.f32 %v95, %v86
  %v98 = vmul.f32 %v96, %v89
  %v99 = vadd.f32 %v86, %v97
  %v100 = vadd.f32 %v89, %v98
  %v101 = vmul.f32 %v99, 0.7978846
  %v102 = vmul.f32 %v100, 0.7978846
  %v103 = vtanh.pop %v101
  %v104 = vtanh.pop %v102
  %v105 = vadd.f32 %v103, 1.0
  %v106 = vadd.f32 %v104, 1.0
  %v107 = vmul.f32 %v91, %v105
  %v108 = vmul.f32 %v92, %v106
  %v109 = vsel %vm61, %v107, 0.0
  %110 = vadd.xlane.f32.xlu0 %v109
  %v111 = vpop.xlane.xlu0 %110
  %v112 = vsel %vm61, %v108, 0.0
  %113 = vadd.xlane.f32.xlu0 %v112
  %v114 = vpop.xlane.xlu0 %113
  %v115 = vrcp.pop 32.0
  %v116 = vmul.f32 32.0, %v115
  %v117 = vsub.f32 1.0, %v116
  %v118 = vmul.f32 %v115, %v117
  %v119 = vadd.f32 %v115, %v118
  %vm120 = vweird.f32 %v115
  %v121 = vsel %vm120, %v115, %v119
  %v122 = vmul.f32 %v111, %v121
  %v123 = vmul.f32 %v114, %v121
  %v124 = vsub.f32 %v107, %v122
  %v125 = vsub.f32 %v108, %v123
  %v126 = vmul.f32 %v124, %v124
  %v127 = vmul.f32 %v125, %v125
  %v128 = vsel %vm61, %v126, 0.0
  %129 = vadd.xlane.f32.xlu0 %v128
  %v130 = vpop.xlane.xlu0 %129
  %v131 = vsel %vm61, %v127, 0.0
  %132 = vadd.xlane.f32.xlu0 %v131
  %v133 = vpop.xlane.xlu0 %132
  %v134 = vmul.f32 %v130, %v121
  %v135 = vmul.f32 %v133, %v121
  %v136 = vadd.f32 %v134, 1e-12
  %v137 = vadd.f32 %v135, 1e-12
  %v138 = vrsqrt.pop %v136
  %v139 = vmul.f32 %v138, %v136
  %v140 = vmul.f32 %v139, %v138
  %v141 = vmul.f32 0.5, %v140
  %v142 = vsub.f32 1.5, %v141
  %v143 = vmul.f32 %v138, %v142
  %vm144 = vweird.f32 %v136
  %vm145 = vweird.f32 %v138
  %vm146 = vmor %vm144, %vm145
  %v147 = vsel %vm146, %v138, %v143
  %v148 = vrsqrt.pop %v137
  %v149 = vmul.f32 %v148, %v137
  %v150 = vmul.f32 %v149, %v148
  %v151 = vmul.f32 0.5, %v150
  %v152 = vsub.f32 1.5, %v151
  %v153 = vmul.f32 %v148, %v152
  %vm154 = vweird.f32 %v137
  %vm155 = vweird.f32 %v148
  %vm156 = vmor %vm154, %vm155
  %v157 = vsel %vm156, %v148, %v153
  %v158 = vmul.f32 %v124, %v147
  %v159 = vmul.f32 %v125, %v157
  %v160 = vperm.slane %v33, 0
  %v161 = vmul.f32 %v158, %v160
  %v162 = vmul.f32 %v159, %v160
  %v163 = vperm.slane %v34, 0
  %v164 = vadd.f32 %v161, %v163
  %v165 = vadd.f32 %v162, %v163
  %v167 = vperm.slane %v51, 0
  %v170 = vsel %vm61, %v164, 0
  %v173 = vsel %vm61, %v165, 0
  %v176 = vsel %vm61, %v35, 0
  %v179 = vsel %vm61, %v36, 0
  %v182 = vsel %vm61, %v37, 0
  %v185 = vsel %vm61, %v38, 0
  %v188 = vsel %vm61, %v39, 0
  %v191 = vsel %vm61, %v40, 0
  %v194 = vsel %vm61, %v41, 0
  %v197 = vsel %vm61, %v42, 0
  %v200 = vsel %vm61, %v43, 0
  %v203 = vsel %vm61, %v44, 0
  %v206 = vsel %vm61, %v45, 0
  %v209 = vsel %vm61, %v46, 0
  %v212 = vsel %vm61, %v47, 0
  %v215 = vsel %vm61, %v48, 0
  %v218 = vsel %vm61, %v49, 0
  %v221 = vsel %vm61, %v50, 0
  %223 = vmatpush.xpose.msra.mxu0 %v221
  %224 = vmatpush.xpose.msra.mxu0 %v218
  %225 = vmatpush.xpose.msra.mxu0 %v215
  %226 = vmatpush.xpose.msra.mxu0 %v212
  %227 = vmatpush.xpose.msra.mxu0 %v209
  %228 = vmatpush.xpose.msra.mxu0 %v206
  %229 = vmatpush.xpose.msra.mxu0 %v203
  %230 = vmatpush.xpose.msra.mxu0 %v200
  %231 = vmatpush.xpose.msra.mxu0 %v197
  %232 = vmatpush.xpose.msra.mxu0 %v194
  %233 = vmatpush.xpose.msra.mxu0 %v191
  %234 = vmatpush.xpose.msra.mxu0 %v188
  %235 = vmatpush.xpose.msra.mxu0 %v185
  %236 = vmatpush.xpose.msra.mxu0 %v182
  %237 = vmatpush.xpose.msra.mxu0 %v179
  %238 = vmatpush.xpose.msra.mxu0 %v176
  %239 = vmatmul.f32.gmra.mxu0 %v170
  %v240 = vpop.f32.mrf.mxu0
  %v241 = vadd.f32 %v167, %v240
  %242 = vmatmul.f32.gmra.mxu0 %v173
  %v243 = vpop.f32.mrf.mxu0
  %v244 = vadd.f32 %v167, %v243
  %245 = vdwg.mxu0
  %246 = vmax.xlane.f32.xlu0 %v241
  %v247 = vpop.xlane.xlu0 %246
  %248 = vmax.xlane.f32.xlu0 %v244
  %v249 = vpop.xlane.xlu0 %248
  %v250 = vsub.f32 %v241, %v247
  %v251 = vsub.f32 %v244, %v249
  %v252 = vmul.f32 %v250, 1.442695
  %v253 = vpow.pop %v252
  %v254 = vmul.f32 %v251, 1.442695
  %v255 = vpow.pop %v254
  %256 = vadd.xlane.f32.xlu0 %v253
  %v257 = vpop.xlane.xlu0 %256
  %258 = vadd.xlane.f32.xlu0 %v255
  %v259 = vpop.xlane.xlu0 %258
  %v260 = vlog2.pop %v257
  %v261 = vmul.f32 %v260, 0.6931472
  %v262 = vlog2.pop %v259
  %v263 = vmul.f32 %v262, 0.6931472
  %v264 = vadd.f32 %v247, %v261
  %v265 = vadd.f32 %v249, %v263
  %266 = vset.pattern.permute.xlu0 0
  %267 = vperm.xlu0 %266, %v56
  %v268 = vpop.permute.xlu0 %267
  %269 = vset.pattern.permute.xlu0 0
  %270 = vperm.xlu0 %269, %v57
  %v271 = vpop.permute.xlu0 %270
  %vm272 = vcmp.eq.s32.totalorder %v53, %v268
  %vm273 = vcmp.eq.s32.totalorder %v53, %v271
  %v274 = vsel %vm272, %v241, 0.0
  %v275 = vsel %vm273, %v244, 0.0
  %276 = vadd.xlane.f32.xlu0 %v274
  %v277 = vpop.xlane.xlu0 %276
  %278 = vadd.xlane.f32.xlu0 %v275
  %v279 = vpop.xlane.xlu0 %278
  %vm280 = vcmp.ge.s32.totalorder %v56, 0
  %vm281 = vcmp.ge.s32.totalorder %v57, 0
  %v282 = vsel %vm280, 1, 0
  %v283 = vsel %vm281, 1, 0
  %v284 = vcvt.s32.f32 %v282
  %v285 = vcvt.s32.f32 %v283
  %v286 = vsub.f32 %v264, %v277
  %v287 = vsub.f32 %v265, %v279
  %v288 = vmul.f32 %v286, %v284
  %v289 = vmul.f32 %v287, %v285
  %vm290 = vcmask 7168
  %v291 = vsel %vm290, %v288, 0.0
  %v292 = vsel %vm290, %v289, 0.0
  %v293 = vadd.f32 %v291, %v292
  %v294 = vrot.slane %v293, 4
  %v295 = vadd.f32 %v293, %v294
  %v296 = vrot.slane %v295, 2
  %v297 = vadd.f32 %v295, %v296
  %v298 = vrot.slane %v297, 1
  %v299 = vadd.f32 %v297, %v298
  %vm300 = vcmask 0
  %301 = vst.msk [vmem:[%s7] sm:$0x1] %vm300, %v299
  %v302 = vsel %vm290, %v284, 0.0
  %v303 = vsel %vm290, %v285, 0.0
  %v304 = vadd.f32 %v302, %v303
  %v305 = vrot.slane %v304, 4
  %v306 = vadd.f32 %v304, %v305
  %v307 = vrot.slane %v306, 2
  %v308 = vadd.f32 %v306, %v307
  %v309 = vrot.slane %v308, 1
  %v310 = vadd.f32 %v308, %v309
  %311 = vst.msk [vmem:[%s8] sm:$0x1] %vm300, %v310
  %s312 = scalar_lea.vmem %s0, 16
  %v313 = vld [vmem:[%s312] sm:$0xff]
  %v314 = vld [vmem:[%s312 + $0x8] sm:$0xff]
  %s315 = scalar_lea.vmem %s1, 16
  %v316 = vld [vmem:[%s315] sm:$0xff]
  %v317 = vld [vmem:[%s315 + $0x8] sm:$0xff]
  %v319 = vsel %vm61, %v313, 0
  %v322 = vsel %vm61, %v314, 0
  %324 = vmatpush.msra.mxu0 0.0
  %325 = vmatpush.msra.mxu0 0.0
  %326 = vmatpush.msra.mxu0 0.0
  %327 = vmatpush.msra.mxu0 0.0
  %328 = vmatpush.msra.mxu0 0.0
  %329 = vmatpush.msra.mxu0 0.0
  %330 = vmatpush.msra.mxu0 0.0
  %331 = vmatpush.msra.mxu0 0.0
  %332 = vmatpush.msra.mxu0 0.0
  %333 = vmatpush.msra.mxu0 0.0
  %334 = vmatpush.msra.mxu0 0.0
  %335 = vmatpush.msra.mxu0 0.0
  %336 = vmatpush.msra.mxu0 %v31
  %337 = vmatpush.msra.mxu0 %v30
  %338 = vmatpush.msra.mxu0 %v29
  %339 = vmatpush.msra.mxu0 %v28
  %340 = vmatmul.f32.gmra.mxu0 %v319
  %v341 = vpop.f32.mrf.mxu0
  %v342 = vadd.f32 %v59, %v341
  %343 = vmatmul.f32.gmra.mxu0 %v322
  %v344 = vpop.f32.mrf.mxu0
  %v345 = vadd.f32 %v59, %v344
  %346 = vdwg.mxu0
  %v347 = vmul.f32 %v342, 0.5
  %v348 = vmul.f32 %v345, 0.5
  %v349 = vmul.f32 %v342, 0.044715
  %v350 = vmul.f32 %v345, 0.044715
  %v351 = vmul.f32 %v349, %v342
  %v352 = vmul.f32 %v350, %v345
  %v353 = vmul.f32 %v351, %v342
  %v354 = vmul.f32 %v352, %v345
  %v355 = vadd.f32 %v342, %v353
  %v356 = vadd.f32 %v345, %v354
  %v357 = vmul.f32 %v355, 0.7978846
  %v358 = vmul.f32 %v356, 0.7978846
  %v359 = vtanh.pop %v357
  %v360 = vtanh.pop %v358
  %v361 = vadd.f32 %v359, 1.0
  %v362 = vadd.f32 %v360, 1.0
  %v363 = vmul.f32 %v347, %v361
  %v364 = vmul.f32 %v348, %v362
  %v365 = vsel %vm61, %v363, 0.0
  %366 = vadd.xlane.f32.xlu0 %v365
  %v367 = vpop.xlane.xlu0 %366
  %v368 = vsel %vm61, %v364, 0.0
  %369 = vadd.xlane.f32.xlu0 %v368
  %v370 = vpop.xlane.xlu0 %369
  %v371 = vmul.f32 %v367, %v121
  %v372 = vmul.f32 %v370, %v121
  %v373 = vsub.f32 %v363, %v371
  %v374 = vsub.f32 %v364, %v372
  %v375 = vmul.f32 %v373, %v373
  %v376 = vmul.f32 %v374, %v374
  %v377 = vsel %vm61, %v375, 0.0
  %378 = vadd.xlane.f32.xlu0 %v377
  %v379 = vpop.xlane.xlu0 %378
  %v380 = vsel %vm61, %v376, 0.0
  %381 = vadd.xlane.f32.xlu0 %v380
  %v382 = vpop.xlane.xlu0 %381
  %v383 = vmul.f32 %v379, %v121
  %v384 = vmul.f32 %v382, %v121
  %v385 = vadd.f32 %v383, 1e-12
  %v386 = vadd.f32 %v384, 1e-12
  %v387 = vrsqrt.pop %v385
  %v388 = vmul.f32 %v387, %v385
  %v389 = vmul.f32 %v388, %v387
  %v390 = vmul.f32 0.5, %v389
  %v391 = vsub.f32 1.5, %v390
  %v392 = vmul.f32 %v387, %v391
  %vm393 = vweird.f32 %v385
  %vm394 = vweird.f32 %v387
  %vm395 = vmor %vm393, %vm394
  %v396 = vsel %vm395, %v387, %v392
  %v397 = vrsqrt.pop %v386
  %v398 = vmul.f32 %v397, %v386
  %v399 = vmul.f32 %v398, %v397
  %v400 = vmul.f32 0.5, %v399
  %v401 = vsub.f32 1.5, %v400
  %v402 = vmul.f32 %v397, %v401
  %vm403 = vweird.f32 %v386
  %vm404 = vweird.f32 %v397
  %vm405 = vmor %vm403, %vm404
  %v406 = vsel %vm405, %v397, %v402
  %v407 = vmul.f32 %v373, %v396
  %v408 = vmul.f32 %v374, %v406
  %v409 = vmul.f32 %v407, %v160
  %v410 = vmul.f32 %v408, %v160
  %v411 = vadd.f32 %v409, %v163
  %v412 = vadd.f32 %v410, %v163
  %v414 = vsel %vm61, %v411, 0
  %v417 = vsel %vm61, %v412, 0
  %419 = vmatpush.xpose.msra.mxu0 %v221
  %420 = vmatpush.xpose.msra.mxu0 %v218
  %421 = vmatpush.xpose.msra.mxu0 %v215
  %422 = vmatpush.xpose.msra.mxu0 %v212
  %423 = vmatpush.xpose.msra.mxu0 %v209
  %424 = vmatpush.xpose.msra.mxu0 %v206
  %425 = vmatpush.xpose.msra.mxu0 %v203
  %426 = vmatpush.xpose.msra.mxu0 %v200
  %427 = vmatpush.xpose.msra.mxu0 %v197
  %428 = vmatpush.xpose.msra.mxu0 %v194
  %429 = vmatpush.xpose.msra.mxu0 %v191
  %430 = vmatpush.xpose.msra.mxu0 %v188
  %431 = vmatpush.xpose.msra.mxu0 %v185
  %432 = vmatpush.xpose.msra.mxu0 %v182
  %433 = vmatpush.xpose.msra.mxu0 %v179
  %434 = vmatpush.xpose.msra.mxu0 %v176
  %435 = vmatmul.f32.gmra.mxu0 %v414
  %v436 = vpop.f32.mrf.mxu0
  %v437 = vadd.f32 %v167, %v436
  %438 = vmatmul.f32.gmra.mxu0 %v417
  %v439 = vpop.f32.mrf.mxu0
  %v440 = vadd.f32 %v167, %v439
  %441 = vdwg.mxu0
  %442 = vmax.xlane.f32.xlu0 %v437
  %v443 = vpop.xlane.xlu0 %442
  %444 = vmax.xlane.f32.xlu0 %v440
  %v445 = vpop.xlane.xlu0 %444
  %v446 = vsub.f32 %v437, %v443
  %v447 = vsub.f32 %v440, %v445
  %v448 = vmul.f32 %v446, 1.442695
  %v449 = vpow.pop %v448
  %v450 = vmul.f32 %v447, 1.442695
  %v451 = vpow.pop %v450
  %452 = vadd.xlane.f32.xlu0 %v449
  %v453 = vpop.xlane.xlu0 %452
  %454 = vadd.xlane.f32.xlu0 %v451
  %v455 = vpop.xlane.xlu0 %454
  %v456 = vlog2.pop %v453
  %v457 = vmul.f32 %v456, 0.6931472
  %v458 = vlog2.pop %v455
  %v459 = vmul.f32 %v458, 0.6931472
  %v460 = vadd.f32 %v443, %v457
  %v461 = vadd.f32 %v445, %v459
  %462 = vset.pattern.permute.xlu0 0
  %463 = vperm.xlu0 %462, %v316
  %v464 = vpop.permute.xlu0 %463
  %465 = vset.pattern.permute.xlu0 0
  %466 = vperm.xlu0 %465, %v317
  %v467 = vpop.permute.xlu0 %466
  %vm468 = vcmp.eq.s32.totalorder %v53, %v464
  %vm469 = vcmp.eq.s32.totalorder %v53, %v467
  %v470 = vsel %vm468, %v437, 0.0
  %v471 = vsel %vm469, %v440, 0.0
  %472 = vadd.xlane.f32.xlu0 %v470
  %v473 = vpop.xlane.xlu0 %472
  %474 = vadd.xlane.f32.xlu0 %v471
  %v475 = vpop.xlane.xlu0 %474
  %vm476 = vcmp.ge.s32.totalorder %v316, 0
  %vm477 = vcmp.ge.s32.totalorder %v317, 0
  %v478 = vsel %vm476, 1, 0
  %v479 = vsel %vm477, 1, 0
  %v480 = vcvt.s32.f32 %v478
  %v481 = vcvt.s32.f32 %v479
  %v482 = vsub.f32 %v460, %v473
  %v483 = vsub.f32 %v461, %v475
  %v484 = vmul.f32 %v482, %v480
  %v485 = vmul.f32 %v483, %v481
  %v486 = vsel %vm290, %v484, 0.0
  %v487 = vsel %vm290, %v485, 0.0
  %v488 = vadd.f32 %v486, %v487
  %v489 = vrot.slane %v488, 4
  %v490 = vadd.f32 %v488, %v489
  %v491 = vrot.slane %v490, 2
  %v492 = vadd.f32 %v490, %v491
  %v493 = vrot.slane %v492, 1
  %v494 = vadd.f32 %v492, %v493
  %495 = vst.msk [vmem:[%s7 + $0x1] sm:$0x1] %vm300, %v494
  %v496 = vsel %vm290, %v480, 0.0
  %v497 = vsel %vm290, %v481, 0.0
  %v498 = vadd.f32 %v496, %v497
  %v499 = vrot.slane %v498, 4
  %v500 = vadd.f32 %v498, %v499
  %v501 = vrot.slane %v500, 2
  %v502 = vadd.f32 %v500, %v501
  %v503 = vrot.slane %v502, 1
  %v504 = vadd.f32 %v502, %v503
  %505 = vst.msk [vmem:[%s8 + $0x1] sm:$0x1] %vm300, %v504
  // Predicated region
  $region30: #{retromae_forward.7} parent=0 // pred_check
    _
  $region31: #{retromae_forward.7} parent=0 // pred_check_branch
    %507 = sbr.rel (0) target = $region33
  $region32: #{retromae_forward.7} parent=0 // pred_region
    _
  $region33: #{retromae_forward.7} parent=0 // pred_fallthru
    _
  // Predicated region
  $region34: #{retromae_forward.7} parent=0 // pred_check
    _
  $region35: #{retromae_forward.7} parent=0 // pred_check_branch
    %509 = sbr.rel (0) target = $region37
  $region36: #{retromae_forward.7} parent=0 // pred_region
    _
  $region37: #{retromae_forward.7} parent=0 // pred_fallthru
    _
  // Predicated region
  $region38: #{retromae_forward.7} parent=0 // pred_check
    _
  $region39: #{retromae_forward.7} parent=0 // pred_check_branch
    %511 = sbr.rel (0) target = $region41
  $region40: #{retromae_forward.7} parent=0 // pred_region
    _
  $region41: #{retromae_forward.7} parent=0 // pred_fallthru
    _
  // Predicated region
  $region42: #{retromae_forward.7} parent=0 // pred_check
    _
  $region43: #{retromae_forward.7} parent=0 // pred_check_branch
    %513 = sbr.rel (0) target = $region45
  $region44: #{retromae_forward.7} parent=0 // pred_region
    _
  $region45: #{retromae_forward.7} parent=0 // pred_fallthru
    _

// kernel: retromae_forward.6
$region0: #{retromae_forward.6}
  #allocation0 [shape = 'u32[]', space=smem, size = 0x4, offset = 0x4, fixed_abs, tag = 'smem constant byte address 0x4 - core index']
  #allocation1 [shape = 'u32[72,128]{1,0:T(1,128)}', space=vmem, size = 0x9000, scoped, tag = 'internal scratch']
  %s0 = inlined_call_operand.vmem [shape: f32[2,8,32], index: 0, kind: input, shape index: {}]
  %s1 = inlined_call_operand.vmem [shape: f32[2,8,32], index: 1, kind: input, shape index: {}]
  %s2 = inlined_call_operand.vmem [shape: f32[2,1,8], index: 2, kind: input, shape index: {}]
  %s3 = inlined_call_operand.vmem [shape: f32[32,96], index: 3, kind: input, shape index: {}]
  %s4 = inlined_call_operand.vmem [shape: f32[1,96], index: 4, kind: input, shape index: {}]
  %s5 = inlined_call_operand.vmem [shape: f32[32,32], index: 5, kind: input, shape index: {}]
  %s6 = inlined_call_operand.vmem [shape: f32[1,32], index: 6, kind: input, shape index: {}]
  %s7 = inlined_call_operand.vmem [shape: f32[2,32], index: 7, kind: input, shape index: {}]
  %s8 = inlined_call_operand.vmem [shape: f32[32,64], index: 8, kind: input, shape index: {}]
  %s9 = inlined_call_operand.vmem [shape: f32[1,64], index: 9, kind: input, shape index: {}]
  %s10 = inlined_call_operand.vmem [shape: f32[64,32], index: 10, kind: input, shape index: {}]
  %s11 = inlined_call_operand.vmem [shape: f32[1,32], index: 11, kind: input, shape index: {}]
  %s12 = inlined_call_operand.vmem [shape: f32[2,32], index: 12, kind: input, shape index: {}]
  %s13 = inlined_call_operand.vmem [shape: f32[2,8,32], index: 13, kind: output, shape index: {}]
  %s14 = sld [smem:[#allocation0]]
  $region85: #{retromae_forward.6} parent=0
    _
  %s16 = ssub.s32 1, %s14
  %s17 = scalar_select 0, %s16, %s14
  loop: start=0, step=1, limit=4
  $region2: #{retromae_forward.6} parent=0 // loop_pre_header
    _
  $region3: #{retromae_forward.6} parent=0 // loop_header
    %s19 = sphi 0, %s23
    %p20 = scmp.ge.s32.totalorder %s19, 4
    %s29 = sphi 0, %s31
    %s32 = sphi 0, %s29
    %s33 = sphi 0, %s32
    %s49 = sphi 0, %s33
    %s55 = sphi 0, %s57
    %s58 = sphi 0, %s55
    %s59 = sphi 0, %s58
    %s75 = sphi 0, %s59
    %s81 = sphi 0, %s83
    %s84 = sphi 0, %s81
    %s85 = sphi 0, %s84
    %s101 = sphi 0, %s85
    %s105 = sphi 0, %s105
    %s107 = sphi 0, %s105
    %s108 = sphi 0, %s107
    %s122 = sphi 0, %s108
    %s126 = sphi 0, %s126
    %s128 = sphi 0, %s126
    %s129 = sphi 0, %s128
    %s143 = sphi 0, %s129
    %s147 = sphi 0, %s147
    %s149 = sphi 0, %s147
    %s150 = sphi 0, %s149
    %s164 = sphi 0, %s150
    %s168 = sphi 0, %s168
    %s170 = sphi 0, %s168
    %s171 = sphi 0, %s170
    %s185 = sphi 0, %s171
    %s189 = sphi 0, %s189
    %s191 = sphi 0, %s189
    %s192 = sphi 0, %s191
    %s206 = sphi 0, %s192
    %s210 = sphi 0, %s210
    %s212 = sphi 0, %s210
    %s213 = sphi 0, %s212
    %s227 = sphi 0, %s213
    %s231 = sphi 0, %s231
    %s233 = sphi 0, %s231
    %s234 = sphi 0, %s233
    %s248 = sphi 0, %s234
    %s252 = sphi 0, %s252
    %s254 = sphi 0, %s252
    %s255 = sphi 0, %s254
    %s269 = sphi 0, %s255
    %s273 = sphi 0, %s273
    %s275 = sphi 0, %s273
    %s276 = sphi 0, %s275
    %s290 = sphi 0, %s276
    %s294 = sphi 0, %s294
    %s296 = sphi 0, %s294
    %s297 = sphi 0, %s296
    %s311 = sphi 0, %s297
    %s317 = sphi 0, %s319
    %s320 = sphi 0, %s317
    %s321 = sphi 0, %s320
    %s337 = sphi 0, %s321
  $region4: #{retromae_forward.6} parent=0 // loop_header_branch
    %22 = sbr.rel (%p20) target = $region8
  $region5: #{retromae_forward.6} parent=0 // loop_body
    %s24 = ssub.s32 %s19, 1
    %s25 = ssub.s32 %s19, 2
    %s26 = sadd.s32 %s19, 1
    %s27 = ssub.s32 %s19, %s26
    %p28 = scmp.eq.s32.totalorder %s27, 0
    %s30 = sadd.s32 %s29, 1
    %s31 = scalar_select %p28, %s29, %s30
    %p34 = pneg %p28
    %p35 = scmp.eq.s32.totalorder %s19, 1
    %p36 = por %p34, %p35
    %p37 = scmp.ne.s32.totalorder %s29, %s32
    %p38 = scmp.eq.s32.totalorder %s19, 0
    %p39 = por %p37, %p38
    %p40 = scmp.ne.s32.totalorder %s29, %s32
    %p41 = scmp.eq.s32.totalorder %s24, 1
    %p42 = por %p40, %p41
    %p43 = scmp.ne.s32.totalorder %s32, %s33
    %p44 = scmp.eq.s32.totalorder %s24, 0
    %p45 = por %p43, %p44
    %p46 = scmp.ne.s32.totalorder %s32, %s33
    %p47 = scmp.eq.s32.totalorder %s25, 1
    %p48 = por %p46, %p47
    %p50 = scmp.ne.s32.totalorder %s33, %s49
    %p51 = scmp.eq.s32.totalorder %s25, 0
    %p52 = por %p50, %p51
    %s53 = ssub.s32 %s19, %s26
    %p54 = scmp.eq.s32.totalorder %s53, 0
    %s56 = sadd.s32 %s55, 1
    %s57 = scalar_select %p54, %s55, %s56
    %p60 = pneg %p54
    %p61 = scmp.eq.s32.totalorder %s19, 1
    %p62 = por %p60, %p61
    %p63 = scmp.ne.s32.totalorder %s55, %s58
    %p64 = scmp.eq.s32.totalorder %s19, 0
    %p65 = por %p63, %p64
    %p66 = scmp.ne.s32.totalorder %s55, %s58
    %p67 = scmp.eq.s32.totalorder %s24, 1
    %p68 = por %p66, %p67
    %p69 = scmp.ne.s32.totalorder %s58, %s59
    %p70 = scmp.eq.s32.totalorder %s24, 0
    %p71 = por %p69, %p70
    %p72 = scmp.ne.s32.totalorder %s58, %s59
    %p73 = scmp.eq.s32.totalorder %s25, 1
    %p74 = por %p72, %p73
    %p76 = scmp.ne.s32.totalorder %s59, %s75
    %p77 = scmp.eq.s32.totalorder %s25, 0
    %p78 = por %p76, %p77
    %s79 = ssub.s32 %s19, %s26
    %p80 = scmp.eq.s32.totalorder %s79, 0
    %s82 = sadd.s32 %s81, 1
    %s83 = scalar_select %p80, %s81, %s82
    %p86 = pneg %p80
    %p87 = scmp.eq.s32.totalorder %s19, 1
    %p88 = por %p86, %p87
    %p89 = scmp.ne.s32.totalorder %s81, %s84
    %p90 = scmp.eq.s32.totalorder %s19, 0
    %p91 = por %p89, %p90
    %p92 = scmp.ne.s32.totalorder %s81, %s84
    %p93 = scmp.eq.s32.totalorder %s24, 1
    %p94 = por %p92, %p93
    %p95 = scmp.ne.s32.totalorder %s84, %s85
    %p96 = scmp.eq.s32.totalorder %s24, 0
    %p97 = por %p95, %p96
    %p98 = scmp.ne.s32.totalorder %s84, %s85
    %p99 = scmp.eq.s32.totalorder %s25, 1
    %p100 = por %p98, %p99
    %p102 = scmp.ne.s32.totalorder %s85, %s101
    %p103 = scmp.eq.s32.totalorder %s25, 0
    %p104 = por %p102, %p103
    %s106 = sadd.s32 %s105, 1
    %p109 = scmp.eq.s32.totalorder %s19, 1
    %p110 = scmp.ne.s32.totalorder %s105, %s107
    %p111 = scmp.eq.s32.totalorder %s19, 0
    %p112 = por %p110, %p111
    %p113 = scmp.ne.s32.totalorder %s105, %s107
    %p114 = scmp.eq.s32.totalorder %s24, 1
    %p115 = por %p113, %p114
    %p116 = scmp.ne.s32.totalorder %s107, %s108
    %p117 = scmp.eq.s32.totalorder %s24, 0
    %p118 = por %p116, %p117
    %p119 = scmp.ne.s32.totalorder %s107, %s108
    %p120 = scmp.eq.s32.totalorder %s25, 1
    %p121 = por %p119, %p120
    %p123 = scmp.ne.s32.totalorder %s108, %s122
    %p124 = scmp.eq.s32.totalorder %s25, 0
    %p125 = por %p123, %p124
    %s127 = sadd.s32 %s126, 1
    %p130 = scmp.eq.s32.totalorder %s19, 1
    %p131 = scmp.ne.s32.totalorder %s126, %s128
    %p132 = scmp.eq.s32.totalorder %s19, 0
    %p133 = por %p131, %p132
    %p134 = scmp.ne.s32.totalorder %s126, %s128
    %p135 = scmp.eq.s32.totalorder %s24, 1
    %p136 = por %p134, %p135
    %p137 = scmp.ne.s32.totalorder %s128, %s129
    %p138 = scmp.eq.s32.totalorder %s24, 0
    %p139 = por %p137, %p138
    %p140 = scmp.ne.s32.totalorder %s128, %s129
    %p141 = scmp.eq.s32.totalorder %s25, 1
    %p142 = por %p140, %p141
    %p144 = scmp.ne.s32.totalorder %s129, %s143
    %p145 = scmp.eq.s32.totalorder %s25, 0
    %p146 = por %p144, %p145
    %s148 = sadd.s32 %s147, 1
    %p151 = scmp.eq.s32.totalorder %s19, 1
    %p152 = scmp.ne.s32.totalorder %s147, %s149
    %p153 = scmp.eq.s32.totalorder %s19, 0
    %p154 = por %p152, %p153
    %p155 = scmp.ne.s32.totalorder %s147, %s149
    %p156 = scmp.eq.s32.totalorder %s24, 1
    %p157 = por %p155, %p156
    %p158 = scmp.ne.s32.totalorder %s149, %s150
    %p159 = scmp.eq.s32.totalorder %s24, 0
    %p160 = por %p158, %p159
    %p161 = scmp.ne.s32.totalorder %s149, %s150
    %p162 = scmp.eq.s32.totalorder %s25, 1
    %p163 = por %p161, %p162
    %p165 = scmp.ne.s32.totalorder %s150, %s164
    %p166 = scmp.eq.s32.totalorder %s25, 0
    %p167 = por %p165, %p166
    %s169 = sadd.s32 %s168, 1
    %p172 = scmp.eq.s32.totalorder %s19, 1
    %p173 = scmp.ne.s32.totalorder %s168, %s170
    %p174 = scmp.eq.s32.totalorder %s19, 0
    %p175 = por %p173, %p174
    %p176 = scmp.ne.s32.totalorder %s168, %s170
    %p177 = scmp.eq.s32.totalorder %s24, 1
    %p178 = por %p176, %p177
    %p179 = scmp.ne.s32.totalorder %s170, %s171
    %p180 = scmp.eq.s32.totalorder %s24, 0
    %p181 = por %p179, %p180
    %p182 = scmp.ne.s32.totalorder %s170, %s171
    %p183 = scmp.eq.s32.totalorder %s25, 1
    %p184 = por %p182, %p183
    %p186 = scmp.ne.s32.totalorder %s171, %s185
    %p187 = scmp.eq.s32.totalorder %s25, 0
    %p188 = por %p186, %p187
    %s190 = sadd.s32 %s189, 1
    %p193 = scmp.eq.s32.totalorder %s19, 1
    %p194 = scmp.ne.s32.totalorder %s189, %s191
    %p195 = scmp.eq.s32.totalorder %s19, 0
    %p196 = por %p194, %p195
    %p197 = scmp.ne.s32.totalorder %s189, %s191
    %p198 = scmp.eq.s32.totalorder %s24, 1
    %p199 = por %p197, %p198
    %p200 = scmp.ne.s32.totalorder %s191, %s192
    %p201 = scmp.eq.s32.totalorder %s24, 0
    %p202 = por %p200, %p201
    %p203 = scmp.ne.s32.totalorder %s191, %s192
    %p204 = scmp.eq.s32.totalorder %s25, 1
    %p205 = por %p203, %p204
    %p207 = scmp.ne.s32.totalorder %s192, %s206
    %p208 = scmp.eq.s32.totalorder %s25, 0
    %p209 = por %p207, %p208
    %s211 = sadd.s32 %s210, 1
    %p214 = scmp.eq.s32.totalorder %s19, 1
    %p215 = scmp.ne.s32.totalorder %s210, %s212
    %p216 = scmp.eq.s32.totalorder %s19, 0
    %p217 = por %p215, %p216
    %p218 = scmp.ne.s32.totalorder %s210, %s212
    %p219 = scmp.eq.s32.totalorder %s24, 1
    %p220 = por %p218, %p219
    %p221 = scmp.ne.s32.totalorder %s212, %s213
    %p222 = scmp.eq.s32.totalorder %s24, 0
    %p223 = por %p221, %p222
    %p224 = scmp.ne.s32.totalorder %s212, %s213
    %p225 = scmp.eq.s32.totalorder %s25, 1
    %p226 = por %p224, %p225
    %p228 = scmp.ne.s32.totalorder %s213, %s227
    %p229 = scmp.eq.s32.totalorder %s25, 0
    %p230 = por %p228, %p229
    %s232 = sadd.s32 %s231, 1
    %p235 = scmp.eq.s32.totalorder %s19, 1
    %p236 = scmp.ne.s32.totalorder %s231, %s233
    %p237 = scmp.eq.s32.totalorder %s19, 0
    %p238 = por %p236, %p237
    %p239 = scmp.ne.s32.totalorder %s231, %s233
    %p240 = scmp.eq.s32.totalorder %s24, 1
    %p241 = por %p239, %p240
    %p242 = scmp.ne.s32.totalorder %s233, %s234
    %p243 = scmp.eq.s32.totalorder %s24, 0
    %p244 = por %p242, %p243
    %p245 = scmp.ne.s32.totalorder %s233, %s234
    %p246 = scmp.eq.s32.totalorder %s25, 1
    %p247 = por %p245, %p246
    %p249 = scmp.ne.s32.totalorder %s234, %s248
    %p250 = scmp.eq.s32.totalorder %s25, 0
    %p251 = por %p249, %p250
    %s253 = sadd.s32 %s252, 1
    %p256 = scmp.eq.s32.totalorder %s19, 1
    %p257 = scmp.ne.s32.totalorder %s252, %s254
    %p258 = scmp.eq.s32.totalorder %s19, 0
    %p259 = por %p257, %p258
    %p260 = scmp.ne.s32.totalorder %s252, %s254
    %p261 = scmp.eq.s32.totalorder %s24, 1
    %p262 = por %p260, %p261
    %p263 = scmp.ne.s32.totalorder %s254, %s255
    %p264 = scmp.eq.s32.totalorder %s24, 0
    %p265 = por %p263, %p264
    %p266 = scmp.ne.s32.totalorder %s254, %s255
    %p267 = scmp.eq.s32.totalorder %s25, 1
    %p268 = por %p266, %p267
    %p270 = scmp.ne.s32.totalorder %s255, %s269
    %p271 = scmp.eq.s32.totalorder %s25, 0
    %p272 = por %p270, %p271
    %s274 = sadd.s32 %s273, 1
    %p277 = scmp.eq.s32.totalorder %s19, 1
    %p278 = scmp.ne.s32.totalorder %s273, %s275
    %p279 = scmp.eq.s32.totalorder %s19, 0
    %p280 = por %p278, %p279
    %p281 = scmp.ne.s32.totalorder %s273, %s275
    %p282 = scmp.eq.s32.totalorder %s24, 1
    %p283 = por %p281, %p282
    %p284 = scmp.ne.s32.totalorder %s275, %s276
    %p285 = scmp.eq.s32.totalorder %s24, 0
    %p286 = por %p284, %p285
    %p287 = scmp.ne.s32.totalorder %s275, %s276
    %p288 = scmp.eq.s32.totalorder %s25, 1
    %p289 = por %p287, %p288
    %p291 = scmp.ne.s32.totalorder %s276, %s290
    %p292 = scmp.eq.s32.totalorder %s25, 0
    %p293 = por %p291, %p292
    %s295 = sadd.s32 %s294, 1
    %p298 = scmp.eq.s32.totalorder %s19, 1
    %p299 = scmp.ne.s32.totalorder %s294, %s296
    %p300 = scmp.eq.s32.totalorder %s19, 0
    %p301 = por %p299, %p300
    %p302 = scmp.ne.s32.totalorder %s294, %s296
    %p303 = scmp.eq.s32.totalorder %s24, 1
    %p304 = por %p302, %p303
    %p305 = scmp.ne.s32.totalorder %s296, %s297
    %p306 = scmp.eq.s32.totalorder %s24, 0
    %p307 = por %p305, %p306
    %p308 = scmp.ne.s32.totalorder %s296, %s297
    %p309 = scmp.eq.s32.totalorder %s25, 1
    %p310 = por %p308, %p309
    %p312 = scmp.ne.s32.totalorder %s297, %s311
    %p313 = scmp.eq.s32.totalorder %s25, 0
    %p314 = por %p312, %p313
    %s315 = ssub.s32 %s19, %s26
    %p316 = scmp.eq.s32.totalorder %s315, 0
    %s318 = sadd.s32 %s317, 1
    %s319 = scalar_select %p316, %s317, %s318
    %p322 = pneg %p316
    %p323 = scmp.eq.s32.totalorder %s19, 1
    %p324 = por %p322, %p323
    %p325 = scmp.ne.s32.totalorder %s317, %s320
    %p326 = scmp.eq.s32.totalorder %s19, 0
    %p327 = por %p325, %p326
    %p328 = scmp.ne.s32.totalorder %s317, %s320
    %p329 = scmp.eq.s32.totalorder %s24, 1
    %p330 = por %p328, %p329
    %p331 = scmp.ne.s32.totalorder %s320, %s321
    %p332 = scmp.eq.s32.totalorder %s24, 0
    %p333 = por %p331, %p332
    %p334 = scmp.ne.s32.totalorder %s320, %s321
    %p335 = scmp.eq.s32.totalorder %s25, 1
    %p336 = por %p334, %p335
    %p338 = scmp.ne.s32.totalorder %s321, %s337
    %p339 = scmp.eq.s32.totalorder %s25, 0
    %p340 = por %p338, %p339
    %p341 = scmp.le.s32.totalorder 1, %s19
    %p342 = scmp.lt.s32.totalorder %s19, 3
    %p343 = pnand %p341, %p342
    %p344 = pneg %p343
    // Predicated region
    $region9: #{retromae_forward.6} parent=5 // pred_check
      _
    $region10: #{retromae_forward.6} parent=5 // pred_check_branch
      %346 = sbr.rel (%p343) target = $region12
    $region11: #{retromae_forward.6} parent=5 // pred_region
      %s347 = ssub.s32 %s19, 1
      // Predicated region
      $region13: #{retromae_forward.6} parent=11 // pred_check
        %p348 = pneg %p118
      $region14: #{retromae_forward.6} parent=11 // pred_check_branch
        %350 = sbr.rel (%p348) target = $region16
      $region15: #{retromae_forward.6} parent=11 // pred_region
        _
      $region16: #{retromae_forward.6} parent=11 // pred_fallthru
        _
      // Predicated region
      $region17: #{retromae_forward.6} parent=11 // pred_check
        %p351 = pneg %p139
      $region18: #{retromae_forward.6} parent=11 // pred_check_branch
        %353 = sbr.rel (%p351) target = $region20
      $region19: #{retromae_forward.6} parent=11 // pred_region
        _
      $region20: #{retromae_forward.6} parent=11 // pred_fallthru
        _
      // Predicated region
      $region21: #{retromae_forward.6} parent=11 // pred_check
        %p354 = pneg %p160
      $region22: #{retromae_forward.6} parent=11 // pred_check_branch
        %356 = sbr.rel (%p354) target = $region24
      $region23: #{retromae_forward.6} parent=11 // pred_region
        _
      $region24: #{retromae_forward.6} parent=11 // pred_fallthru
        _
      // Predicated region
      $region25: #{retromae_forward.6} parent=11 // pred_check
        %p357 = pneg %p181
      $region26: #{retromae_forward.6} parent=11 // pred_check_branch
        %359 = sbr.rel (%p357) target = $region28
      $region27: #{retromae_forward.6} parent=11 // pred_region
        _
      $region28: #{retromae_forward.6} parent=11 // pred_fallthru
        _
      // Predicated region
      $region29: #{retromae_forward.6} parent=11 // pred_check
        %p360 = pneg %p202
      $region30: #{retromae_forward.6} parent=11 // pred_check_branch
        %362 = sbr.rel (%p360) target = $region32
      $region31: #{retromae_forward.6} parent=11 // pred_region
        _
      $region32: #{retromae_forward.6} parent=11 // pred_fallthru
        _
      // Predicated region
      $region33: #{retromae_forward.6} parent=11 // pred_check
        %p363 = pneg %p223
      $region34: #{retromae_forward.6} parent=11 // pred_check_branch
        %365 = sbr.rel (%p363) target = $region36
      $region35: #{retromae_forward.6} parent=11 // pred_region
        _
      $region36: #{retromae_forward.6} parent=11 // pred_fallthru
        _
      // Predicated region
      $region37: #{retromae_forward.6} parent=11 // pred_check
        %p366 = pneg %p244
      $region38: #{retromae_forward.6} parent=11 // pred_check_branch
        %368 = sbr.rel (%p366) target = $region40
      $region39: #{retromae_forward.6} parent=11 // pred_region
        _
      $region40: #{retromae_forward.6} parent=11 // pred_fallthru
        _
      // Predicated region
      $region41: #{retromae_forward.6} parent=11 // pred_check
        %p369 = pneg %p265
      $region42: #{retromae_forward.6} parent=11 // pred_check_branch
        %371 = sbr.rel (%p369) target = $region44
      $region43: #{retromae_forward.6} parent=11 // pred_region
        _
      $region44: #{retromae_forward.6} parent=11 // pred_fallthru
        _
      // Predicated region
      $region45: #{retromae_forward.6} parent=11 // pred_check
        %p372 = pneg %p286
      $region46: #{retromae_forward.6} parent=11 // pred_check_branch
        %374 = sbr.rel (%p372) target = $region48
      $region47: #{retromae_forward.6} parent=11 // pred_region
        _
      $region48: #{retromae_forward.6} parent=11 // pred_fallthru
        _
      // Predicated region
      $region49: #{retromae_forward.6} parent=11 // pred_check
        %p375 = pneg %p307
      $region50: #{retromae_forward.6} parent=11 // pred_check_branch
        %377 = sbr.rel (%p375) target = $region52
      $region51: #{retromae_forward.6} parent=11 // pred_region
        _
      $region52: #{retromae_forward.6} parent=11 // pred_fallthru
        _
    $region12: #{retromae_forward.6} parent=5 // pred_fallthru
      _
    %p378 = scmp.lt.s32.totalorder %s19, 2
    // Predicated region
    $region53: #{retromae_forward.6} parent=5 // pred_check
      %p379 = pneg %p378
    $region54: #{retromae_forward.6} parent=5 // pred_check_branch
      %381 = sbr.rel (%p379) target = $region56
    $region55: #{retromae_forward.6} parent=5 // pred_region
      // Predicated region
      $region57: #{retromae_forward.6} parent=55 // pred_check
        %p382 = pneg %p39
      $region58: #{retromae_forward.6} parent=55 // pred_check_branch
        %384 = sbr.rel (%p382) target = $region60
      $region59: #{retromae_forward.6} parent=55 // pred_region
        %p385 = scmp.lt.s32.totalorder %s19, 1
        %s386 = scalar_select %p385, %s19, 1
        %s387 = smul.addr %s386, 8
        %s388 = scalar_lea.vmem %s0, %s387
      $region60: #{retromae_forward.6} parent=55 // pred_fallthru
        _
      // Predicated region
      $region61: #{retromae_forward.6} parent=55 // pred_check
        %p389 = pneg %p65
      $region62: #{retromae_forward.6} parent=55 // pred_check_branch
        %391 = sbr.rel (%p389) target = $region64
      $region63: #{retromae_forward.6} parent=55 // pred_region
        %p392 = scmp.lt.s32.totalorder %s19, 1
        %s393 = scalar_select %p392, %s19, 1
        %s394 = smul.addr %s393, 8
        %s395 = scalar_lea.vmem %s1, %s394
      $region64: #{retromae_forward.6} parent=55 // pred_fallthru
        _
      // Predicated region
      $region65: #{retromae_forward.6} parent=55 // pred_check
        %p396 = pneg %p91
      $region66: #{retromae_forward.6} parent=55 // pred_check_branch
        %398 = sbr.rel (%p396) target = $region68
      $region67: #{retromae_forward.6} parent=55 // pred_region
        %p399 = scmp.lt.s32.totalorder %s19, 1
        %s400 = scalar_select %p399, %s19, 1
        %s401 = scalar_lea.vmem %s2, %s400
      $region68: #{retromae_forward.6} parent=55 // pred_fallthru
        _
    $region56: #{retromae_forward.6} parent=5 // pred_fallthru
      _
    %p402 = scmp.le.s32.totalorder 1, %s19
    %p403 = scmp.lt.s32.totalorder %s19, 3
    %p404 = pnand %p402, %p403
    %p405 = pneg %p404
    // Predicated region
    $region69: #{retromae_forward.6} parent=5 // pred_check
      _
    $region70: #{retromae_forward.6} parent=5 // pred_check_branch
      %407 = sbr.rel (%p404) target = $region72
    $region71: #{retromae_forward.6} parent=5 // pred_region
      %s408 = ssub.s32 %s19, 1
      %p409 = scmp.lt.s32.totalorder %s24, 1
      %s410 = scalar_select %p409, %s24, 1
      %s411 = smul.addr %s410, 8
      %s412 = scalar_lea.vmem %s0, %s411
      %p413 = pneg %p45
      %p414 = pneg %p42
      %p415 = scmp.lt.s32.totalorder %s24, 1
      %s416 = scalar_select %p415, %s24, 1
      %s417 = smul.addr %s416, 8
      %s418 = scalar_lea.vmem %s1, %s417
      %p419 = pneg %p71
      %p420 = pneg %p68
      %p421 = scmp.lt.s32.totalorder %s24, 1
      %s422 = scalar_select %p421, %s24, 1
      %s423 = scalar_lea.vmem %s2, %s422
      %p424 = pneg %p97
      %p425 = pneg %p94
      %p426 = pneg %p118
      %p427 = pneg %p115
      %p428 = pneg %p139
      %p429 = pneg %p136
      %p430 = pneg %p160
      %p431 = pneg %p157
      %p432 = pneg %p181
      %p433 = pneg %p178
      %p434 = pneg %p202
      %p435 = pneg %p199
      %p436 = pneg %p223
      %p437 = pneg %p220
      %p438 = pneg %p244
      %p439 = pneg %p241
      %p440 = pneg %p265
      %p441 = pneg %p262
      %p442 = pneg %p286
      %p443 = pneg %p283
      %p444 = pneg %p307
      %p445 = pneg %p304
      %p446 = pneg %p333
      %p447 = pneg %p330
      %p448 = scmp.lt.s32.totalorder %s24, 1
      %s449 = scalar_select %p448, %s24, 1
      %s450 = smul.addr %s449, 8
      %s451 = scalar_lea.vmem %s13, %s450
      %p452 = scmp.lt.s32.totalorder %s24, 1
      %s453 = scalar_select %p452, %s24, 1
      %s454 = smul.addr %s453, 8
      %s455 = scalar_lea.vmem %s0, %s454
      %p456 = scmp.lt.s32.totalorder %s24, 1
      %s457 = scalar_select %p456, %s24, 1
      %s458 = smul.addr %s457, 8
      %s459 = scalar_lea.vmem %s1, %s458
      %p460 = scmp.lt.s32.totalorder %s24, 1
      %s461 = scalar_select %p460, %s24, 1
      %s462 = scalar_lea.vmem %s2, %s461
      %p463 = scmp.lt.s32.totalorder %s24, 1
      %s464 = scalar_select %p463, %s24, 1
      %s465 = smul.addr %s464, 8
      %s466 = scalar_lea.vmem %s13, %s465
      %v467 = vld [vmem:[%s455] sm:$0xff]
      %v468 = vld [vmem:[%s459] sm:$0xff]
      %v469 = vld [vmem:[%s462] sm:$0x1]
      %v470 = vld [vmem:[%s3] sm:$0xff]
      %v471 = vld [vmem:[%s3 + $0x8] sm:$0xff]
      %v472 = vld [vmem:[%s3 + $0x10] sm:$0xff]
      %v473 = vld [vmem:[%s3 + $0x18] sm:$0xff]
      %v474 = vld [vmem:[%s4] sm:$0x1]
      %v475 = vld [vmem:[%s5] sm:$0xff]
      %v476 = vld [vmem:[%s5 + $0x8] sm:$0xff]
      %v477 = vld [vmem:[%s5 + $0x10] sm:$0xff]
      %v478 = vld [vmem:[%s5 + $0x18] sm:$0xff]
      %v479 = vld [vmem:[%s6] sm:$0x1]
      %v480 = vld [vmem:[%s7] sm:$0x3]
      %v481 = vld [vmem:[%s8] sm:$0xff]
      %v482 = vld [vmem:[%s8 + $0x8] sm:$0xff]
      %v483 = vld [vmem:[%s8 + $0x10] sm:$0xff]
      %v484 = vld [vmem:[%s8 + $0x18] sm:$0xff]
      %v485 = vld [vmem:[%s9] sm:$0x1]
      %v486 = vld [vmem:[%s10] sm:$0xff]
      %v487 = vld [vmem:[%s10 + $0x8] sm:$0xff]
      %v488 = vld [vmem:[%s10 + $0x10] sm:$0xff]
      %v489 = vld [vmem:[%s10 + $0x18] sm:$0xff]
      %v490 = vld [vmem:[%s10 + $0x20] sm:$0xff]
      %v491 = vld [vmem:[%s10 + $0x28] sm:$0xff]
      %v492 = vld [vmem:[%s10 + $0x30] sm:$0xff]
      %v493 = vld [vmem:[%s10 + $0x38] sm:$0xff]
      %v494 = vld [vmem:[%s11] sm:$0x1]
      %v495 = vld [vmem:[%s12] sm:$0x3]
      %v497 = vperm.slane %v474, 0
      %vm499 = vcmask 261120
      %v501 = vsel %vm499, %v467, 0
      %503 = vmatpush.msra.mxu0 0.0
      %504 = vmatpush.msra.mxu0 0.0
      %505 = vmatpush.msra.mxu0 0.0
      %506 = vmatpush.msra.mxu0 0.0
      %507 = vmatpush.msra.mxu0 0.0
      %508 = vmatpush.msra.mxu0 0.0
      %509 = vmatpush.msra.mxu0 0.0
      %510 = vmatpush.msra.mxu0 0.0
      %511 = vmatpush.msra.mxu0 0.0
      %512 = vmatpush.msra.mxu0 0.0
      %513 = vmatpush.msra.mxu0 0.0
      %514 = vmatpush.msra.mxu0 0.0
      %515 = vmatpush.msra.mxu0 %v473
      %516 = vmatpush.msra.mxu0 %v472
      %517 = vmatpush.msra.mxu0 %v471
      %518 = vmatpush.msra.mxu0 %v470
      %519 = vmatmul.f32.gmra.mxu0 %v501
      %v520 = vpop.f32.mrf.mxu0
      %v521 = vadd.f32 %v497, %v520
      %522 = vdwg.mxu0
      %v524 = vsel %vm499, %v468, 0
      %526 = vmatpush.msra.mxu0 0.0
      %527 = vmatpush.msra.mxu0 0.0
      %528 = vmatpush.msra.mxu0 0.0
      %529 = vmatpush.msra.mxu0 0.0
      %530 = vmatpush.msra.mxu0 0.0
      %531 = vmatpush.msra.mxu0 0.0
      %532 = vmatpush.msra.mxu0 0.0
      %533 = vmatpush.msra.mxu0 0.0
      %534 = vmatpush.msra.mxu0 0.0
      %535 = vmatpush.msra.mxu0 0.0
      %536 = vmatpush.msra.mxu0 0.0
      %537 = vmatpush.msra.mxu0 0.0
      %538 = vmatpush.msra.mxu0 %v473
      %539 = vmatpush.msra.mxu0 %v472
      %540 = vmatpush.msra.mxu0 %v471
      %541 = vmatpush.msra.mxu0 %v470
      %542 = vmatmul.f32.gmra.mxu0 %v524
      %v543 = vpop.f32.mrf.mxu0
      %v544 = vadd.f32 %v497, %v543
      %545 = vdwg.mxu0
      %547 = vrot.lane.b32.xlu0 %v544, 96
      %v548 = vpop.permute.xlu0 %547
      %vm549 = vcmask 64512
      %v551 = vsel %vm549, %v521, 0
      %v553 = vsel %vm549, %v548, 0
      %555 = vmatpush.xpose.msra.mxu0 0.0
      %556 = vmatpush.xpose.msra.mxu0 0.0
      %557 = vmatpush.xpose.msra.mxu0 0.0
      %558 = vmatpush.xpose.msra.mxu0 0.0
      %559 = vmatpush.xpose.msra.mxu0 0.0
      %560 = vmatpush.xpose.msra.mxu0 0.0
      %561 = vmatpush.xpose.msra.mxu0 0.0
      %562 = vmatpush.xpose.msra.mxu0 0.0
      %563 = vmatpush.xpose.msra.mxu0 0.0
      %564 = vmatpush.xpose.msra.mxu0 0.0
      %565 = vmatpush.xpose.msra.mxu0 0.0
      %566 = vmatpush.xpose.msra.mxu0 0.0
      %567 = vmatpush.xpose.msra.mxu0 0.0
      %568 = vmatpush.xpose.msra.mxu0 0.0
      %569 = vmatpush.xpose.msra.mxu0 0.0
      %570 = vmatpush.xpose.msra.mxu0 %v553
      %571 = vmatmul.f32.gmra.mxu0 %v551
      %v572 = vpop.f32.mrf.mxu0
      %v573 = vadd.f32 0.0, %v572
      %574 = vdwg.mxu0
      %v575 = vmul.f32 %v573, 0.35355338
      %v577 = vperm.slane %v469, 0
      %v579 = vadd.f32 %v575, %v577
      %v580 = vsel %vm549, %v579, -inf
      %581 = vmax.xlane.f32.xlu0 %v580
      %v582 = vpop.xlane.xlu0 %581
      %v583 = vsub.f32 %v579, %v582
      %v584 = vmul.f32 %v583, 1.442695
      %v585 = vpow.pop %v584
      %v586 = vsel %vm549, %v585, 0.0
      %587 = vadd.xlane.f32.xlu0 %v586
      %v588 = vpop.xlane.xlu0 %587
      %v589 = vrcp.pop %v588
      %v590 = vmul.f32 %v585, %v589
      %591 = vrot.lane.b32.xlu0 %v544, 64
      %v592 = vpop.permute.xlu0 %591
      %v595 = vsel %vm549, %v590, 0
      %597 = vmatpush.msra.mxu0 0.0
      %598 = vmatpush.msra.mxu0 0.0
      %599 = vmatpush.msra.mxu0 0.0
      %600 = vmatpush.msra.mxu0 0.0
      %601 = vmatpush.msra.mxu0 0.0
      %602 = vmatpush.msra.mxu0 0.0
      %603 = vmatpush.msra.mxu0 0.0
      %604 = vmatpush.msra.mxu0 0.0
      %605 = vmatpush.msra.mxu0 0.0
      %606 = vmatpush.msra.mxu0 0.0
      %607 = vmatpush.msra.mxu0 0.0
      %608 = vmatpush.msra.mxu0 0.0
      %609 = vmatpush.msra.mxu0 0.0
      %610 = vmatpush.msra.mxu0 0.0
      %611 = vmatpush.msra.mxu0 0.0
      %612 = vmatpush.msra.mxu0 %v592
      %613 = vmatmul.f32.gmra.mxu0 %v595
      %v614 = vpop.f32.mrf.mxu0
      %v615 = vadd.f32 0.0, %v614
      %616 = vdwg.mxu0
      %617 = vrot.lane.b32.xlu0 %v521, 120
      %v618 = vpop.permute.xlu0 %617
      %619 = vrot.lane.b32.xlu0 %v544, 88
      %v620 = vpop.permute.xlu0 %619
      %v621 = vsel %vm549, %v618, 0
      %v623 = vsel %vm549, %v620, 0
      %625 = vmatpush.xpose.msra.mxu0 0.0
      %626 = vmatpush.xpose.msra.mxu0 0.0
      %627 = vmatpush.xpose.msra.mxu0 0.0
      %628 = vmatpush.xpose.msra.mxu0 0.0
      %629 = vmatpush.xpose.msra.mxu0 0.0
      %630 = vmatpush.xpose.msra.mxu0 0.0
      %631 = vmatpush.xpose.msra.mxu0 0.0
      %632 = vmatpush.xpose.msra.mxu0 0.0
      %633 = vmatpush.xpose.msra.mxu0 0.0
      %634 = vmatpush.xpose.msra.mxu0 0.0
      %635 = vmatpush.xpose.msra.mxu0 0.0
      %636 = vmatpush.xpose.msra.mxu0 0.0
      %637 = vmatpush.xpose.msra.mxu0 0.0
      %638 = vmatpush.xpose.msra.mxu0 0.0
      %639 = vmatpush.xpose.msra.mxu0 0.0
      %640 = vmatpush.xpose.msra.mxu0 %v623
      %641 = vmatmul.f32.gmra.mxu0 %v621
      %v642 = vpop.f32.mrf.mxu0
      %v643 = vadd.f32 0.0, %v642
      %644 = vdwg.mxu0
      %v645 = vmul.f32 %v643, 0.35355338
      %v646 = vadd.f32 %v645, %v577
      %v647 = vsel %vm549, %v646, -inf
      %648 = vmax.xlane.f32.xlu0 %v647
      %v649 = vpop.xlane.xlu0 %648
      %v650 = vsub.f32 %v646, %v649
      %v651 = vmul.f32 %v650, 1.442695
      %v652 = vpow.pop %v651
      %v653 = vsel %vm549, %v652, 0.0
      %654 = vadd.xlane.f32.xlu0 %v653
      %v655 = vpop.xlane.xlu0 %654
      %v656 = vrcp.pop %v655
      %v657 = vmul.f32 %v652, %v656
      %658 = vrot.lane.b32.xlu0 %v544, 56
      %v659 = vpop.permute.xlu0 %658
      %v662 = vsel %vm549, %v657, 0
      %664 = vmatpush.msra.mxu0 0.0
      %665 = vmatpush.msra.mxu0 0.0
      %666 = vmatpush.msra.mxu0 0.0
      %667 = vmatpush.msra.mxu0 0.0
      %668 = vmatpush.msra.mxu0 0.0
      %669 = vmatpush.msra.mxu0 0.0
      %670 = vmatpush.msra.mxu0 0.0
      %671 = vmatpush.msra.mxu0 0.0
      %672 = vmatpush.msra.mxu0 0.0
      %673 = vmatpush.msra.mxu0 0.0
      %674 = vmatpush.msra.mxu0 0.0
      %675 = vmatpush.msra.mxu0 0.0
      %676 = vmatpush.msra.mxu0 0.0
      %677 = vmatpush.msra.mxu0 0.0
      %678 = vmatpush.msra.mxu0 0.0
      %679 = vmatpush.msra.mxu0 %v659
      %680 = vmatmul.f32.gmra.mxu0 %v662
      %v681 = vpop.f32.mrf.mxu0
      %v682 = vadd.f32 0.0, %v681
      %683 = vdwg.mxu0
      %v685 = vsel %vm549, %v682, 0
      %687 = vmatpush.msra.mxu0 0.0
      %688 = vmatpush.msra.mxu0 0.0
      %689 = vmatpush.msra.mxu0 0.0
      %690 = vmatpush.msra.mxu0 0.0
      %691 = vmatpush.msra.mxu0 0.0
      %692 = vmatpush.msra.mxu0 0.0
      %693 = vmatpush.msra.mxu0 0.0
      %694 = vmatpush.msra.mxu0 0.0
      %695 = vmatpush.msra.mxu0 0.0
      %696 = vmatpush.msra.mxu0 0.0
      %697 = vmatpush.msra.mxu0 0.0
      %698 = vmatpush.msra.mxu0 0.0
      %699 = vmatpush.msra.mxu0 0.0
      %700 = vmatpush.msra.mxu0 0.0
      %701 = vmatpush.msra.mxu0 0.0
      %702 = vmatpush.msra.mxu0 %v476
      %703 = vmatmul.f32.gmra.mxu0 %v685
      %v704 = vpop.f32.mrf.mxu0
      %v705 = vadd.f32 0.0, %v704
      %706 = vdwg.mxu0
      %v708 = vsel %vm549, %v615, 0
      %710 = vmatpush.msra.mxu0 0.0
      %711 = vmatpush.msra.mxu0 0.0
      %712 = vmatpush.msra.mxu0 0.0
      %713 = vmatpush.msra.mxu0 0.0
      %714 = vmatpush.msra.mxu0 0.0
      %715 = vmatpush.msra.mxu0 0.0
      %716 = vmatpush.msra.mxu0 0.0
      %717 = vmatpush.msra.mxu0 0.0
      %718 = vmatpush.msra.mxu0 0.0
      %719 = vmatpush.msra.mxu0 0.0
      %720 = vmatpush.msra.mxu0 0.0
      %721 = vmatpush.msra.mxu0 0.0
      %722 = vmatpush.msra.mxu0 0.0
      %723 = vmatpush.msra.mxu0 0.0
      %724 = vmatpush.msra.mxu0 0.0
      %725 = vmatpush.msra.mxu0 %v475
      %726 = vmatmul.f32.gmra.mxu0 %v708
      %v727 = vpop.f32.mrf.mxu0
      %v728 = vadd.f32 %v705, %v727
      %729 = vdwg.mxu0
      %730 = vrot.lane.b32.xlu0 %v521, 112
      %v731 = vpop.permute.xlu0 %730
      %732 = vrot.lane.b32.xlu0 %v544, 80
      %v733 = vpop.permute.xlu0 %732
      %v734 = vsel %vm549, %v731, 0
      %v736 = vsel %vm549, %v733, 0
      %738 = vmatpush.xpose.msra.mxu0 0.0
      %739 = vmatpush.xpose.msra.mxu0 0.0
      %740 = vmatpush.xpose.msra.mxu0 0.0
      %741 = vmatpush.xpose.msra.mxu0 0.0
      %742 = vmatpush.xpose.msra.mxu0 0.0
      %743 = vmatpush.xpose.msra.mxu0 0.0
      %744 = vmatpush.xpose.msra.mxu0 0.0
      %745 = vmatpush.xpose.msra.mxu0 0.0
      %746 = vmatpush.xpose.msra.mxu0 0.0
      %747 = vmatpush.xpose.msra.mxu0 0.0
      %748 = vmatpush.xpose.msra.mxu0 0.0
      %749 = vmatpush.xpose.msra.mxu0 0.0
      %750 = vmatpush.xpose.msra.mxu0 0.0
      %751 = vmatpush.xpose.msra.mxu0 0.0
      %752 = vmatpush.xpose.msra.mxu0 0.0
      %753 = vmatpush.xpose.msra.mxu0 %v736
      %754 = vmatmul.f32.gmra.mxu0 %v734
      %v755 = vpop.f32.mrf.mxu0
      %v756 = vadd.f32 0.0, %v755
      %757 = vdwg.mxu0
      %v758 = vmul.f32 %v756, 0.35355338
      %v759 = vadd.f32 %v758, %v577
      %v760 = vsel %vm549, %v759, -inf
      %761 = vmax.xlane.f32.xlu0 %v760
      %v762 = vpop.xlane.xlu0 %761
      %v763 = vsub.f32 %v759, %v762
      %v764 = vmul.f32 %v763, 1.442695
      %v765 = vpow.pop %v764
      %v766 = vsel %vm549, %v765, 0.0
      %767 = vadd.xlane.f32.xlu0 %v766
      %v768 = vpop.xlane.xlu0 %767
      %v769 = vrcp.pop %v768
      %v770 = vmul.f32 %v765, %v769
      %771 = vrot.lane.b32.xlu0 %v544, 48
      %v772 = vpop.permute.xlu0 %771
      %v775 = vsel %vm549, %v770, 0
      %777 = vmatpush.msra.mxu0 0.0
      %778 = vmatpush.msra.mxu0 0.0
      %779 = vmatpush.msra.mxu0 0.0
      %780 = vmatpush.msra.mxu0 0.0
      %781 = vmatpush.msra.mxu0 0.0
      %782 = vmatpush.msra.mxu0 0.0
      %783 = vmatpush.msra.mxu0 0.0
      %784 = vmatpush.msra.mxu0 0.0
      %785 = vmatpush.msra.mxu0 0.0
      %786 = vmatpush.msra.mxu0 0.0
      %787 = vmatpush.msra.mxu0 0.0
      %788 = vmatpush.msra.mxu0 0.0
      %789 = vmatpush.msra.mxu0 0.0
      %790 = vmatpush.msra.mxu0 0.0
      %791 = vmatpush.msra.mxu0 0.0
      %792 = vmatpush.msra.mxu0 %v772
      %793 = vmatmul.f32.gmra.mxu0 %v775
      %v794 = vpop.f32.mrf.mxu0
      %v795 = vadd.f32 0.0, %v794
      %796 = vdwg.mxu0
      %v798 = vsel %vm549, %v795, 0
      %800 = vmatpush.msra.mxu0 0.0
      %801 = vmatpush.msra.mxu0 0.0
      %802 = vmatpush.msra.mxu0 0.0
      %803 = vmatpush.msra.mxu0 0.0
      %804 = vmatpush.msra.mxu0 0.0
      %805 = vmatpush.msra.mxu0 0.0
      %806 = vmatpush.msra.mxu0 0.0
      %807 = vmatpush.msra.mxu0 0.0
      %808 = vmatpush.msra.mxu0 0.0
      %809 = vmatpush.msra.mxu0 0.0
      %810 = vmatpush.msra.mxu0 0.0
      %811 = vmatpush.msra.mxu0 0.0
      %812 = vmatpush.msra.mxu0 0.0
      %813 = vmatpush.msra.mxu0 0.0
      %814 = vmatpush.msra.mxu0 0.0
      %815 = vmatpush.msra.mxu0 %v477
      %816 = vmatmul.f32.gmra.mxu0 %v798
      %v817 = vpop.f32.mrf.mxu0
      %v818 = vadd.f32 0.0, %v817
      %819 = vdwg.mxu0
      %v820 = vadd.f32 %v728, %v818
      %821 = vrot.lane.b32.xlu0 %v521, 104
      %v822 = vpop.permute.xlu0 %821
      %823 = vrot.lane.b32.xlu0 %v544, 72
      %v824 = vpop.permute.xlu0 %823
      %v825 = vsel %vm549, %v822, 0
      %v827 = vsel %vm549, %v824, 0
      %829 = vmatpush.xpose.msra.mxu0 0.0
      %830 = vmatpush.xpose.msra.mxu0 0.0
      %831 = vmatpush.xpose.msra.mxu0 0.0
      %832 = vmatpush.xpose.msra.mxu0 0.0
      %833 = vmatpush.xpose.msra.mxu0 0.0
      %834 = vmatpush.xpose.msra.mxu0 0.0
      %835 = vmatpush.xpose.msra.mxu0 0.0
      %836 = vmatpush.xpose.msra.mxu0 0.0
      %837 = vmatpush.xpose.msra.mxu0 0.0
      %838 = vmatpush.xpose.msra.mxu0 0.0
      %839 = vmatpush.xpose.msra.mxu0 0.0
      %840 = vmatpush.xpose.msra.mxu0 0.0
      %841 = vmatpush.xpose.msra.mxu0 0.0
      %842 = vmatpush.xpose.msra.mxu0 0.0
      %843 = vmatpush.xpose.msra.mxu0 0.0
      %844 = vmatpush.xpose.msra.mxu0 %v827
      %845 = vmatmul.f32.gmra.mxu0 %v825
      %v846 = vpop.f32.mrf.mxu0
      %v847 = vadd.f32 0.0, %v846
      %848 = vdwg.mxu0
      %v849 = vmul.f32 %v847, 0.35355338
      %v850 = vadd.f32 %v849, %v577
      %v851 = vsel %vm549, %v850, -inf
      %852 = vmax.xlane.f32.xlu0 %v851
      %v853 = vpop.xlane.xlu0 %852
      %v854 = vsub.f32 %v850, %v853
      %v855 = vmul.f32 %v854, 1.442695
      %v856 = vpow.pop %v855
      %v857 = vsel %vm549, %v856, 0.0
      %858 = vadd.xlane.f32.xlu0 %v857
      %v859 = vpop.xlane.xlu0 %858
      %v860 = vrcp.pop %v859
      %v861 = vmul.f32 %v856, %v860
      %862 = vrot.lane.b32.xlu0 %v544, 40
      %v863 = vpop.permute.xlu0 %862
      %v866 = vsel %vm549, %v861, 0
      %868 = vmatpush.msra.mxu0 0.0
      %869 = vmatpush.msra.mxu0 0.0
      %870 = vmatpush.msra.mxu0 0.0
      %871 = vmatpush.msra.mxu0 0.0
      %872 = vmatpush.msra.mxu0 0.0
      %873 = vmatpush.msra.mxu0 0.0
      %874 = vmatpush.msra.mxu0 0.0
      %875 = vmatpush.msra.mxu0 0.0
      %876 = vmatpush.msra.mxu0 0.0
      %877 = vmatpush.msra.mxu0 0.0
      %878 = vmatpush.msra.mxu0 0.0
      %879 = vmatpush.msra.mxu0 0.0
      %880 = vmatpush.msra.mxu0 0.0
      %881 = vmatpush.msra.mxu0 0.0
      %882 = vmatpush.msra.mxu0 0.0
      %883 = vmatpush.msra.mxu0 %v863
      %884 = vmatmul.f32.gmra.mxu0 %v866
      %v885 = vpop.f32.mrf.mxu0
      %v886 = vadd.f32 0.0, %v885
      %887 = vdwg.mxu0
      %v889 = vsel %vm549, %v886, 0
      %891 = vmatpush.msra.mxu0 0.0
      %892 = vmatpush.msra.mxu0 0.0
      %893 = vmatpush.msra.mxu0 0.0
      %894 = vmatpush.msra.mxu0 0.0
      %895 = vmatpush.msra.mxu0 0.0
      %896 = vmatpush.msra.mxu0 0.0
      %897 = vmatpush.msra.mxu0 0.0
      %898 = vmatpush.msra.mxu0 0.0
      %899 = vmatpush.msra.mxu0 0.0
      %900 = vmatpush.msra.mxu0 0.0
      %901 = vmatpush.msra.mxu0 0.0
      %902 = vmatpush.msra.mxu0 0.0
      %903 = vmatpush.msra.mxu0 0.0
      %904 = vmatpush.msra.mxu0 0.0
      %905 = vmatpush.msra.mxu0 0.0
      %906 = vmatpush.msra.mxu0 %v478
      %907 = vmatmul.f32.gmra.mxu0 %v889
      %v908 = vpop.f32.mrf.mxu0
      %v909 = vadd.f32 0.0, %v908
      %910 = vdwg.mxu0
      %v911 = vadd.f32 %v820, %v909
      %v913 = vperm.slane %v479, 0
      %v915 = vadd.f32 %v911, %v913
      %v916 = vadd.f32 %v915, %v467
      %v917 = vsel %vm499, %v916, 0.0
      %918 = vadd.xlane.f32.xlu0 %v917
      %v919 = vpop.xlane.xlu0 %918
      %v920 = vrcp.pop 32.0
      %v921 = vmul.f32 32.0, %v920
      %v922 = vsub.f32 1.0, %v921
      %v923 = vmul.f32 %v920, %v922
      %v924 = vadd.f32 %v920, %v923
      %vm925 = vweird.f32 %v920
      %v926 = vsel %vm925, %v920, %v924
      %v927 = vmul.f32 %v919, %v926
      %v928 = vsub.f32 %v916, %v927
      %v929 = vmul.f32 %v928, %v928
      %v930 = vsel %vm499, %v929, 0.0
      %931 = vadd.xlane.f32.xlu0 %v930
      %v932 = vpop.xlane.xlu0 %931
      %v933 = vmul.f32 %v932, %v926
      %v934 = vadd.f32 %v933, 1e-12
      %v935 = vrsqrt.pop %v934
      %v936 = vmul.f32 %v935, %v934
      %v937 = vmul.f32 %v936, %v935
      %v938 = vmul.f32 0.5, %v937
      %v939 = vsub.f32 1.5, %v938
      %v940 = vmul.f32 %v935, %v939
      %vm941 = vweird.f32 %v934
      %vm942 = vweird.f32 %v935
      %vm943 = vmor %vm941, %vm942
      %v944 = vsel %vm943, %v935, %v940
      %v945 = vmul.f32 %v928, %v944
      %v946 = vperm.slane %v480, 0
      %v947 = vmul.f32 %v945, %v946
      %v948 = vperm.slane %v480, 1
      %v949 = vadd.f32 %v947, %v948
      %v951 = vperm.slane %v485, 0
      %v954 = vsel %vm499, %v949, 0
      %956 = vmatpush.msra.mxu0 0.0
      %957 = vmatpush.msra.mxu0 0.0
      %958 = vmatpush.msra.mxu0 0.0
      %959 = vmatpush.msra.mxu0 0.0
      %960 = vmatpush.msra.mxu0 0.0
      %961 = vmatpush.msra.mxu0 0.0
      %962 = vmatpush.msra.mxu0 0.0
      %963 = vmatpush.msra.mxu0 0.0
      %964 = vmatpush.msra.mxu0 0.0
      %965 = vmatpush.msra.mxu0 0.0
      %966 = vmatpush.msra.mxu0 0.0
      %967 = vmatpush.msra.mxu0 0.0
      %968 = vmatpush.msra.mxu0 %v484
      %969 = vmatpush.msra.mxu0 %v483
      %970 = vmatpush.msra.mxu0 %v482
      %971 = vmatpush.msra.mxu0 %v481
      %972 = vmatmul.f32.gmra.mxu0 %v954
      %v973 = vpop.f32.mrf.mxu0
      %v974 = vadd.f32 %v951, %v973
      %975 = vdwg.mxu0
      %v976 = vmul.f32 %v974, 0.5
      %v977 = vmul.f32 %v974, 0.044715
      %v978 = vmul.f32 %v977, %v974
      %v979 = vmul.f32 %v978, %v974
      %v980 = vadd.f32 %v974, %v979
      %v981 = vmul.f32 %v980, 0.7978846
      %v982 = vtanh.pop %v981
      %v983 = vadd.f32 %v982, 1.0
      %v984 = vmul.f32 %v976, %v983
      %v986 = vperm.slane %v494, 0
      %vm988 = vcmask 523264
      %v990 = vsel %vm988, %v984, 0
      %992 = vmatpush.msra.mxu0 0.0
      %993 = vmatpush.msra.mxu0 0.0
      %994 = vmatpush.msra.mxu0 0.0
      %995 = vmatpush.msra.mxu0 0.0
      %996 = vmatpush.msra.mxu0 0.0
      %997 = vmatpush.msra.mxu0 0.0
      %998 = vmatpush.msra.mxu0 0.0
      %999 = vmatpush.msra.mxu0 0.0
      %1000 = vmatpush.msra.mxu0 %v493
      %1001 = vmatpush.msra.mxu0 %v492
      %1002 = vmatpush.msra.mxu0 %v491
      %1003 = vmatpush.msra.mxu0 %v490
      %1004 = vmatpush.msra.mxu0 %v489
      %1005 = vmatpush.msra.mxu0 %v488
      %1006 = vmatpush.msra.mxu0 %v487
      %1007 = vmatpush.msra.mxu0 %v486
      %1008 = vmatmul.f32.gmra.mxu0 %v990
      %v1009 = vpop.f32.mrf.mxu0
      %v1010 = vadd.f32 %v986, %v1009
      %1011 = vdwg.mxu0
      %v1012 = vadd.f32 %v1010, %v949
      %v1013 = vsel %vm499, %v1012, 0.0
      %1014 = vadd.xlane.f32.xlu0 %v1013
      %v1015 = vpop.xlane.xlu0 %1014
      %v1016 = vmul.f32 %v1015, %v926
      %v1017 = vsub.f32 %v1012, %v1016
      %v1018 = vmul.f32 %v1017, %v1017
      %v1019 = vsel %vm499, %v1018, 0.0
      %1020 = vadd.xlane.f32.xlu0 %v1019
      %v1021 = vpop.xlane.xlu0 %1020
      %v1022 = vmul.f32 %v1021, %v926
      %v1023 = vadd.f32 %v1022, 1e-12
      %v1024 = vrsqrt.pop %v1023
      %v1025 = vmul.f32 %v1024, %v1023
      %v1026 = vmul.f32 %v1025, %v1024
      %v1027 = vmul.f32 0.5, %v1026
      %v1028 = vsub.f32 1.5, %v1027
      %v1029 = vmul.f32 %v1024, %v1028
      %vm1030 = vweird.f32 %v1023
      %vm1031 = vweird.f32 %v1024
      %vm1032 = vmor %vm1030, %vm1031
      %v1033 = vsel %vm1032, %v1024, %v1029
      %v1034 = vmul.f32 %v1017, %v1033
      %v1035 = vperm.slane %v495, 0
      %v1036 = vmul.f32 %v1034, %v1035
      %v1037 = vperm.slane %v495, 1
      %v1038 = vadd.f32 %v1036, %v1037
      %1039 = vst.msk [vmem:[%s466] sm:$0xff] %vm499, %v1038
      %p1040 = scmp.lt.s32.totalorder %s24, 1
      %s1041 = scalar_select %p1040, %s24, 1
      %s1042 = smul.addr %s1041, 8
      %s1043 = scalar_lea.vmem %s13, %s1042
      // Predicated region
      $region73: #{retromae_forward.6} parent=71 // pred_check
        %p1044 = pneg %p330
      $region74: #{retromae_forward.6} parent=71 // pred_check_branch
        %1046 = sbr.rel (%p1044) target = $region76
      $region75: #{retromae_forward.6} parent=71 // pred_region
        _
      $region76: #{retromae_forward.6} parent=71 // pred_fallthru
        _
    $region72: #{retromae_forward.6} parent=5 // pred_fallthru
      _
    %p1047 = scmp.le.s32.totalorder 2, %s19
    // Predicated region
    $region77: #{retromae_forward.6} parent=5 // pred_check
      %p1048 = pneg %p1047
    $region78: #{retromae_forward.6} parent=5 // pred_check_branch
      %1050 = sbr.rel (%p1048) target = $region80
    $region79: #{retromae_forward.6} parent=5 // pred_region
      %s1051 = ssub.s32 %s19, 2
      // Predicated region
      $region81: #{retromae_forward.6} parent=79 // pred_check
        %p1052 = pneg %p336
      $region82: #{retromae_forward.6} parent=79 // pred_check_branch
        %1054 = sbr.rel (%p1052) target = $region84
      $region83: #{retromae_forward.6} parent=79 // pred_region
        %p1055 = scmp.lt.s32.totalorder %s25, 1
        %s1056 = scalar_select %p1055, %s25, 1
        %s1057 = smul.addr %s1056, 8
        %s1058 = scalar_lea.vmem %s13, %s1057
      $region84: #{retromae_forward.6} parent=79 // pred_fallthru
        _
    $region80: #{retromae_forward.6} parent=5 // pred_fallthru
      _
  $region6: #{retromae_forward.6} parent=0 // loop_footer
    %s23 = sadd.s32 1, %s19
  $region7: #{retromae_forward.6} parent=0 // loop_footer_branch
    %18 = sbr.rel target = $region3
  $region8: #{retromae_forward.6} parent=0 // loop_exit
    _

// kernel: retromae_forward.4
$region0: #{retromae_forward.4}
  #allocation0 [shape = 'u32[]', space=smem, size = 0x4, offset = 0x4, fixed_abs, tag = 'smem constant byte address 0x4 - core index']
  #allocation1 [shape = 'u32[72,128]{1,0:T(1,128)}', space=vmem, size = 0x9000, scoped, tag = 'internal scratch']
  %s0 = inlined_call_operand.vmem [shape: f32[2,8,32], index: 0, kind: input, shape index: {}]
  %s1 = inlined_call_operand.vmem [shape: f32[2,1,8], index: 1, kind: input, shape index: {}]
  %s2 = inlined_call_operand.vmem [shape: f32[8,32], index: 2, kind: input, shape index: {}]
  %s3 = inlined_call_operand.vmem [shape: f32[1,32], index: 3, kind: input, shape index: {}]
  %s4 = inlined_call_operand.vmem [shape: f32[2,32], index: 4, kind: input, shape index: {}]
  %s5 = inlined_call_operand.vmem [shape: f32[2,32,96], index: 5, kind: input, shape index: {}]
  %s6 = inlined_call_operand.vmem [shape: f32[2,1,96], index: 6, kind: input, shape index: {}]
  %s7 = inlined_call_operand.vmem [shape: f32[2,32,32], index: 7, kind: input, shape index: {}]
  %s8 = inlined_call_operand.vmem [shape: f32[2,1,32], index: 8, kind: input, shape index: {}]
  %s9 = inlined_call_operand.vmem [shape: f32[2,2,32], index: 9, kind: input, shape index: {}]
  %s10 = inlined_call_operand.vmem [shape: f32[2,32,64], index: 10, kind: input, shape index: {}]
  %s11 = inlined_call_operand.vmem [shape: f32[2,1,64], index: 11, kind: input, shape index: {}]
  %s12 = inlined_call_operand.vmem [shape: f32[2,64,32], index: 12, kind: input, shape index: {}]
  %s13 = inlined_call_operand.vmem [shape: f32[2,1,32], index: 13, kind: input, shape index: {}]
  %s14 = inlined_call_operand.vmem [shape: f32[2,2,32], index: 14, kind: input, shape index: {}]
  %s15 = inlined_call_operand.vmem [shape: f32[2,8,32], index: 15, kind: output, shape index: {}]
  %s16 = sld [smem:[#allocation0]]
  $region97: #{retromae_forward.4} parent=0
    _
  %s18 = ssub.s32 1, %s16
  %s19 = scalar_select 0, %s18, %s16
  loop: start=0, step=1, limit=6
  $region2: #{retromae_forward.4} parent=0 // loop_pre_header
    _
  $region3: #{retromae_forward.4} parent=0 // loop_header
    %s21 = sphi 0, %s25
    %p22 = scmp.ge.s32.totalorder %s21, 6
    %s28 = sphi 0, %s40
    %s29 = sphi 0, %s36
    %s30 = sphi 0, %s28
    %s31 = sphi 0, %s29
    %s32 = sphi 0, %s30
    %s33 = sphi 0, %s31
    %s43 = sphi 0, %s45
    %s46 = sphi 0, %s43
    %s47 = sphi 0, %s46
    %s63 = sphi 0, %s47
    %s69 = sphi 0, %s71
    %s72 = sphi 0, %s69
    %s73 = sphi 0, %s72
    %s89 = sphi 0, %s73
    %s93 = sphi 0, %s93
    %s95 = sphi 0, %s93
    %s96 = sphi 0, %s95
    %s110 = sphi 0, %s96
    %s114 = sphi 0, %s114
    %s116 = sphi 0, %s114
    %s117 = sphi 0, %s116
    %s131 = sphi 0, %s117
    %s135 = sphi 0, %s135
    %s137 = sphi 0, %s135
    %s138 = sphi 0, %s137
    %s152 = sphi 0, %s138
    %s158 = sphi 0, %s160
    %s161 = sphi 0, %s158
    %s162 = sphi 0, %s161
    %s178 = sphi 0, %s162
    %s184 = sphi 0, %s186
    %s187 = sphi 0, %s184
    %s188 = sphi 0, %s187
    %s204 = sphi 0, %s188
    %s210 = sphi 0, %s212
    %s213 = sphi 0, %s210
    %s214 = sphi 0, %s213
    %s230 = sphi 0, %s214
    %s236 = sphi 0, %s238
    %s239 = sphi 0, %s236
    %s240 = sphi 0, %s239
    %s256 = sphi 0, %s240
    %s262 = sphi 0, %s264
    %s265 = sphi 0, %s262
    %s266 = sphi 0, %s265
    %s282 = sphi 0, %s266
    %s288 = sphi 0, %s290
    %s291 = sphi 0, %s288
    %s292 = sphi 0, %s291
    %s308 = sphi 0, %s292
    %s314 = sphi 0, %s316
    %s317 = sphi 0, %s314
    %s318 = sphi 0, %s317
    %s334 = sphi 0, %s318
    %s340 = sphi 0, %s342
    %s343 = sphi 0, %s340
    %s344 = sphi 0, %s343
    %s360 = sphi 0, %s344
    %s366 = sphi 0, %s368
    %s369 = sphi 0, %s366
    %s370 = sphi 0, %s369
    %s386 = sphi 0, %s370
    %s392 = sphi 0, %s394
    %s395 = sphi 0, %s392
    %s396 = sphi 0, %s395
    %s412 = sphi 0, %s396
    %s418 = sphi 0, %s420
    %s421 = sphi 0, %s418
    %s422 = sphi 0, %s421
    %s438 = sphi 0, %s422
  $region4: #{retromae_forward.4} parent=0 // loop_header_branch
    %24 = sbr.rel (%p22) target = $region8
  $region5: #{retromae_forward.4} parent=0 // loop_body
    %s26 = ssub.s32 %s21, 1
    %s27 = ssub.s32 %s21, 2
    %s34 = sadd.s32 1, %s29
    %p35 = scmp.ge.s32.totalorder %s34, 2
    %s36 = scalar_select %p35, 0, %s34
    %s37 = sadd.s32 1, %s28
    %s38 = scalar_select %p35, %s37, %s28
    %p39 = scmp.ge.s32.totalorder %s38, 2
    %s40 = scalar_select %p39, 0, %s38
    %s41 = ssub.s32 %s28, %s40
    %p42 = scmp.eq.s32.totalorder %s41, 0
    %s44 = sadd.s32 %s43, 1
    %s45 = scalar_select %p42, %s43, %s44
    %p48 = pneg %p42
    %p49 = scmp.eq.s32.totalorder %s21, 3
    %p50 = por %p48, %p49
    %p51 = scmp.ne.s32.totalorder %s43, %s46
    %p52 = scmp.eq.s32.totalorder %s21, 0
    %p53 = por %p51, %p52
    %p54 = scmp.ne.s32.totalorder %s43, %s46
    %p55 = scmp.eq.s32.totalorder %s26, 3
    %p56 = por %p54, %p55
    %p57 = scmp.ne.s32.totalorder %s46, %s47
    %p58 = scmp.eq.s32.totalorder %s26, 0
    %p59 = por %p57, %p58
    %p60 = scmp.ne.s32.totalorder %s46, %s47
    %p61 = scmp.eq.s32.totalorder %s27, 3
    %p62 = por %p60, %p61
    %p64 = scmp.ne.s32.totalorder %s47, %s63
    %p65 = scmp.eq.s32.totalorder %s27, 0
    %p66 = por %p64, %p65
    %s67 = ssub.s32 %s28, %s40
    %p68 = scmp.eq.s32.totalorder %s67, 0
    %s70 = sadd.s32 %s69, 1
    %s71 = scalar_select %p68, %s69, %s70
    %p74 = pneg %p68
    %p75 = scmp.eq.s32.totalorder %s21, 3
    %p76 = por %p74, %p75
    %p77 = scmp.ne.s32.totalorder %s69, %s72
    %p78 = scmp.eq.s32.totalorder %s21, 0
    %p79 = por %p77, %p78
    %p80 = scmp.ne.s32.totalorder %s69, %s72
    %p81 = scmp.eq.s32.totalorder %s26, 3
    %p82 = por %p80, %p81
    %p83 = scmp.ne.s32.totalorder %s72, %s73
    %p84 = scmp.eq.s32.totalorder %s26, 0
    %p85 = por %p83, %p84
    %p86 = scmp.ne.s32.totalorder %s72, %s73
    %p87 = scmp.eq.s32.totalorder %s27, 3
    %p88 = por %p86, %p87
    %p90 = scmp.ne.s32.totalorder %s73, %s89
    %p91 = scmp.eq.s32.totalorder %s27, 0
    %p92 = por %p90, %p91
    %s94 = sadd.s32 %s93, 1
    %p97 = scmp.eq.s32.totalorder %s21, 3
    %p98 = scmp.ne.s32.totalorder %s93, %s95
    %p99 = scmp.eq.s32.totalorder %s21, 0
    %p100 = por %p98, %p99
    %p101 = scmp.ne.s32.totalorder %s93, %s95
    %p102 = scmp.eq.s32.totalorder %s26, 3
    %p103 = por %p101, %p102
    %p104 = scmp.ne.s32.totalorder %s95, %s96
    %p105 = scmp.eq.s32.totalorder %s26, 0
    %p106 = por %p104, %p105
    %p107 = scmp.ne.s32.totalorder %s95, %s96
    %p108 = scmp.eq.s32.totalorder %s27, 3
    %p109 = por %p107, %p108
    %p111 = scmp.ne.s32.totalorder %s96, %s110
    %p112 = scmp.eq.s32.totalorder %s27, 0
    %p113 = por %p111, %p112
    %s115 = sadd.s32 %s114, 1
    %p118 = scmp.eq.s32.totalorder %s21, 3
    %p119 = scmp.ne.s32.totalorder %s114, %s116
    %p120 = scmp.eq.s32.totalorder %s21, 0
    %p121 = por %p119, %p120
    %p122 = scmp.ne.s32.totalorder %s114, %s116
    %p123 = scmp.eq.s32.totalorder %s26, 3
    %p124 = por %p122, %p123
    %p125 = scmp.ne.s32.totalorder %s116, %s117
    %p126 = scmp.eq.s32.totalorder %s26, 0
    %p127 = por %p125, %p126
    %p128 = scmp.ne.s32.totalorder %s116, %s117
    %p129 = scmp.eq.s32.totalorder %s27, 3
    %p130 = por %p128, %p129
    %p132 = scmp.ne.s32.totalorder %s117, %s131
    %p133 = scmp.eq.s32.totalorder %s27, 0
    %p134 = por %p132, %p133
    %s136 = sadd.s32 %s135, 1
    %p139 = scmp.eq.s32.totalorder %s21, 3
    %p140 = scmp.ne.s32.totalorder %s135, %s137
    %p141 = scmp.eq.s32.totalorder %s21, 0
    %p142 = por %p140, %p141
    %p143 = scmp.ne.s32.totalorder %s135, %s137
    %p144 = scmp.eq.s32.totalorder %s26, 3
    %p145 = por %p143, %p144
    %p146 = scmp.ne.s32.totalorder %s137, %s138
    %p147 = scmp.eq.s32.totalorder %s26, 0
    %p148 = por %p146, %p147
    %p149 = scmp.ne.s32.totalorder %s137, %s138
    %p150 = scmp.eq.s32.totalorder %s27, 3
    %p151 = por %p149, %p150
    %p153 = scmp.ne.s32.totalorder %s138, %s152
    %p154 = scmp.eq.s32.totalorder %s27, 0
    %p155 = por %p153, %p154
    %s156 = ssub.s32 %s29, %s36
    %p157 = scmp.eq.s32.totalorder %s156, 0
    %s159 = sadd.s32 %s158, 1
    %s160 = scalar_select %p157, %s158, %s159
    %p163 = pneg %p157
    %p164 = scmp.eq.s32.totalorder %s21, 3
    %p165 = por %p163, %p164
    %p166 = scmp.ne.s32.totalorder %s158, %s161
    %p167 = scmp.eq.s32.totalorder %s21, 0
    %p168 = por %p166, %p167
    %p169 = scmp.ne.s32.totalorder %s158, %s161
    %p170 = scmp.eq.s32.totalorder %s26, 3
    %p171 = por %p169, %p170
    %p172 = scmp.ne.s32.totalorder %s161, %s162
    %p173 = scmp.eq.s32.totalorder %s26, 0
    %p174 = por %p172, %p173
    %p175 = scmp.ne.s32.totalorder %s161, %s162
    %p176 = scmp.eq.s32.totalorder %s27, 3
    %p177 = por %p175, %p176
    %p179 = scmp.ne.s32.totalorder %s162, %s178
    %p180 = scmp.eq.s32.totalorder %s27, 0
    %p181 = por %p179, %p180
    %s182 = ssub.s32 %s29, %s36
    %p183 = scmp.eq.s32.totalorder %s182, 0
    %s185 = sadd.s32 %s184, 1
    %s186 = scalar_select %p183, %s184, %s185
    %p189 = pneg %p183
    %p190 = scmp.eq.s32.totalorder %s21, 3
    %p191 = por %p189, %p190
    %p192 = scmp.ne.s32.totalorder %s184, %s187
    %p193 = scmp.eq.s32.totalorder %s21, 0
    %p194 = por %p192, %p193
    %p195 = scmp.ne.s32.totalorder %s184, %s187
    %p196 = scmp.eq.s32.totalorder %s26, 3
    %p197 = por %p195, %p196
    %p198 = scmp.ne.s32.totalorder %s187, %s188
    %p199 = scmp.eq.s32.totalorder %s26, 0
    %p200 = por %p198, %p199
    %p201 = scmp.ne.s32.totalorder %s187, %s188
    %p202 = scmp.eq.s32.totalorder %s27, 3
    %p203 = por %p201, %p202
    %p205 = scmp.ne.s32.totalorder %s188, %s204
    %p206 = scmp.eq.s32.totalorder %s27, 0
    %p207 = por %p205, %p206
    %s208 = ssub.s32 %s29, %s36
    %p209 = scmp.eq.s32.totalorder %s208, 0
    %s211 = sadd.s32 %s210, 1
    %s212 = scalar_select %p209, %s210, %s211
    %p215 = pneg %p209
    %p216 = scmp.eq.s32.totalorder %s21, 3
    %p217 = por %p215, %p216
    %p218 = scmp.ne.s32.totalorder %s210, %s213
    %p219 = scmp.eq.s32.totalorder %s21, 0
    %p220 = por %p218, %p219
    %p221 = scmp.ne.s32.totalorder %s210, %s213
    %p222 = scmp.eq.s32.totalorder %s26, 3
    %p223 = por %p221, %p222
    %p224 = scmp.ne.s32.totalorder %s213, %s214
    %p225 = scmp.eq.s32.totalorder %s26, 0
    %p226 = por %p224, %p225
    %p227 = scmp.ne.s32.totalorder %s213, %s214
    %p228 = scmp.eq.s32.totalorder %s27, 3
    %p229 = por %p227, %p228
    %p231 = scmp.ne.s32.totalorder %s214, %s230
    %p232 = scmp.eq.s32.totalorder %s27, 0
    %p233 = por %p231, %p232
    %s234 = ssub.s32 %s29, %s36
    %p235 = scmp.eq.s32.totalorder %s234, 0
    %s237 = sadd.s32 %s236, 1
    %s238 = scalar_select %p235, %s236, %s237
    %p241 = pneg %p235
    %p242 = scmp.eq.s32.totalorder %s21, 3
    %p243 = por %p241, %p242
    %p244 = scmp.ne.s32.totalorder %s236, %s239
    %p245 = scmp.eq.s32.totalorder %s21, 0
    %p246 = por %p244, %p245
    %p247 = scmp.ne.s32.totalorder %s236, %s239
    %p248 = scmp.eq.s32.totalorder %s26, 3
    %p249 = por %p247, %p248
    %p250 = scmp.ne.s32.totalorder %s239, %s240
    %p251 = scmp.eq.s32.totalorder %s26, 0
    %p252 = por %p250, %p251
    %p253 = scmp.ne.s32.totalorder %s239, %s240
    %p254 = scmp.eq.s32.totalorder %s27, 3
    %p255 = por %p253, %p254
    %p257 = scmp.ne.s32.totalorder %s240, %s256
    %p258 = scmp.eq.s32.totalorder %s27, 0
    %p259 = por %p257, %p258
    %s260 = ssub.s32 %s29, %s36
    %p261 = scmp.eq.s32.totalorder %s260, 0
    %s263 = sadd.s32 %s262, 1
    %s264 = scalar_select %p261, %s262, %s263
    %p267 = pneg %p261
    %p268 = scmp.eq.s32.totalorder %s21, 3
    %p269 = por %p267, %p268
    %p270 = scmp.ne.s32.totalorder %s262, %s265
    %p271 = scmp.eq.s32.totalorder %s21, 0
    %p272 = por %p270, %p271
    %p273 = scmp.ne.s32.totalorder %s262, %s265
    %p274 = scmp.eq.s32.totalorder %s26, 3
    %p275 = por %p273, %p274
    %p276 = scmp.ne.s32.totalorder %s265, %s266
    %p277 = scmp.eq.s32.totalorder %s26, 0
    %p278 = por %p276, %p277
    %p279 = scmp.ne.s32.totalorder %s265, %s266
    %p280 = scmp.eq.s32.totalorder %s27, 3
    %p281 = por %p279, %p280
    %p283 = scmp.ne.s32.totalorder %s266, %s282
    %p284 = scmp.eq.s32.totalorder %s27, 0
    %p285 = por %p283, %p284
    %s286 = ssub.s32 %s29, %s36
    %p287 = scmp.eq.s32.totalorder %s286, 0
    %s289 = sadd.s32 %s288, 1
    %s290 = scalar_select %p287, %s288, %s289
    %p293 = pneg %p287
    %p294 = scmp.eq.s32.totalorder %s21, 3
    %p295 = por %p293, %p294
    %p296 = scmp.ne.s32.totalorder %s288, %s291
    %p297 = scmp.eq.s32.totalorder %s21, 0
    %p298 = por %p296, %p297
    %p299 = scmp.ne.s32.totalorder %s288, %s291
    %p300 = scmp.eq.s32.totalorder %s26, 3
    %p301 = por %p299, %p300
    %p302 = scmp.ne.s32.totalorder %s291, %s292
    %p303 = scmp.eq.s32.totalorder %s26, 0
    %p304 = por %p302, %p303
    %p305 = scmp.ne.s32.totalorder %s291, %s292
    %p306 = scmp.eq.s32.totalorder %s27, 3
    %p307 = por %p305, %p306
    %p309 = scmp.ne.s32.totalorder %s292, %s308
    %p310 = scmp.eq.s32.totalorder %s27, 0
    %p311 = por %p309, %p310
    %s312 = ssub.s32 %s29, %s36
    %p313 = scmp.eq.s32.totalorder %s312, 0
    %s315 = sadd.s32 %s314, 1
    %s316 = scalar_select %p313, %s314, %s315
    %p319 = pneg %p313
    %p320 = scmp.eq.s32.totalorder %s21, 3
    %p321 = por %p319, %p320
    %p322 = scmp.ne.s32.totalorder %s314, %s317
    %p323 = scmp.eq.s32.totalorder %s21, 0
    %p324 = por %p322, %p323
    %p325 = scmp.ne.s32.totalorder %s314, %s317
    %p326 = scmp.eq.s32.totalorder %s26, 3
    %p327 = por %p325, %p326
    %p328 = scmp.ne.s32.totalorder %s317, %s318
    %p329 = scmp.eq.s32.totalorder %s26, 0
    %p330 = por %p328, %p329
    %p331 = scmp.ne.s32.totalorder %s317, %s318
    %p332 = scmp.eq.s32.totalorder %s27, 3
    %p333 = por %p331, %p332
    %p335 = scmp.ne.s32.totalorder %s318, %s334
    %p336 = scmp.eq.s32.totalorder %s27, 0
    %p337 = por %p335, %p336
    %s338 = ssub.s32 %s29, %s36
    %p339 = scmp.eq.s32.totalorder %s338, 0
    %s341 = sadd.s32 %s340, 1
    %s342 = scalar_select %p339, %s340, %s341
    %p345 = pneg %p339
    %p346 = scmp.eq.s32.totalorder %s21, 3
    %p347 = por %p345, %p346
    %p348 = scmp.ne.s32.totalorder %s340, %s343
    %p349 = scmp.eq.s32.totalorder %s21, 0
    %p350 = por %p348, %p349
    %p351 = scmp.ne.s32.totalorder %s340, %s343
    %p352 = scmp.eq.s32.totalorder %s26, 3
    %p353 = por %p351, %p352
    %p354 = scmp.ne.s32.totalorder %s343, %s344
    %p355 = scmp.eq.s32.totalorder %s26, 0
    %p356 = por %p354, %p355
    %p357 = scmp.ne.s32.totalorder %s343, %s344
    %p358 = scmp.eq.s32.totalorder %s27, 3
    %p359 = por %p357, %p358
    %p361 = scmp.ne.s32.totalorder %s344, %s360
    %p362 = scmp.eq.s32.totalorder %s27, 0
    %p363 = por %p361, %p362
    %s364 = ssub.s32 %s29, %s36
    %p365 = scmp.eq.s32.totalorder %s364, 0
    %s367 = sadd.s32 %s366, 1
    %s368 = scalar_select %p365, %s366, %s367
    %p371 = pneg %p365
    %p372 = scmp.eq.s32.totalorder %s21, 3
    %p373 = por %p371, %p372
    %p374 = scmp.ne.s32.totalorder %s366, %s369
    %p375 = scmp.eq.s32.totalorder %s21, 0
    %p376 = por %p374, %p375
    %p377 = scmp.ne.s32.totalorder %s366, %s369
    %p378 = scmp.eq.s32.totalorder %s26, 3
    %p379 = por %p377, %p378
    %p380 = scmp.ne.s32.totalorder %s369, %s370
    %p381 = scmp.eq.s32.totalorder %s26, 0
    %p382 = por %p380, %p381
    %p383 = scmp.ne.s32.totalorder %s369, %s370
    %p384 = scmp.eq.s32.totalorder %s27, 3
    %p385 = por %p383, %p384
    %p387 = scmp.ne.s32.totalorder %s370, %s386
    %p388 = scmp.eq.s32.totalorder %s27, 0
    %p389 = por %p387, %p388
    %s390 = ssub.s32 %s29, %s36
    %p391 = scmp.eq.s32.totalorder %s390, 0
    %s393 = sadd.s32 %s392, 1
    %s394 = scalar_select %p391, %s392, %s393
    %p397 = pneg %p391
    %p398 = scmp.eq.s32.totalorder %s21, 3
    %p399 = por %p397, %p398
    %p400 = scmp.ne.s32.totalorder %s392, %s395
    %p401 = scmp.eq.s32.totalorder %s21, 0
    %p402 = por %p400, %p401
    %p403 = scmp.ne.s32.totalorder %s392, %s395
    %p404 = scmp.eq.s32.totalorder %s26, 3
    %p405 = por %p403, %p404
    %p406 = scmp.ne.s32.totalorder %s395, %s396
    %p407 = scmp.eq.s32.totalorder %s26, 0
    %p408 = por %p406, %p407
    %p409 = scmp.ne.s32.totalorder %s395, %s396
    %p410 = scmp.eq.s32.totalorder %s27, 3
    %p411 = por %p409, %p410
    %p413 = scmp.ne.s32.totalorder %s396, %s412
    %p414 = scmp.eq.s32.totalorder %s27, 0
    %p415 = por %p413, %p414
    %s416 = ssub.s32 %s28, %s40
    %p417 = scmp.eq.s32.totalorder %s416, 0
    %s419 = sadd.s32 %s418, 1
    %s420 = scalar_select %p417, %s418, %s419
    %p423 = pneg %p417
    %p424 = scmp.eq.s32.totalorder %s21, 3
    %p425 = por %p423, %p424
    %p426 = scmp.ne.s32.totalorder %s418, %s421
    %p427 = scmp.eq.s32.totalorder %s21, 0
    %p428 = por %p426, %p427
    %p429 = scmp.ne.s32.totalorder %s418, %s421
    %p430 = scmp.eq.s32.totalorder %s26, 3
    %p431 = por %p429, %p430
    %p432 = scmp.ne.s32.totalorder %s421, %s422
    %p433 = scmp.eq.s32.totalorder %s26, 0
    %p434 = por %p432, %p433
    %p435 = scmp.ne.s32.totalorder %s421, %s422
    %p436 = scmp.eq.s32.totalorder %s27, 3
    %p437 = por %p435, %p436
    %p439 = scmp.ne.s32.totalorder %s422, %s438
    %p440 = scmp.eq.s32.totalorder %s27, 0
    %p441 = por %p439, %p440
    %p442 = scmp.le.s32.totalorder 1, %s21
    %p443 = scmp.lt.s32.totalorder %s21, 5
    %p444 = pnand %p442, %p443
    %p445 = pneg %p444
    // Predicated region
    $region9: #{retromae_forward.4} parent=5 // pred_check
      _
    $region10: #{retromae_forward.4} parent=5 // pred_check_branch
      %447 = sbr.rel (%p444) target = $region12
    $region11: #{retromae_forward.4} parent=5 // pred_region
      %s448 = ssub.s32 %s21, 1
      // Predicated region
      $region13: #{retromae_forward.4} parent=11 // pred_check
        %p449 = pneg %p106
      $region14: #{retromae_forward.4} parent=11 // pred_check_branch
        %451 = sbr.rel (%p449) target = $region16
      $region15: #{retromae_forward.4} parent=11 // pred_region
        _
      $region16: #{retromae_forward.4} parent=11 // pred_fallthru
        _
      // Predicated region
      $region17: #{retromae_forward.4} parent=11 // pred_check
        %p452 = pneg %p127
      $region18: #{retromae_forward.4} parent=11 // pred_check_branch
        %454 = sbr.rel (%p452) target = $region20
      $region19: #{retromae_forward.4} parent=11 // pred_region
        _
      $region20: #{retromae_forward.4} parent=11 // pred_fallthru
        _
      // Predicated region
      $region21: #{retromae_forward.4} parent=11 // pred_check
        %p455 = pneg %p148
      $region22: #{retromae_forward.4} parent=11 // pred_check_branch
        %457 = sbr.rel (%p455) target = $region24
      $region23: #{retromae_forward.4} parent=11 // pred_region
        _
      $region24: #{retromae_forward.4} parent=11 // pred_fallthru
        _
    $region12: #{retromae_forward.4} parent=5 // pred_fallthru
      _
    %p458 = scmp.lt.s32.totalorder %s21, 4
    // Predicated region
    $region25: #{retromae_forward.4} parent=5 // pred_check
      %p459 = pneg %p458
    $region26: #{retromae_forward.4} parent=5 // pred_check_branch
      %461 = sbr.rel (%p459) target = $region28
    $region27: #{retromae_forward.4} parent=5 // pred_region
      // Predicated region
      $region29: #{retromae_forward.4} parent=27 // pred_check
        %p462 = pneg %p53
      $region30: #{retromae_forward.4} parent=27 // pred_check_branch
        %464 = sbr.rel (%p462) target = $region32
      $region31: #{retromae_forward.4} parent=27 // pred_region
        %p465 = scmp.lt.s32.totalorder %s28, 1
        %s466 = scalar_select %p465, %s28, 1
        %s467 = smul.addr %s466, 8
        %s468 = scalar_lea.vmem %s0, %s467
      $region32: #{retromae_forward.4} parent=27 // pred_fallthru
        _
      // Predicated region
      $region33: #{retromae_forward.4} parent=27 // pred_check
        %p469 = pneg %p79
      $region34: #{retromae_forward.4} parent=27 // pred_check_branch
        %471 = sbr.rel (%p469) target = $region36
      $region35: #{retromae_forward.4} parent=27 // pred_region
        %p472 = scmp.lt.s32.totalorder %s28, 1
        %s473 = scalar_select %p472, %s28, 1
        %s474 = scalar_lea.vmem %s1, %s473
      $region36: #{retromae_forward.4} parent=27 // pred_fallthru
        _
      // Predicated region
      $region37: #{retromae_forward.4} parent=27 // pred_check
        %p475 = pneg %p168
      $region38: #{retromae_forward.4} parent=27 // pred_check_branch
        %477 = sbr.rel (%p475) target = $region40
      $region39: #{retromae_forward.4} parent=27 // pred_region
        %p478 = scmp.lt.s32.totalorder %s29, 1
        %s479 = scalar_select %p478, %s29, 1
        %s480 = smul.addr %s479, 4
        %s481 = smul.addr %s480, 8
        %s482 = scalar_lea.vmem %s5, %s481
      $region40: #{retromae_forward.4} parent=27 // pred_fallthru
        _
      // Predicated region
      $region41: #{retromae_forward.4} parent=27 // pred_check
        %p483 = pneg %p194
      $region42: #{retromae_forward.4} parent=27 // pred_check_branch
        %485 = sbr.rel (%p483) target = $region44
      $region43: #{retromae_forward.4} parent=27 // pred_region
        %p486 = scmp.lt.s32.totalorder %s29, 1
        %s487 = scalar_select %p486, %s29, 1
        %s488 = scalar_lea.vmem %s6, %s487
      $region44: #{retromae_forward.4} parent=27 // pred_fallthru
        _
      // Predicated region
      $region45: #{retromae_forward.4} parent=27 // pred_check
        %p489 = pneg %p220
      $region46: #{retromae_forward.4} parent=27 // pred_check_branch
        %491 = sbr.rel (%p489) target = $region48
      $region47: #{retromae_forward.4} parent=27 // pred_region
        %p492 = scmp.lt.s32.totalorder %s29, 1
        %s493 = scalar_select %p492, %s29, 1
        %s494 = smul.addr %s493, 4
        %s495 = smul.addr %s494, 8
        %s496 = scalar_lea.vmem %s7, %s495
      $region48: #{retromae_forward.4} parent=27 // pred_fallthru
        _
      // Predicated region
      $region49: #{retromae_forward.4} parent=27 // pred_check
        %p497 = pneg %p246
      $region50: #{retromae_forward.4} parent=27 // pred_check_branch
        %499 = sbr.rel (%p497) target = $region52
      $region51: #{retromae_forward.4} parent=27 // pred_region
        %p500 = scmp.lt.s32.totalorder %s29, 1
        %s501 = scalar_select %p500, %s29, 1
        %s502 = scalar_lea.vmem %s8, %s501
      $region52: #{retromae_forward.4} parent=27 // pred_fallthru
        _
      // Predicated region
      $region53: #{retromae_forward.4} parent=27 // pred_check
        %p503 = pneg %p272
      $region54: #{retromae_forward.4} parent=27 // pred_check_branch
        %505 = sbr.rel (%p503) target = $region56
      $region55: #{retromae_forward.4} parent=27 // pred_region
        %p506 = scmp.lt.s32.totalorder %s29, 1
        %s507 = scalar_select %p506, %s29, 1
        %s508 = smul.addr %s507, 2
        %s509 = scalar_lea.vmem %s9, %s508
      $region56: #{retromae_forward.4} parent=27 // pred_fallthru
        _
      // Predicated region
      $region57: #{retromae_forward.4} parent=27 // pred_check
        %p510 = pneg %p298
      $region58: #{retromae_forward.4} parent=27 // pred_check_branch
        %512 = sbr.rel (%p510) target = $region60
      $region59: #{retromae_forward.4} parent=27 // pred_region
        %p513 = scmp.lt.s32.totalorder %s29, 1
        %s514 = scalar_select %p513, %s29, 1
        %s515 = smul.addr %s514, 4
        %s516 = smul.addr %s515, 8
        %s517 = scalar_lea.vmem %s10, %s516
      $region60: #{retromae_forward.4} parent=27 // pred_fallthru
        _
      // Predicated region
      $region61: #{retromae_forward.4} parent=27 // pred_check
        %p518 = pneg %p324
      $region62: #{retromae_forward.4} parent=27 // pred_check_branch
        %520 = sbr.rel (%p518) target = $region64
      $region63: #{retromae_forward.4} parent=27 // pred_region
        %p521 = scmp.lt.s32.totalorder %s29, 1
        %s522 = scalar_select %p521, %s29, 1
        %s523 = scalar_lea.vmem %s11, %s522
      $region64: #{retromae_forward.4} parent=27 // pred_fallthru
        _
      // Predicated region
      $region65: #{retromae_forward.4} parent=27 // pred_check
        %p524 = pneg %p350
      $region66: #{retromae_forward.4} parent=27 // pred_check_branch
        %526 = sbr.rel (%p524) target = $region68
      $region67: #{retromae_forward.4} parent=27 // pred_region
        %p527 = scmp.lt.s32.totalorder %s29, 1
        %s528 = scalar_select %p527, %s29, 1
        %s529 = smul.addr %s528, 8
        %s530 = smul.addr %s529, 8
        %s531 = scalar_lea.vmem %s12, %s530
      $region68: #{retromae_forward.4} parent=27 // pred_fallthru
        _
      // Predicated region
      $region69: #{retromae_forward.4} parent=27 // pred_check
        %p532 = pneg %p376
      $region70: #{retromae_forward.4} parent=27 // pred_check_branch
        %534 = sbr.rel (%p532) target = $region72
      $region71: #{retromae_forward.4} parent=27 // pred_region
        %p535 = scmp.lt.s32.totalorder %s29, 1
        %s536 = scalar_select %p535, %s29, 1
        %s537 = scalar_lea.vmem %s13, %s536
      $region72: #{retromae_forward.4} parent=27 // pred_fallthru
        _
      // Predicated region
      $region73: #{retromae_forward.4} parent=27 // pred_check
        %p538 = pneg %p402
      $region74: #{retromae_forward.4} parent=27 // pred_check_branch
        %540 = sbr.rel (%p538) target = $region76
      $region75: #{retromae_forward.4} parent=27 // pred_region
        %p541 = scmp.lt.s32.totalorder %s29, 1
        %s542 = scalar_select %p541, %s29, 1
        %s543 = smul.addr %s542, 2
        %s544 = scalar_lea.vmem %s14, %s543
      $region76: #{retromae_forward.4} parent=27 // pred_fallthru
        _
    $region28: #{retromae_forward.4} parent=5 // pred_fallthru
      _
    %p545 = scmp.le.s32.totalorder 1, %s21
    %p546 = scmp.lt.s32.totalorder %s21, 5
    %p547 = pnand %p545, %p546
    %p548 = pneg %p547
    // Predicated region
    $region77: #{retromae_forward.4} parent=5 // pred_check
      _
    $region78: #{retromae_forward.4} parent=5 // pred_check_branch
      %550 = sbr.rel (%p547) target = $region80
    $region79: #{retromae_forward.4} parent=5 // pred_region
      %s551 = ssub.s32 %s21, 1
      %p552 = scmp.lt.s32.totalorder %s30, 1
      %s553 = scalar_select %p552, %s30, 1
      %s554 = smul.addr %s553, 8
      %s555 = scalar_lea.vmem %s0, %s554
      %p556 = pneg %p59
      %p557 = pneg %p56
      %p558 = scmp.lt.s32.totalorder %s30, 1
      %s559 = scalar_select %p558, %s30, 1
      %s560 = scalar_lea.vmem %s1, %s559
      %p561 = pneg %p85
      %p562 = pneg %p82
      %p563 = pneg %p106
      %p564 = pneg %p103
      %p565 = pneg %p127
      %p566 = pneg %p124
      %p567 = pneg %p148
      %p568 = pneg %p145
      %p569 = scmp.lt.s32.totalorder %s31, 1
      %s570 = scalar_select %p569, %s31, 1
      %s571 = smul.addr %s570, 4
      %s572 = smul.addr %s571, 8
      %s573 = scalar_lea.vmem %s5, %s572
      %p574 = pneg %p174
      %p575 = pneg %p171
      %p576 = scmp.lt.s32.totalorder %s31, 1
      %s577 = scalar_select %p576, %s31, 1
      %s578 = scalar_lea.vmem %s6, %s577
      %p579 = pneg %p200
      %p580 = pneg %p197
      %p581 = scmp.lt.s32.totalorder %s31, 1
      %s582 = scalar_select %p581, %s31, 1
      %s583 = smul.addr %s582, 4
      %s584 = smul.addr %s583, 8
      %s585 = scalar_lea.vmem %s7, %s584
      %p586 = pneg %p226
      %p587 = pneg %p223
      %p588 = scmp.lt.s32.totalorder %s31, 1
      %s589 = scalar_select %p588, %s31, 1
      %s590 = scalar_lea.vmem %s8, %s589
      %p591 = pneg %p252
      %p592 = pneg %p249
      %p593 = scmp.lt.s32.totalorder %s31, 1
      %s594 = scalar_select %p593, %s31, 1
      %s595 = smul.addr %s594, 2
      %s596 = scalar_lea.vmem %s9, %s595
      %p597 = pneg %p278
      %p598 = pneg %p275
      %p599 = scmp.lt.s32.totalorder %s31, 1
      %s600 = scalar_select %p599, %s31, 1
      %s601 = smul.addr %s600, 4
      %s602 = smul.addr %s601, 8
      %s603 = scalar_lea.vmem %s10, %s602
      %p604 = pneg %p304
      %p605 = pneg %p301
      %p606 = scmp.lt.s32.totalorder %s31, 1
      %s607 = scalar_select %p606, %s31, 1
      %s608 = scalar_lea.vmem %s11, %s607
      %p609 = pneg %p330
      %p610 = pneg %p327
      %p611 = scmp.lt.s32.totalorder %s31, 1
      %s612 = scalar_select %p611, %s31, 1
      %s613 = smul.addr %s612, 8
      %s614 = smul.addr %s613, 8
      %s615 = scalar_lea.vmem %s12, %s614
      %p616 = pneg %p356
      %p617 = pneg %p353
      %p618 = scmp.lt.s32.totalorder %s31, 1
      %s619 = scalar_select %p618, %s31, 1
      %s620 = scalar_lea.vmem %s13, %s619
      %p621 = pneg %p382
      %p622 = pneg %p379
      %p623 = scmp.lt.s32.totalorder %s31, 1
      %s624 = scalar_select %p623, %s31, 1
      %s625 = smul.addr %s624, 2
      %s626 = scalar_lea.vmem %s14, %s625
      %p627 = pneg %p408
      %p628 = pneg %p405
      %p629 = pneg %p434
      %p630 = pneg %p431
      %p631 = scmp.lt.s32.totalorder %s30, 1
      %s632 = scalar_select %p631, %s30, 1
      %s633 = smul.addr %s632, 8
      %s634 = scalar_lea.vmem %s15, %s633
      %p635 = scmp.lt.s32.totalorder %s30, 1
      %s636 = scalar_select %p635, %s30, 1
      %s637 = smul.addr %s636, 8
      %s638 = scalar_lea.vmem %s0, %s637
      %p639 = scmp.lt.s32.totalorder %s30, 1
      %s640 = scalar_select %p639, %s30, 1
      %s641 = scalar_lea.vmem %s1, %s640
      %p642 = scmp.lt.s32.totalorder %s31, 1
      %s643 = scalar_select %p642, %s31, 1
      %s644 = smul.addr %s643, 4
      %s645 = smul.addr %s644, 8
      %s646 = scalar_lea.vmem %s5, %s645
      %p647 = scmp.lt.s32.totalorder %s31, 1
      %s648 = scalar_select %p647, %s31, 1
      %s649 = scalar_lea.vmem %s6, %s648
      %p650 = scmp.lt.s32.totalorder %s31, 1
      %s651 = scalar_select %p650, %s31, 1
      %s652 = smul.addr %s651, 4
      %s653 = smul.addr %s652, 8
      %s654 = scalar_lea.vmem %s7, %s653
      %p655 = scmp.lt.s32.totalorder %s31, 1
      %s656 = scalar_select %p655, %s31, 1
      %s657 = scalar_lea.vmem %s8, %s656
      %p658 = scmp.lt.s32.totalorder %s31, 1
      %s659 = scalar_select %p658, %s31, 1
      %s660 = smul.addr %s659, 2
      %s661 = scalar_lea.vmem %s9, %s660
      %p662 = scmp.lt.s32.totalorder %s31, 1
      %s663 = scalar_select %p662, %s31, 1
      %s664 = smul.addr %s663, 4
      %s665 = smul.addr %s664, 8
      %s666 = scalar_lea.vmem %s10, %s665
      %p667 = scmp.lt.s32.totalorder %s31, 1
      %s668 = scalar_select %p667, %s31, 1
      %s669 = scalar_lea.vmem %s11, %s668
      %p670 = scmp.lt.s32.totalorder %s31, 1
      %s671 = scalar_select %p670, %s31, 1
      %s672 = smul.addr %s671, 8
      %s673 = smul.addr %s672, 8
      %s674 = scalar_lea.vmem %s12, %s673
      %p675 = scmp.lt.s32.totalorder %s31, 1
      %s676 = scalar_select %p675, %s31, 1
      %s677 = scalar_lea.vmem %s13, %s676
      %p678 = scmp.lt.s32.totalorder %s31, 1
      %s679 = scalar_select %p678, %s31, 1
      %s680 = smul.addr %s679, 2
      %s681 = scalar_lea.vmem %s14, %s680
      %p682 = scmp.lt.s32.totalorder %s30, 1
      %s683 = scalar_select %p682, %s30, 1
      %s684 = smul.addr %s683, 8
      %s685 = scalar_lea.vmem %s15, %s684
      %p686 = scmp.eq.s32.totalorder %s31, 0
      // Predicated region
      $region81: #{retromae_forward.4} parent=79 // pred_check
        %p687 = pneg %p686
      $region82: #{retromae_forward.4} parent=79 // pred_check_branch
        %689 = sbr.rel (%p687) target = $region84
      $region83: #{retromae_forward.4} parent=79 // pred_region
        %v690 = vld [vmem:[%s638] sm:$0xff]
        %v691 = vld [vmem:[%s2] sm:$0xff]
        %v692 = vadd.f32 %v690, %v691
        %v693 = vld [vmem:[%s3] sm:$0x1]
        %v695 = vperm.slane %v693, 0
        %v697 = vadd.f32 %v692, %v695
        %v698 = vld [vmem:[%s4] sm:$0x1]
        %v699 = vld [vmem:[%s4 + $0x1] sm:$0x1]
        %vm700 = vcmask 261120
        %v701 = vsel %vm700, %v697, 0.0
        %702 = vadd.xlane.f32.xlu0 %v701
        %v703 = vpop.xlane.xlu0 %702
        %v704 = vrcp.pop 32.0
        %v705 = vmul.f32 32.0, %v704
        %v706 = vsub.f32 1.0, %v705
        %v707 = vmul.f32 %v704, %v706
        %v708 = vadd.f32 %v704, %v707
        %vm709 = vweird.f32 %v704
        %v710 = vsel %vm709, %v704, %v708
        %v711 = vmul.f32 %v703, %v710
        %v712 = vsub.f32 %v697, %v711
        %v713 = vmul.f32 %v712, %v712
        %v714 = vsel %vm700, %v713, 0.0
        %715 = vadd.xlane.f32.xlu0 %v714
        %v716 = vpop.xlane.xlu0 %715
        %v717 = vmul.f32 %v716, %v710
        %v718 = vadd.f32 %v717, 1e-12
        %v719 = vrsqrt.pop %v718
        %v720 = vmul.f32 %v719, %v718
        %v721 = vmul.f32 %v720, %v719
        %v722 = vmul.f32 0.5, %v721
        %v723 = vsub.f32 1.5, %v722
        %v724 = vmul.f32 %v719, %v723
        %vm725 = vweird.f32 %v718
        %vm726 = vweird.f32 %v719
        %vm727 = vmor %vm725, %vm726
        %v728 = vsel %vm727, %v719, %v724
        %v729 = vmul.f32 %v712, %v728
        %v730 = vperm.slane %v698, 0
        %v731 = vmul.f32 %v729, %v730
        %v732 = vperm.slane %v699, 0
        %v733 = vadd.f32 %v731, %v732
        %734 = vst.msk [vmem:[%s685] sm:$0xff] %vm700, %v733
      $region84: #{retromae_forward.4} parent=79 // pred_fallthru
        _
      %v735 = vld [vmem:[%s685] sm:$0xff]
      %v736 = vld [vmem:[%s641] sm:$0x1]
      %v737 = vld [vmem:[%s646] sm:$0xff]
      %v738 = vld [vmem:[%s646 + $0x8] sm:$0xff]
      %v739 = vld [vmem:[%s646 + $0x10] sm:$0xff]
      %v740 = vld [vmem:[%s646 + $0x18] sm:$0xff]
      %v741 = vld [vmem:[%s649] sm:$0x1]
      %v742 = vld [vmem:[%s654] sm:$0xff]
      %v743 = vld [vmem:[%s654 + $0x8] sm:$0xff]
      %v744 = vld [vmem:[%s654 + $0x10] sm:$0xff]
      %v745 = vld [vmem:[%s654 + $0x18] sm:$0xff]
      %v746 = vld [vmem:[%s657] sm:$0x1]
      %v747 = vld [vmem:[%s661] sm:$0x3]
      %v748 = vld [vmem:[%s666] sm:$0xff]
      %v749 = vld [vmem:[%s666 + $0x8] sm:$0xff]
      %v750 = vld [vmem:[%s666 + $0x10] sm:$0xff]
      %v751 = vld [vmem:[%s666 + $0x18] sm:$0xff]
      %v752 = vld [vmem:[%s669] sm:$0x1]
      %v753 = vld [vmem:[%s674] sm:$0xff]
      %v754 = vld [vmem:[%s674 + $0x8] sm:$0xff]
      %v755 = vld [vmem:[%s674 + $0x10] sm:$0xff]
      %v756 = vld [vmem:[%s674 + $0x18] sm:$0xff]
      %v757 = vld [vmem:[%s674 + $0x20] sm:$0xff]
      %v758 = vld [vmem:[%s674 + $0x28] sm:$0xff]
      %v759 = vld [vmem:[%s674 + $0x30] sm:$0xff]
      %v760 = vld [vmem:[%s674 + $0x38] sm:$0xff]
      %v761 = vld [vmem:[%s677] sm:$0x1]
      %v762 = vld [vmem:[%s681] sm:$0x3]
      %v764 = vperm.slane %v741, 0
      %vm766 = vcmask 261120
      %v768 = vsel %vm766, %v735, 0
      %770 = vmatpush.msra.mxu0 0.0
      %771 = vmatpush.msra.mxu0 0.0
      %772 = vmatpush.msra.mxu0 0.0
      %773 = vmatpush.msra.mxu0 0.0
      %774 = vmatpush.msra.mxu0 0.0
      %775 = vmatpush.msra.mxu0 0.0
      %776 = vmatpush.msra.mxu0 0.0
      %777 = vmatpush.msra.mxu0 0.0
      %778 = vmatpush.msra.mxu0 0.0
      %779 = vmatpush.msra.mxu0 0.0
      %780 = vmatpush.msra.mxu0 0.0
      %781 = vmatpush.msra.mxu0 0.0
      %782 = vmatpush.msra.mxu0 %v740
      %783 = vmatpush.msra.mxu0 %v739
      %784 = vmatpush.msra.mxu0 %v738
      %785 = vmatpush.msra.mxu0 %v737
      %786 = vmatmul.f32.gmra.mxu0 %v768
      %v787 = vpop.f32.mrf.mxu0
      %v788 = vadd.f32 %v764, %v787
      %789 = vdwg.mxu0
      %791 = vrot.lane.b32.xlu0 %v788, 96
      %v792 = vpop.permute.xlu0 %791
      %vm793 = vcmask 64512
      %v794 = vsel %vm793, %v788, 0
      %v796 = vsel %vm793, %v792, 0
      %798 = vmatpush.xpose.msra.mxu0 0.0
      %799 = vmatpush.xpose.msra.mxu0 0.0
      %800 = vmatpush.xpose.msra.mxu0 0.0
      %801 = vmatpush.xpose.msra.mxu0 0.0
      %802 = vmatpush.xpose.msra.mxu0 0.0
      %803 = vmatpush.xpose.msra.mxu0 0.0
      %804 = vmatpush.xpose.msra.mxu0 0.0
      %805 = vmatpush.xpose.msra.mxu0 0.0
      %806 = vmatpush.xpose.msra.mxu0 0.0
      %807 = vmatpush.xpose.msra.mxu0 0.0
      %808 = vmatpush.xpose.msra.mxu0 0.0
      %809 = vmatpush.xpose.msra.mxu0 0.0
      %810 = vmatpush.xpose.msra.mxu0 0.0
      %811 = vmatpush.xpose.msra.mxu0 0.0
      %812 = vmatpush.xpose.msra.mxu0 0.0
      %813 = vmatpush.xpose.msra.mxu0 %v796
      %814 = vmatmul.f32.gmra.mxu0 %v794
      %v815 = vpop.f32.mrf.mxu0
      %v816 = vadd.f32 0.0, %v815
      %817 = vdwg.mxu0
      %v818 = vmul.f32 %v816, 0.35355338
      %v820 = vperm.slane %v736, 0
      %v822 = vadd.f32 %v818, %v820
      %v823 = vsel %vm793, %v822, -inf
      %824 = vmax.xlane.f32.xlu0 %v823
      %v825 = vpop.xlane.xlu0 %824
      %v826 = vsub.f32 %v822, %v825
      %v827 = vmul.f32 %v826, 1.442695
      %v828 = vpow.pop %v827
      %v829 = vsel %vm793, %v828, 0.0
      %830 = vadd.xlane.f32.xlu0 %v829
      %v831 = vpop.xlane.xlu0 %830
      %v832 = vrcp.pop %v831
      %v833 = vmul.f32 %v828, %v832
      %834 = vrot.lane.b32.xlu0 %v788, 64
      %v835 = vpop.permute.xlu0 %834
      %v838 = vsel %vm793, %v833, 0
      %840 = vmatpush.msra.mxu0 0.0
      %841 = vmatpush.msra.mxu0 0.0
      %842 = vmatpush.msra.mxu0 0.0
      %843 = vmatpush.msra.mxu0 0.0
      %844 = vmatpush.msra.mxu0 0.0
      %845 = vmatpush.msra.mxu0 0.0
      %846 = vmatpush.msra.mxu0 0.0
      %847 = vmatpush.msra.mxu0 0.0
      %848 = vmatpush.msra.mxu0 0.0
      %849 = vmatpush.msra.mxu0 0.0
      %850 = vmatpush.msra.mxu0 0.0
      %851 = vmatpush.msra.mxu0 0.0
      %852 = vmatpush.msra.mxu0 0.0
      %853 = vmatpush.msra.mxu0 0.0
      %854 = vmatpush.msra.mxu0 0.0
      %855 = vmatpush.msra.mxu0 %v835
      %856 = vmatmul.f32.gmra.mxu0 %v838
      %v857 = vpop.f32.mrf.mxu0
      %v858 = vadd.f32 0.0, %v857
      %859 = vdwg.mxu0
      %860 = vrot.lane.b32.xlu0 %v788, 120
      %v861 = vpop.permute.xlu0 %860
      %862 = vrot.lane.b32.xlu0 %v788, 88
      %v863 = vpop.permute.xlu0 %862
      %v864 = vsel %vm793, %v861, 0
      %v866 = vsel %vm793, %v863, 0
      %868 = vmatpush.xpose.msra.mxu0 0.0
      %869 = vmatpush.xpose.msra.mxu0 0.0
      %870 = vmatpush.xpose.msra.mxu0 0.0
      %871 = vmatpush.xpose.msra.mxu0 0.0
      %872 = vmatpush.xpose.msra.mxu0 0.0
      %873 = vmatpush.xpose.msra.mxu0 0.0
      %874 = vmatpush.xpose.msra.mxu0 0.0
      %875 = vmatpush.xpose.msra.mxu0 0.0
      %876 = vmatpush.xpose.msra.mxu0 0.0
      %877 = vmatpush.xpose.msra.mxu0 0.0
      %878 = vmatpush.xpose.msra.mxu0 0.0
      %879 = vmatpush.xpose.msra.mxu0 0.0
      %880 = vmatpush.xpose.msra.mxu0 0.0
      %881 = vmatpush.xpose.msra.mxu0 0.0
      %882 = vmatpush.xpose.msra.mxu0 0.0
      %883 = vmatpush.xpose.msra.mxu0 %v866
      %884 = vmatmul.f32.gmra.mxu0 %v864
      %v885 = vpop.f32.mrf.mxu0
      %v886 = vadd.f32 0.0, %v885
      %887 = vdwg.mxu0
      %v888 = vmul.f32 %v886, 0.35355338
      %v889 = vadd.f32 %v888, %v820
      %v890 = vsel %vm793, %v889, -inf
      %891 = vmax.xlane.f32.xlu0 %v890
      %v892 = vpop.xlane.xlu0 %891
      %v893 = vsub.f32 %v889, %v892
      %v894 = vmul.f32 %v893, 1.442695
      %v895 = vpow.pop %v894
      %v896 = vsel %vm793, %v895, 0.0
      %897 = vadd.xlane.f32.xlu0 %v896
      %v898 = vpop.xlane.xlu0 %897
      %v899 = vrcp.pop %v898
      %v900 = vmul.f32 %v895, %v899
      %901 = vrot.lane.b32.xlu0 %v788, 56
      %v902 = vpop.permute.xlu0 %901
      %v905 = vsel %vm793, %v900, 0
      %907 = vmatpush.msra.mxu0 0.0
      %908 = vmatpush.msra.mxu0 0.0
      %909 = vmatpush.msra.mxu0 0.0
      %910 = vmatpush.msra.mxu0 0.0
      %911 = vmatpush.msra.mxu0 0.0
      %912 = vmatpush.msra.mxu0 0.0
      %913 = vmatpush.msra.mxu0 0.0
      %914 = vmatpush.msra.mxu0 0.0
      %915 = vmatpush.msra.mxu0 0.0
      %916 = vmatpush.msra.mxu0 0.0
      %917 = vmatpush.msra.mxu0 0.0
      %918 = vmatpush.msra.mxu0 0.0
      %919 = vmatpush.msra.mxu0 0.0
      %920 = vmatpush.msra.mxu0 0.0
      %921 = vmatpush.msra.mxu0 0.0
      %922 = vmatpush.msra.mxu0 %v902
      %923 = vmatmul.f32.gmra.mxu0 %v905
      %v924 = vpop.f32.mrf.mxu0
      %v925 = vadd.f32 0.0, %v924
      %926 = vdwg.mxu0
      %v928 = vsel %vm793, %v925, 0
      %930 = vmatpush.msra.mxu0 0.0
      %931 = vmatpush.msra.mxu0 0.0
      %932 = vmatpush.msra.mxu0 0.0
      %933 = vmatpush.msra.mxu0 0.0
      %934 = vmatpush.msra.mxu0 0.0
      %935 = vmatpush.msra.mxu0 0.0
      %936 = vmatpush.msra.mxu0 0.0
      %937 = vmatpush.msra.mxu0 0.0
      %938 = vmatpush.msra.mxu0 0.0
      %939 = vmatpush.msra.mxu0 0.0
      %940 = vmatpush.msra.mxu0 0.0
      %941 = vmatpush.msra.mxu0 0.0
      %942 = vmatpush.msra.mxu0 0.0
      %943 = vmatpush.msra.mxu0 0.0
      %944 = vmatpush.msra.mxu0 0.0
      %945 = vmatpush.msra.mxu0 %v743
      %946 = vmatmul.f32.gmra.mxu0 %v928
      %v947 = vpop.f32.mrf.mxu0
      %v948 = vadd.f32 0.0, %v947
      %949 = vdwg.mxu0
      %v951 = vsel %vm793, %v858, 0
      %953 = vmatpush.msra.mxu0 0.0
      %954 = vmatpush.msra.mxu0 0.0
      %955 = vmatpush.msra.mxu0 0.0
      %956 = vmatpush.msra.mxu0 0.0
      %957 = vmatpush.msra.mxu0 0.0
      %958 = vmatpush.msra.mxu0 0.0
      %959 = vmatpush.msra.mxu0 0.0
      %960 = vmatpush.msra.mxu0 0.0
      %961 = vmatpush.msra.mxu0 0.0
      %962 = vmatpush.msra.mxu0 0.0
      %963 = vmatpush.msra.mxu0 0.0
      %964 = vmatpush.msra.mxu0 0.0
      %965 = vmatpush.msra.mxu0 0.0
      %966 = vmatpush.msra.mxu0 0.0
      %967 = vmatpush.msra.mxu0 0.0
      %968 = vmatpush.msra.mxu0 %v742
      %969 = vmatmul.f32.gmra.mxu0 %v951
      %v970 = vpop.f32.mrf.mxu0
      %v971 = vadd.f32 %v948, %v970
      %972 = vdwg.mxu0
      %973 = vrot.lane.b32.xlu0 %v788, 112
      %v974 = vpop.permute.xlu0 %973
      %975 = vrot.lane.b32.xlu0 %v788, 80
      %v976 = vpop.permute.xlu0 %975
      %v977 = vsel %vm793, %v974, 0
      %v979 = vsel %vm793, %v976, 0
      %981 = vmatpush.xpose.msra.mxu0 0.0
      %982 = vmatpush.xpose.msra.mxu0 0.0
      %983 = vmatpush.xpose.msra.mxu0 0.0
      %984 = vmatpush.xpose.msra.mxu0 0.0
      %985 = vmatpush.xpose.msra.mxu0 0.0
      %986 = vmatpush.xpose.msra.mxu0 0.0
      %987 = vmatpush.xpose.msra.mxu0 0.0
      %988 = vmatpush.xpose.msra.mxu0 0.0
      %989 = vmatpush.xpose.msra.mxu0 0.0
      %990 = vmatpush.xpose.msra.mxu0 0.0
      %991 = vmatpush.xpose.msra.mxu0 0.0
      %992 = vmatpush.xpose.msra.mxu0 0.0
      %993 = vmatpush.xpose.msra.mxu0 0.0
      %994 = vmatpush.xpose.msra.mxu0 0.0
      %995 = vmatpush.xpose.msra.mxu0 0.0
      %996 = vmatpush.xpose.msra.mxu0 %v979
      %997 = vmatmul.f32.gmra.mxu0 %v977
      %v998 = vpop.f32.mrf.mxu0
      %v999 = vadd.f32 0.0, %v998
      %1000 = vdwg.mxu0
      %v1001 = vmul.f32 %v999, 0.35355338
      %v1002 = vadd.f32 %v1001, %v820
      %v1003 = vsel %vm793, %v1002, -inf
      %1004 = vmax.xlane.f32.xlu0 %v1003
      %v1005 = vpop.xlane.xlu0 %1004
      %v1006 = vsub.f32 %v1002, %v1005
      %v1007 = vmul.f32 %v1006, 1.442695
      %v1008 = vpow.pop %v1007
      %v1009 = vsel %vm793, %v1008, 0.0
      %1010 = vadd.xlane.f32.xlu0 %v1009
      %v1011 = vpop.xlane.xlu0 %1010
      %v1012 = vrcp.pop %v1011
      %v1013 = vmul.f32 %v1008, %v1012
      %1014 = vrot.lane.b32.xlu0 %v788, 48
      %v1015 = vpop.permute.xlu0 %1014
      %v1018 = vsel %vm793, %v1013, 0
      %1020 = vmatpush.msra.mxu0 0.0
      %1021 = vmatpush.msra.mxu0 0.0
      %1022 = vmatpush.msra.mxu0 0.0
      %1023 = vmatpush.msra.mxu0 0.0
      %1024 = vmatpush.msra.mxu0 0.0
      %1025 = vmatpush.msra.mxu0 0.0
      %1026 = vmatpush.msra.mxu0 0.0
      %1027 = vmatpush.msra.mxu0 0.0
      %1028 = vmatpush.msra.mxu0 0.0
      %1029 = vmatpush.msra.mxu0 0.0
      %1030 = vmatpush.msra.mxu0 0.0
      %1031 = vmatpush.msra.mxu0 0.0
      %1032 = vmatpush.msra.mxu0 0.0
      %1033 = vmatpush.msra.mxu0 0.0
      %1034 = vmatpush.msra.mxu0 0.0
      %1035 = vmatpush.msra.mxu0 %v1015
      %1036 = vmatmul.f32.gmra.mxu0 %v1018
      %v1037 = vpop.f32.mrf.mxu0
      %v1038 = vadd.f32 0.0, %v1037
      %1039 = vdwg.mxu0
      %v1041 = vsel %vm793, %v1038, 0
      %1043 = vmatpush.msra.mxu0 0.0
      %1044 = vmatpush.msra.mxu0 0.0
      %1045 = vmatpush.msra.mxu0 0.0
      %1046 = vmatpush.msra.mxu0 0.0
      %1047 = vmatpush.msra.mxu0 0.0
      %1048 = vmatpush.msra.mxu0 0.0
      %1049 = vmatpush.msra.mxu0 0.0
      %1050 = vmatpush.msra.mxu0 0.0
      %1051 = vmatpush.msra.mxu0 0.0
      %1052 = vmatpush.msra.mxu0 0.0
      %1053 = vmatpush.msra.mxu0 0.0
      %1054 = vmatpush.msra.mxu0 0.0
      %1055 = vmatpush.msra.mxu0 0.0
      %1056 = vmatpush.msra.mxu0 0.0
      %1057 = vmatpush.msra.mxu0 0.0
      %1058 = vmatpush.msra.mxu0 %v744
      %1059 = vmatmul.f32.gmra.mxu0 %v1041
      %v1060 = vpop.f32.mrf.mxu0
      %v1061 = vadd.f32 0.0, %v1060
      %1062 = vdwg.mxu0
      %v1063 = vadd.f32 %v971, %v1061
      %1064 = vrot.lane.b32.xlu0 %v788, 104
      %v1065 = vpop.permute.xlu0 %1064
      %1066 = vrot.lane.b32.xlu0 %v788, 72
      %v1067 = vpop.permute.xlu0 %1066
      %v1068 = vsel %vm793, %v1065, 0
      %v1070 = vsel %vm793, %v1067, 0
      %1072 = vmatpush.xpose.msra.mxu0 0.0
      %1073 = vmatpush.xpose.msra.mxu0 0.0
      %1074 = vmatpush.xpose.msra.mxu0 0.0
      %1075 = vmatpush.xpose.msra.mxu0 0.0
      %1076 = vmatpush.xpose.msra.mxu0 0.0
      %1077 = vmatpush.xpose.msra.mxu0 0.0
      %1078 = vmatpush.xpose.msra.mxu0 0.0
      %1079 = vmatpush.xpose.msra.mxu0 0.0
      %1080 = vmatpush.xpose.msra.mxu0 0.0
      %1081 = vmatpush.xpose.msra.mxu0 0.0
      %1082 = vmatpush.xpose.msra.mxu0 0.0
      %1083 = vmatpush.xpose.msra.mxu0 0.0
      %1084 = vmatpush.xpose.msra.mxu0 0.0
      %1085 = vmatpush.xpose.msra.mxu0 0.0
      %1086 = vmatpush.xpose.msra.mxu0 0.0
      %1087 = vmatpush.xpose.msra.mxu0 %v1070
      %1088 = vmatmul.f32.gmra.mxu0 %v1068
      %v1089 = vpop.f32.mrf.mxu0
      %v1090 = vadd.f32 0.0, %v1089
      %1091 = vdwg.mxu0
      %v1092 = vmul.f32 %v1090, 0.35355338
      %v1093 = vadd.f32 %v1092, %v820
      %v1094 = vsel %vm793, %v1093, -inf
      %1095 = vmax.xlane.f32.xlu0 %v1094
      %v1096 = vpop.xlane.xlu0 %1095
      %v1097 = vsub.f32 %v1093, %v1096
      %v1098 = vmul.f32 %v1097, 1.442695
      %v1099 = vpow.pop %v1098
      %v1100 = vsel %vm793, %v1099, 0.0
      %1101 = vadd.xlane.f32.xlu0 %v1100
      %v1102 = vpop.xlane.xlu0 %1101
      %v1103 = vrcp.pop %v1102
      %v1104 = vmul.f32 %v1099, %v1103
      %1105 = vrot.lane.b32.xlu0 %v788, 40
      %v1106 = vpop.permute.xlu0 %1105
      %v1109 = vsel %vm793, %v1104, 0
      %1111 = vmatpush.msra.mxu0 0.0
      %1112 = vmatpush.msra.mxu0 0.0
      %1113 = vmatpush.msra.mxu0 0.0
      %1114 = vmatpush.msra.mxu0 0.0
      %1115 = vmatpush.msra.mxu0 0.0
      %1116 = vmatpush.msra.mxu0 0.0
      %1117 = vmatpush.msra.mxu0 0.0
      %1118 = vmatpush.msra.mxu0 0.0
      %1119 = vmatpush.msra.mxu0 0.0
      %1120 = vmatpush.msra.mxu0 0.0
      %1121 = vmatpush.msra.mxu0 0.0
      %1122 = vmatpush.msra.mxu0 0.0
      %1123 = vmatpush.msra.mxu0 0.0
      %1124 = vmatpush.msra.mxu0 0.0
      %1125 = vmatpush.msra.mxu0 0.0
      %1126 = vmatpush.msra.mxu0 %v1106
      %1127 = vmatmul.f32.gmra.mxu0 %v1109
      %v1128 = vpop.f32.mrf.mxu0
      %v1129 = vadd.f32 0.0, %v1128
      %1130 = vdwg.mxu0
      %v1132 = vsel %vm793, %v1129, 0
      %1134 = vmatpush.msra.mxu0 0.0
      %1135 = vmatpush.msra.mxu0 0.0
      %1136 = vmatpush.msra.mxu0 0.0
      %1137 = vmatpush.msra.mxu0 0.0
      %1138 = vmatpush.msra.mxu0 0.0
      %1139 = vmatpush.msra.mxu0 0.0
      %1140 = vmatpush.msra.mxu0 0.0
      %1141 = vmatpush.msra.mxu0 0.0
      %1142 = vmatpush.msra.mxu0 0.0
      %1143 = vmatpush.msra.mxu0 0.0
      %1144 = vmatpush.msra.mxu0 0.0
      %1145 = vmatpush.msra.mxu0 0.0
      %1146 = vmatpush.msra.mxu0 0.0
      %1147 = vmatpush.msra.mxu0 0.0
      %1148 = vmatpush.msra.mxu0 0.0
      %1149 = vmatpush.msra.mxu0 %v745
      %1150 = vmatmul.f32.gmra.mxu0 %v1132
      %v1151 = vpop.f32.mrf.mxu0
      %v1152 = vadd.f32 0.0, %v1151
      %1153 = vdwg.mxu0
      %v1154 = vadd.f32 %v1063, %v1152
      %v1156 = vperm.slane %v746, 0
      %v1158 = vadd.f32 %v1154, %v1156
      %v1159 = vadd.f32 %v1158, %v735
      %v1160 = vsel %vm766, %v1159, 0.0
      %1161 = vadd.xlane.f32.xlu0 %v1160
      %v1162 = vpop.xlane.xlu0 %1161
      %v1163 = vrcp.pop 32.0
      %v1164 = vmul.f32 32.0, %v1163
      %v1165 = vsub.f32 1.0, %v1164
      %v1166 = vmul.f32 %v1163, %v1165
      %v1167 = vadd.f32 %v1163, %v1166
      %vm1168 = vweird.f32 %v1163
      %v1169 = vsel %vm1168, %v1163, %v1167
      %v1170 = vmul.f32 %v1162, %v1169
      %v1171 = vsub.f32 %v1159, %v1170
      %v1172 = vmul.f32 %v1171, %v1171
      %v1173 = vsel %vm766, %v1172, 0.0
      %1174 = vadd.xlane.f32.xlu0 %v1173
      %v1175 = vpop.xlane.xlu0 %1174
      %v1176 = vmul.f32 %v1175, %v1169
      %v1177 = vadd.f32 %v1176, 1e-12
      %v1178 = vrsqrt.pop %v1177
      %v1179 = vmul.f32 %v1178, %v1177
      %v1180 = vmul.f32 %v1179, %v1178
      %v1181 = vmul.f32 0.5, %v1180
      %v1182 = vsub.f32 1.5, %v1181
      %v1183 = vmul.f32 %v1178, %v1182
      %vm1184 = vweird.f32 %v1177
      %vm1185 = vweird.f32 %v1178
      %vm1186 = vmor %vm1184, %vm1185
      %v1187 = vsel %vm1186, %v1178, %v1183
      %v1188 = vmul.f32 %v1171, %v1187
      %v1189 = vperm.slane %v747, 0
      %v1190 = vmul.f32 %v1188, %v1189
      %v1191 = vperm.slane %v747, 1
      %v1192 = vadd.f32 %v1190, %v1191
      %v1194 = vperm.slane %v752, 0
      %v1197 = vsel %vm766, %v1192, 0
      %1199 = vmatpush.msra.mxu0 0.0
      %1200 = vmatpush.msra.mxu0 0.0
      %1201 = vmatpush.msra.mxu0 0.0
      %1202 = vmatpush.msra.mxu0 0.0
      %1203 = vmatpush.msra.mxu0 0.0
      %1204 = vmatpush.msra.mxu0 0.0
      %1205 = vmatpush.msra.mxu0 0.0
      %1206 = vmatpush.msra.mxu0 0.0
      %1207 = vmatpush.msra.mxu0 0.0
      %1208 = vmatpush.msra.mxu0 0.0
      %1209 = vmatpush.msra.mxu0 0.0
      %1210 = vmatpush.msra.mxu0 0.0
      %1211 = vmatpush.msra.mxu0 %v751
      %1212 = vmatpush.msra.mxu0 %v750
      %1213 = vmatpush.msra.mxu0 %v749
      %1214 = vmatpush.msra.mxu0 %v748
      %1215 = vmatmul.f32.gmra.mxu0 %v1197
      %v1216 = vpop.f32.mrf.mxu0
      %v1217 = vadd.f32 %v1194, %v1216
      %1218 = vdwg.mxu0
      %v1219 = vmul.f32 %v1217, 0.5
      %v1220 = vmul.f32 %v1217, 0.044715
      %v1221 = vmul.f32 %v1220, %v1217
      %v1222 = vmul.f32 %v1221, %v1217
      %v1223 = vadd.f32 %v1217, %v1222
      %v1224 = vmul.f32 %v1223, 0.7978846
      %v1225 = vtanh.pop %v1224
      %v1226 = vadd.f32 %v1225, 1.0
      %v1227 = vmul.f32 %v1219, %v1226
      %v1229 = vperm.slane %v761, 0
      %vm1231 = vcmask 523264
      %v1233 = vsel %vm1231, %v1227, 0
      %1235 = vmatpush.msra.mxu0 0.0
      %1236 = vmatpush.msra.mxu0 0.0
      %1237 = vmatpush.msra.mxu0 0.0
      %1238 = vmatpush.msra.mxu0 0.0
      %1239 = vmatpush.msra.mxu0 0.0
      %1240 = vmatpush.msra.mxu0 0.0
      %1241 = vmatpush.msra.mxu0 0.0
      %1242 = vmatpush.msra.mxu0 0.0
      %1243 = vmatpush.msra.mxu0 %v760
      %1244 = vmatpush.msra.mxu0 %v759
      %1245 = vmatpush.msra.mxu0 %v758
      %1246 = vmatpush.msra.mxu0 %v757
      %1247 = vmatpush.msra.mxu0 %v756
      %1248 = vmatpush.msra.mxu0 %v755
      %1249 = vmatpush.msra.mxu0 %v754
      %1250 = vmatpush.msra.mxu0 %v753
      %1251 = vmatmul.f32.gmra.mxu0 %v1233
      %v1252 = vpop.f32.mrf.mxu0
      %v1253 = vadd.f32 %v1229, %v1252
      %1254 = vdwg.mxu0
      %v1255 = vadd.f32 %v1253, %v1192
      %v1256 = vsel %vm766, %v1255, 0.0
      %1257 = vadd.xlane.f32.xlu0 %v1256
      %v1258 = vpop.xlane.xlu0 %1257
      %v1259 = vmul.f32 %v1258, %v1169
      %v1260 = vsub.f32 %v1255, %v1259
      %v1261 = vmul.f32 %v1260, %v1260
      %v1262 = vsel %vm766, %v1261, 0.0
      %1263 = vadd.xlane.f32.xlu0 %v1262
      %v1264 = vpop.xlane.xlu0 %1263
      %v1265 = vmul.f32 %v1264, %v1169
      %v1266 = vadd.f32 %v1265, 1e-12
      %v1267 = vrsqrt.pop %v1266
      %v1268 = vmul.f32 %v1267, %v1266
      %v1269 = vmul.f32 %v1268, %v1267
      %v1270 = vmul.f32 0.5, %v1269
      %v1271 = vsub.f32 1.5, %v1270
      %v1272 = vmul.f32 %v1267, %v1271
      %vm1273 = vweird.f32 %v1266
      %vm1274 = vweird.f32 %v1267
      %vm1275 = vmor %vm1273, %vm1274
      %v1276 = vsel %vm1275, %v1267, %v1272
      %v1277 = vmul.f32 %v1260, %v1276
      %v1278 = vperm.slane %v762, 0
      %v1279 = vmul.f32 %v1277, %v1278
      %v1280 = vperm.slane %v762, 1
      %v1281 = vadd.f32 %v1279, %v1280
      %1282 = vst.msk [vmem:[%s685] sm:$0xff] %vm766, %v1281
      %p1283 = scmp.lt.s32.totalorder %s30, 1
      %s1284 = scalar_select %p1283, %s30, 1
      %s1285 = smul.addr %s1284, 8
      %s1286 = scalar_lea.vmem %s15, %s1285
      // Predicated region
      $region85: #{retromae_forward.4} parent=79 // pred_check
        %p1287 = pneg %p431
      $region86: #{retromae_forward.4} parent=79 // pred_check_branch
        %1289 = sbr.rel (%p1287) target = $region88
      $region87: #{retromae_forward.4} parent=79 // pred_region
        _
      $region88: #{retromae_forward.4} parent=79 // pred_fallthru
        _
    $region80: #{retromae_forward.4} parent=5 // pred_fallthru
      _
    %p1290 = scmp.le.s32.totalorder 2, %s21
    // Predicated region
    $region89: #{retromae_forward.4} parent=5 // pred_check
      %p1291 = pneg %p1290
    $region90: #{retromae_forward.4} parent=5 // pred_check_branch
      %1293 = sbr.rel (%p1291) target = $region92
    $region91: #{retromae_forward.4} parent=5 // pred_region
      %s1294 = ssub.s32 %s21, 2
      // Predicated region
      $region93: #{retromae_forward.4} parent=91 // pred_check
        %p1295 = pneg %p437
      $region94: #{retromae_forward.4} parent=91 // pred_check_branch
        %1297 = sbr.rel (%p1295) target = $region96
      $region95: #{retromae_forward.4} parent=91 // pred_region
        %p1298 = scmp.lt.s32.totalorder %s32, 1
        %s1299 = scalar_select %p1298, %s32, 1
        %s1300 = smul.addr %s1299, 8
        %s1301 = scalar_lea.vmem %s15, %s1300
      $region96: #{retromae_forward.4} parent=91 // pred_fallthru
        _
    $region92: #{retromae_forward.4} parent=5 // pred_fallthru
      _
  $region6: #{retromae_forward.4} parent=0 // loop_footer
    %s25 = sadd.s32 1, %s21
  $region7: #{retromae_forward.4} parent=0 // loop_footer_branch
    %20 = sbr.rel target = $region3
  $region8: #{retromae_forward.4} parent=0 // loop_exit
    _

</llo_original>
